<compile_context>
chip_gen: v5e
topology: v5e:2x2
jax: 0.10.0
libtpu: 0.0.40
codegen_flags: <defaults>
</compile_context>

<pallas_src>
import functools

import jax
import jax.numpy as jnp
from jax.experimental import pallas as pl
from jax.experimental.pallas import tpu as pltpu


def _resblock_kernel(x_ref, w1_ref, b1_ref, w2_ref, b2_ref, o_ref,
                     *, H, W, C, mxu_dtype):
    """One grid step == one batch element.  Blocks are laid out (1, H*W, C)."""
    HW = H * W
    x = x_ref[0]                                   # (HW, C), input dtype

    # Boundary masks, (HW, 1), hoisted once and shared by both convs.
    pos = jax.lax.broadcasted_iota(jnp.int32, (HW, 1), 0)
    col = pos % W
    first_col = col == 0
    last_col = col == (W - 1)
    first_row = pos < W
    last_row = pos >= (H - 1) * W

    inv_n = jnp.float32(1.0 / HW)

    def conv3x3(a, w_ref, b_ref):
        # a: (HW, C) in mxu_dtype.  w_ref: (3C, 3C) with kw*Cin along K and
        # kh*Cout along N.  Returns the (HW, C) float32 conv output (+bias).
        # -- kw taps (reflected): flat rolls by +/-1; the only wrapped rows are
        #    exactly the reflected boundary columns, fixed by a VPU select.
        xm1 = pltpu.roll(a, 1, axis=0)             # a[p-1]
        xp1 = pltpu.roll(a, HW - 1, axis=0)        # a[p+1]
        left = jnp.where(first_col, xp1, xm1)      # a[h, w-1] (reflected)
        right = jnp.where(last_col, xm1, xp1)      # a[h, w+1] (reflected)
        slab = jnp.concatenate([left, a, right], axis=-1)          # (HW, 3C)
        # One MXU pass per conv: N = 3C packs the three kh taps.
        t = jnp.dot(slab, w_ref[...], preferred_element_type=jnp.float32)
        t0 = t[:, :C]
        t1 = t[:, C:2 * C]
        t2 = t[:, 2 * C:]
        # -- kh taps (reflected): same roll + boundary-select trick on the f32
        #    output strips, shift = +/- W (XLU slot, slack in this MXU-bound
        #    kernel).
        up = jnp.where(first_row,
                       pltpu.roll(t0, HW - W, axis=0),   # t0[p + W] (reflect)
                       pltpu.roll(t0, W, axis=0))        # t0[p - W]
        down = jnp.where(last_row,
                         pltpu.roll(t2, W, axis=0),      # t2[p - W] (reflect)
                         pltpu.roll(t2, HW - W, axis=0))  # t2[p + W]
        return b_ref[...].astype(jnp.float32) + up + t1 + down

    def instance_norm(y):
        # Two-pass centered stats (robust even with bf16 matmul operands).
        # Biased variance, eps=1e-5: InstanceNorm2d(affine=False,
        # track_running_stats=False) defaults.
        mean = jnp.sum(y, axis=0, keepdims=True) * inv_n
        d = y - mean
        var = jnp.sum(d * d, axis=0, keepdims=True) * inv_n
        return d * jax.lax.rsqrt(var + 1e-5)

    # conv1 -> IN -> ReLU
    y = conv3x3(x.astype(mxu_dtype), w1_ref, b1_ref)
    y = jnp.maximum(instance_norm(y), 0.0)

    # conv2 -> IN -> + residual
    z = conv3x3(y.astype(mxu_dtype), w2_ref, b2_ref)
    z = instance_norm(z)

    o_ref[0] = (z + x.astype(jnp.float32)).astype(o_ref.dtype)


def residual_block(x_nchw, w1, b1, w2, b2, *, use_bf16_matmul=True):
    """ResidualBlock forward.

    Args:
      x_nchw: (B, C, H, W) activations.
      w1, w2: (C, C, 3, 3) conv weights, PyTorch Conv2d (Cout, Cin, kh, kw).
      b1, b2: (C,) conv biases.
      use_bf16_matmul: feed the MXU bf16 operands (f32 accumulation) when the
        activations are f32.  Set False for strict-f32 matmuls.
    Returns:
      (B, C, H, W), same dtype as x_nchw.  InstanceNorm is affine=False.
    """
    B, C, H, W = x_nchw.shape
    assert H >= 2 and W >= 2, "ReflectionPad2d(1) requires H >= 2 and W >= 2"
    assert w1.shape == (C, C, 3, 3) and w2.shape == (C, C, 3, 3)
    assert b1.shape == (C,) and b2.shape == (C,)
    HW = H * W

    # NCHW -> NHWC -> (B, HW, C): channels on lanes, flattened rows on
    # sublanes.  Doing the flatten in the wrapper means the kernel never
    # reshapes (no relayout copies even when W is not a sublane multiple).
    x = jnp.transpose(x_nchw, (0, 2, 3, 1)).reshape(B, HW, C)

    mxu_dtype = (jnp.bfloat16 if (use_bf16_matmul and x.dtype == jnp.float32)
                 else x.dtype)

    def fuse_weight(w):
        # (Cout, Cin, kh, kw) -> (kw, Cin, kh, Cout) -> (3*Cin, 3*Cout):
        # kw taps along K (matches the [left|center|right] LHS slab), kh taps
        # along N (single MXU matmul per conv, full-width MXU on v6e/v7x).
        return jnp.transpose(w, (3, 1, 2, 0)).reshape(3 * C, 3 * C).astype(mxu_dtype)

    w1f, w2f = fuse_weight(w1), fuse_weight(w2)
    b1r = b1.reshape(1, C).astype(jnp.float32)
    b2r = b2.reshape(1, C).astype(jnp.float32)

    kernel = functools.partial(_resblock_kernel, H=H, W=W, C=C,
                               mxu_dtype=mxu_dtype)

    # --- VMEM accounting (tile-padded) + generation-aware budget ------------
    lane = 128

    def pad_up(n, m):
        return pl.cdiv(n, m) * m

    itm_x = jnp.dtype(x.dtype).itemsize
    itm_m = jnp.dtype(mxu_dtype).itemsize
    sub_x = 16 if itm_x == 2 else 8
    sub_m = 16 if itm_m == 2 else 8
    cp = pad_up(C, lane)
    c3p = pad_up(3 * C, lane)
    act_blk = pad_up(HW, sub_x) * cp * itm_x             # one x / out block
    w_blk = pad_up(3 * C, sub_m) * c3p * itm_m           # one fused weight
    f32_tmp = pad_up(HW, 8) * (2 * c3p + 10 * cp) * 4    # generous f32 temps
    mxu_tmp = pad_up(HW, sub_m) * (2 * c3p + 3 * cp) * itm_m
    vmem_est = 2 * 2 * act_blk + 2 * 2 * w_blk + f32_tmp + mxu_tmp

    try:
        physical = int(pltpu.get_tpu_info().vmem_capacity_bytes)
    except Exception:
        physical = 64 * 1024 * 1024                      # conservative (v7x)
    budget = int(0.8 * physical)   # ~51 MiB on v7x, ~102 MiB on v5e/v6e
    if vmem_est > budget:
        # TODO(synk): add a row-band grid axis (per-band partial sums/sumsq in
        # scratch + a normalize/finalize sweep, two-pass InstanceNorm) so large
        # images fit the per-core VMEM budget instead of failing here.
        raise NotImplementedError(
            f"ResidualBlock fused working set (~{vmem_est >> 20} MiB) exceeds "
            f"the VMEM budget (~{budget >> 20} MiB); row-band tiling is not "
            "implemented yet.")
    vmem_limit = int(min(max(vmem_est, 32 * 1024 * 1024), budget))

    cost = pl.CostEstimate(
        flops=2 * (2 * 9 * B * HW * C * C),              # two 3x3 convs
        transcendentals=2 * B * C,                       # rsqrt per channel/IN
        bytes_accessed=int(2 * x.size * itm_x
                           + (w1f.size + w2f.size) * itm_m
                           + (b1r.size + b2r.size) * 4),
    )

    out = pl.pallas_call(
        kernel,
        out_shape=jax.ShapeDtypeStruct((B, HW, C), x.dtype),
        grid=(B,),
        in_specs=[
            pl.BlockSpec((1, HW, C), lambda b: (b, 0, 0)),        # x
            pl.BlockSpec((3 * C, 3 * C), lambda b: (0, 0)),       # fused w1
            pl.BlockSpec((1, C), lambda b: (0, 0)),               # b1
            pl.BlockSpec((3 * C, 3 * C), lambda b: (0, 0)),       # fused w2
            pl.BlockSpec((1, C), lambda b: (0, 0)),               # b2
        ],
        out_specs=pl.BlockSpec((1, HW, C), lambda b: (b, 0, 0)),
        compiler_params=pltpu.CompilerParams(
            dimension_semantics=("parallel",),
            vmem_limit_bytes=vmem_limit,
        ),
        cost_estimate=cost,
    )(x, w1f, b1r, w2f, b2r)

    return jnp.transpose(out.reshape(B, H, W, C), (0, 3, 1, 2))


def _reference(x, w1, b1, w2, b2):
    """Pure-JAX reference of the PyTorch module (f32, highest precision)."""
    def conv_in(t, w, b):
        tp = jnp.pad(t, ((0, 0), (0, 0), (1, 1), (1, 1)), mode="reflect")
        y = jax.lax.conv_general_dilated(
            tp, w, window_strides=(1, 1), padding="VALID",
            dimension_numbers=("NCHW", "OIHW", "NCHW"),
            precision=jax.lax.Precision.HIGHEST)
        y = y + b[None, :, None, None]
        m = jnp.mean(y, axis=(2, 3), keepdims=True)
        v = jnp.mean(jnp.square(y - m), axis=(2, 3), keepdims=True)
        return (y - m) * jax.lax.rsqrt(v + 1e-5)

    h = jnp.maximum(conv_in(x, w1, b1), 0.0)
    return conv_in(h, w2, b2) + x


if __name__ == "__main__":
    B, C, H, W = 2, 4, 16, 16
    key = jax.random.PRNGKey(0)
    kx, kw1, kb1, kw2, kb2 = jax.random.split(key, 5)

    x = jax.random.normal(kx, (B, C, H, W), dtype=jnp.float32)

    # Deterministic synthetic parameters, PyTorch Conv2d layout (Cout, Cin, kh, kw).
    fan_in = C * 3 * 3
    scale = 1.0 / jnp.sqrt(jnp.float32(fan_in))
    w1 = jax.random.normal(kw1, (C, C, 3, 3), dtype=jnp.float32) * scale
    b1 = jax.random.normal(kb1, (C,), dtype=jnp.float32) * scale
    w2 = jax.random.normal(kw2, (C, C, 3, 3), dtype=jnp.float32) * scale
    b2 = jax.random.normal(kb2, (C,), dtype=jnp.float32) * scale

    ref = jax.block_until_ready(_reference(x, w1, b1, w2, b2))

    # Strict-f32 matmul path.
    out_f32 = jax.block_until_ready(
        residual_block(x, w1, b1, w2, b2, use_bf16_matmul=False))
    assert out_f32.shape == (B, C, H, W)
    err = float(jnp.max(jnp.abs(out_f32 - ref)))
    assert err < 2e-3, f"f32 kernel does not match reference (max abs err {err})"

    # Default bf16-on-MXU path (f32 accumulation).
    out_bf16 = jax.block_until_ready(residual_block(x, w1, b1, w2, b2))
    assert out_bf16.shape == (B, C, H, W)
    err_bf16 = float(jnp.max(jnp.abs(out_bf16 - ref)))
    assert err_bf16 < 5e-2, (
        f"bf16-matmul kernel does not match reference (max abs err {err_bf16})")

    print("KERNEL_OK")
</pallas_src>

<mosaic_0001>
module attributes {stable_mosaic.version = 11 : i64} {
  func.func @_resblock_kernel(%arg0: i32, %arg1: memref<1x256x4xf32, #tpu.memory_space<vmem>>, %arg2: memref<12x12xf32, #tpu.memory_space<vmem>>, %arg3: memref<1x4xf32, #tpu.memory_space<vmem>>, %arg4: memref<12x12xf32, #tpu.memory_space<vmem>>, %arg5: memref<1x4xf32, #tpu.memory_space<vmem>>, %arg6: memref<1x256x4xf32, #tpu.memory_space<vmem>>) attributes {dimension_semantics = [#tpu.dimension_semantics<parallel>], iteration_bounds = array<i64: 2>, scalar_prefetch = 0 : i64, scratch_operands = 0 : i64, tpu.core_type = #tpu.core_type<tc>, window_params = [{transform_indices = @transform_0, window_bounds = array<i64: 1, 256, 4>}, {pipeline_mode = #tpu.pipeline_mode<synchronous>, transform_indices = @transform_1, window_bounds = array<i64: 12, 12>}, {pipeline_mode = #tpu.pipeline_mode<synchronous>, transform_indices = @transform_2, window_bounds = array<i64: 1, 4>}, {pipeline_mode = #tpu.pipeline_mode<synchronous>, transform_indices = @transform_3, window_bounds = array<i64: 12, 12>}, {pipeline_mode = #tpu.pipeline_mode<synchronous>, transform_indices = @transform_4, window_bounds = array<i64: 1, 4>}, {transform_indices = @transform_5, window_bounds = array<i64: 1, 256, 4>}]} {
    %c0 = arith.constant 0 : index
    %c0_0 = arith.constant 0 : index
    %c0_1 = arith.constant 0 : index
    %0 = vector.load %arg1[%c0, %c0_0, %c0_1] : memref<1x256x4xf32, #tpu.memory_space<vmem>>, vector<1x256x4xf32>
    %1 = vector.shape_cast %0 : vector<1x256x4xf32> to vector<256x4xf32>
    %2 = tpu.iota {dimensions = array<i32: 0>} : vector<256x1xi32>
    %c16_i32 = arith.constant 16 : i32
    %c0_i32 = arith.constant 0 : i32
    %3 = arith.cmpi eq, %c16_i32, %c0_i32 : i32
    %c1_i32 = arith.constant 1 : i32
    %4 = arith.select %3, %c1_i32, %c16_i32 : i32
    %5 = vector.broadcast %4 : i32 to vector<256x1xi32>
    %6 = arith.remsi %2, %5 : vector<256x1xi32>
    %c0_i32_2 = arith.constant 0 : i32
    %7 = vector.broadcast %c0_i32_2 : i32 to vector<256x1xi32>
    %8 = arith.cmpi ne, %6, %7 : vector<256x1xi32>
    %c0_i32_3 = arith.constant 0 : i32
    %9 = vector.broadcast %c0_i32_3 : i32 to vector<256x1xi32>
    %10 = arith.cmpi slt, %6, %9 : vector<256x1xi32>
    %c0_i32_4 = arith.constant 0 : i32
    %11 = arith.cmpi slt, %4, %c0_i32_4 : i32
    %12 = vector.broadcast %11 : i1 to vector<256x1xi1>
    %13 = vector.broadcast %12 : vector<256x1xi1> to vector<256x1xi1>
    %14 = arith.xori %10, %13 : vector<256x1xi1>
    %15 = arith.andi %14, %8 : vector<256x1xi1>
    %16 = vector.broadcast %4 : i32 to vector<256x1xi32>
    %17 = arith.addi %6, %16 : vector<256x1xi32>
    %18 = arith.select %15, %17, %6 : vector<256x1xi1>, vector<256x1xi32>
    %c0_i32_5 = arith.constant 0 : i32
    %19 = vector.broadcast %c0_i32_5 : i32 to vector<256x1xi32>
    %20 = arith.cmpi eq, %18, %19 : vector<256x1xi32>
    %c15_i32 = arith.constant 15 : i32
    %21 = vector.broadcast %c15_i32 : i32 to vector<256x1xi32>
    %22 = arith.cmpi eq, %18, %21 : vector<256x1xi32>
    %c16_i32_6 = arith.constant 16 : i32
    %23 = vector.broadcast %c16_i32_6 : i32 to vector<256x1xi32>
    %24 = arith.cmpi slt, %2, %23 : vector<256x1xi32>
    %c240_i32 = arith.constant 240 : i32
    %25 = vector.broadcast %c240_i32 : i32 to vector<256x1xi32>
    %26 = arith.cmpi sge, %2, %25 : vector<256x1xi32>
    %c1_i32_7 = arith.constant 1 : i32
    %27 = tpu.dynamic_rotate %1 by %c1_i32_7 dim 0 : vector<256x4xf32>, i32 -> vector<256x4xf32>
    %c255_i32 = arith.constant 255 : i32
    %28 = tpu.dynamic_rotate %1 by %c255_i32 dim 0 : vector<256x4xf32>, i32 -> vector<256x4xf32>
    %29 = vector.shape_cast %20 : vector<256x1xi1> to vector<256x1xi1>
    %30 = vector.broadcast %29 : vector<256x1xi1> to vector<256x4xi1>
    %31 = arith.select %30, %28, %27 : vector<256x4xi1>, vector<256x4xf32>
    %32 = vector.shape_cast %22 : vector<256x1xi1> to vector<256x1xi1>
    %33 = vector.broadcast %32 : vector<256x1xi1> to vector<256x4xi1>
    %34 = arith.select %33, %27, %28 : vector<256x4xi1>, vector<256x4xf32>
    %35 = tpu.concatenate %31, %1, %34 in 1 : vector<256x4xf32>, vector<256x4xf32>, vector<256x4xf32> -> vector<256x12xf32>
    %c0_8 = arith.constant 0 : index
    %c0_9 = arith.constant 0 : index
    %36 = vector.load %arg2[%c0_8, %c0_9] : memref<12x12xf32, #tpu.memory_space<vmem>>, vector<12x12xf32>
    %cst = arith.constant dense<0.000000e+00> : vector<256x12xf32>
    %37 = tpu.matmul %35, %36, %cst {dimension_numbers = #tpu.dot_dimension_numbers<[1], [0], [0], [1], [0, 0, 1, 1], [], []>} : vector<256x12xf32>, vector<12x12xf32>, vector<256x12xf32> -> vector<256x12xf32>
    %38 = vector.extract_strided_slice %37 {offsets = [0, 0], sizes = [256, 4], strides = [1, 1]} : vector<256x12xf32> to vector<256x4xf32>
    %39 = vector.extract_strided_slice %37 {offsets = [0, 4], sizes = [256, 4], strides = [1, 1]} : vector<256x12xf32> to vector<256x4xf32>
    %40 = vector.extract_strided_slice %37 {offsets = [0, 8], sizes = [256, 4], strides = [1, 1]} : vector<256x12xf32> to vector<256x4xf32>
    %c240_i32_10 = arith.constant 240 : i32
    %41 = tpu.dynamic_rotate %38 by %c240_i32_10 dim 0 : vector<256x4xf32>, i32 -> vector<256x4xf32>
    %c16_i32_11 = arith.constant 16 : i32
    %42 = tpu.dynamic_rotate %38 by %c16_i32_11 dim 0 : vector<256x4xf32>, i32 -> vector<256x4xf32>
    %43 = vector.shape_cast %24 : vector<256x1xi1> to vector<256x1xi1>
    %44 = vector.broadcast %43 : vector<256x1xi1> to vector<256x4xi1>
    %45 = arith.select %44, %41, %42 : vector<256x4xi1>, vector<256x4xf32>
    %c16_i32_12 = arith.constant 16 : i32
    %46 = tpu.dynamic_rotate %40 by %c16_i32_12 dim 0 : vector<256x4xf32>, i32 -> vector<256x4xf32>
    %c240_i32_13 = arith.constant 240 : i32
    %47 = tpu.dynamic_rotate %40 by %c240_i32_13 dim 0 : vector<256x4xf32>, i32 -> vector<256x4xf32>
    %48 = vector.shape_cast %26 : vector<256x1xi1> to vector<256x1xi1>
    %49 = vector.broadcast %48 : vector<256x1xi1> to vector<256x4xi1>
    %50 = arith.select %49, %46, %47 : vector<256x4xi1>, vector<256x4xf32>
    %c0_14 = arith.constant 0 : index
    %c0_15 = arith.constant 0 : index
    %51 = vector.load %arg3[%c0_14, %c0_15] : memref<1x4xf32, #tpu.memory_space<vmem>>, vector<1x4xf32>
    %52 = vector.broadcast %51 : vector<1x4xf32> to vector<256x4xf32>
    %53 = arith.addf %52, %45 : vector<256x4xf32>
    %54 = arith.addf %53, %39 : vector<256x4xf32>
    %55 = arith.addf %54, %50 : vector<256x4xf32>
    %cst_16 = arith.constant dense<0.000000e+00> : vector<4xf32>
    %56 = vector.multi_reduction <add>, %55, %cst_16 [0] : vector<256x4xf32> to vector<4xf32>
    %57 = vector.shape_cast %56 : vector<4xf32> to vector<1x4xf32>
    %cst_17 = arith.constant 3.906250e-03 : f32
    %58 = vector.broadcast %cst_17 : f32 to vector<1x4xf32>
    %59 = arith.mulf %57, %58 : vector<1x4xf32>
    %60 = vector.broadcast %59 : vector<1x4xf32> to vector<256x4xf32>
    %61 = arith.subf %55, %60 : vector<256x4xf32>
    %62 = arith.mulf %61, %61 : vector<256x4xf32>
    %cst_18 = arith.constant dense<0.000000e+00> : vector<4xf32>
    %63 = vector.multi_reduction <add>, %62, %cst_18 [0] : vector<256x4xf32> to vector<4xf32>
    %64 = vector.shape_cast %63 : vector<4xf32> to vector<1x4xf32>
    %cst_19 = arith.constant 3.906250e-03 : f32
    %65 = vector.broadcast %cst_19 : f32 to vector<1x4xf32>
    %66 = arith.mulf %64, %65 : vector<1x4xf32>
    %cst_20 = arith.constant 9.99999974E-6 : f32
    %67 = vector.broadcast %cst_20 : f32 to vector<1x4xf32>
    %68 = arith.addf %66, %67 : vector<1x4xf32>
    %69 = math.rsqrt %68 : vector<1x4xf32>
    %70 = vector.broadcast %69 : vector<1x4xf32> to vector<256x4xf32>
    %71 = arith.mulf %61, %70 : vector<256x4xf32>
    %cst_21 = arith.constant 0.000000e+00 : f32
    %72 = vector.broadcast %cst_21 : f32 to vector<256x4xf32>
    %73 = arith.maximumf %71, %72 : vector<256x4xf32>
    %c1_i32_22 = arith.constant 1 : i32
    %74 = tpu.dynamic_rotate %73 by %c1_i32_22 dim 0 : vector<256x4xf32>, i32 -> vector<256x4xf32>
    %c255_i32_23 = arith.constant 255 : i32
    %75 = tpu.dynamic_rotate %73 by %c255_i32_23 dim 0 : vector<256x4xf32>, i32 -> vector<256x4xf32>
    %76 = vector.shape_cast %20 : vector<256x1xi1> to vector<256x1xi1>
    %77 = vector.broadcast %76 : vector<256x1xi1> to vector<256x4xi1>
    %78 = arith.select %77, %75, %74 : vector<256x4xi1>, vector<256x4xf32>
    %79 = vector.shape_cast %22 : vector<256x1xi1> to vector<256x1xi1>
    %80 = vector.broadcast %79 : vector<256x1xi1> to vector<256x4xi1>
    %81 = arith.select %80, %74, %75 : vector<256x4xi1>, vector<256x4xf32>
    %82 = tpu.concatenate %78, %73, %81 in 1 : vector<256x4xf32>, vector<256x4xf32>, vector<256x4xf32> -> vector<256x12xf32>
    %c0_24 = arith.constant 0 : index
    %c0_25 = arith.constant 0 : index
    %83 = vector.load %arg4[%c0_24, %c0_25] : memref<12x12xf32, #tpu.memory_space<vmem>>, vector<12x12xf32>
    %cst_26 = arith.constant dense<0.000000e+00> : vector<256x12xf32>
    %84 = tpu.matmul %82, %83, %cst_26 {dimension_numbers = #tpu.dot_dimension_numbers<[1], [0], [0], [1], [0, 0, 1, 1], [], []>} : vector<256x12xf32>, vector<12x12xf32>, vector<256x12xf32> -> vector<256x12xf32>
    %85 = vector.extract_strided_slice %84 {offsets = [0, 0], sizes = [256, 4], strides = [1, 1]} : vector<256x12xf32> to vector<256x4xf32>
    %86 = vector.extract_strided_slice %84 {offsets = [0, 4], sizes = [256, 4], strides = [1, 1]} : vector<256x12xf32> to vector<256x4xf32>
    %87 = vector.extract_strided_slice %84 {offsets = [0, 8], sizes = [256, 4], strides = [1, 1]} : vector<256x12xf32> to vector<256x4xf32>
    %c240_i32_27 = arith.constant 240 : i32
    %88 = tpu.dynamic_rotate %85 by %c240_i32_27 dim 0 : vector<256x4xf32>, i32 -> vector<256x4xf32>
    %c16_i32_28 = arith.constant 16 : i32
    %89 = tpu.dynamic_rotate %85 by %c16_i32_28 dim 0 : vector<256x4xf32>, i32 -> vector<256x4xf32>
    %90 = vector.shape_cast %24 : vector<256x1xi1> to vector<256x1xi1>
    %91 = vector.broadcast %90 : vector<256x1xi1> to vector<256x4xi1>
    %92 = arith.select %91, %88, %89 : vector<256x4xi1>, vector<256x4xf32>
    %c16_i32_29 = arith.constant 16 : i32
    %93 = tpu.dynamic_rotate %87 by %c16_i32_29 dim 0 : vector<256x4xf32>, i32 -> vector<256x4xf32>
    %c240_i32_30 = arith.constant 240 : i32
    %94 = tpu.dynamic_rotate %87 by %c240_i32_30 dim 0 : vector<256x4xf32>, i32 -> vector<256x4xf32>
    %95 = vector.shape_cast %26 : vector<256x1xi1> to vector<256x1xi1>
    %96 = vector.broadcast %95 : vector<256x1xi1> to vector<256x4xi1>
    %97 = arith.select %96, %93, %94 : vector<256x4xi1>, vector<256x4xf32>
    %c0_31 = arith.constant 0 : index
    %c0_32 = arith.constant 0 : index
    %98 = vector.load %arg5[%c0_31, %c0_32] : memref<1x4xf32, #tpu.memory_space<vmem>>, vector<1x4xf32>
    %99 = vector.broadcast %98 : vector<1x4xf32> to vector<256x4xf32>
    %100 = arith.addf %99, %92 : vector<256x4xf32>
    %101 = arith.addf %100, %86 : vector<256x4xf32>
    %102 = arith.addf %101, %97 : vector<256x4xf32>
    %cst_33 = arith.constant dense<0.000000e+00> : vector<4xf32>
    %103 = vector.multi_reduction <add>, %102, %cst_33 [0] : vector<256x4xf32> to vector<4xf32>
    %104 = vector.shape_cast %103 : vector<4xf32> to vector<1x4xf32>
    %cst_34 = arith.constant 3.906250e-03 : f32
    %105 = vector.broadcast %cst_34 : f32 to vector<1x4xf32>
    %106 = arith.mulf %104, %105 : vector<1x4xf32>
    %107 = vector.broadcast %106 : vector<1x4xf32> to vector<256x4xf32>
    %108 = arith.subf %102, %107 : vector<256x4xf32>
    %109 = arith.mulf %108, %108 : vector<256x4xf32>
    %cst_35 = arith.constant dense<0.000000e+00> : vector<4xf32>
    %110 = vector.multi_reduction <add>, %109, %cst_35 [0] : vector<256x4xf32> to vector<4xf32>
    %111 = vector.shape_cast %110 : vector<4xf32> to vector<1x4xf32>
    %cst_36 = arith.constant 3.906250e-03 : f32
    %112 = vector.broadcast %cst_36 : f32 to vector<1x4xf32>
    %113 = arith.mulf %111, %112 : vector<1x4xf32>
    %cst_37 = arith.constant 9.99999974E-6 : f32
    %114 = vector.broadcast %cst_37 : f32 to vector<1x4xf32>
    %115 = arith.addf %113, %114 : vector<1x4xf32>
    %116 = math.rsqrt %115 : vector<1x4xf32>
    %117 = vector.broadcast %116 : vector<1x4xf32> to vector<256x4xf32>
    %118 = arith.mulf %108, %117 : vector<256x4xf32>
    %119 = arith.addf %118, %1 : vector<256x4xf32>
    %c0_38 = arith.constant 0 : index
    %c0_39 = arith.constant 0 : index
    %c0_40 = arith.constant 0 : index
    %120 = vector.load %arg6[%c0_38, %c0_39, %c0_40] : memref<1x256x4xf32, #tpu.memory_space<vmem>>, vector<1x256x4xf32>
    %121 = vector.shape_cast %120 : vector<1x256x4xf32> to vector<256x4xf32>
    %122 = vector.shape_cast %119 : vector<256x4xf32> to vector<1x256x4xf32>
    tpu.vector_store %arg6[%c0_38, %c0_39, %c0_40], %122 {strides = array<i32>} : memref<1x256x4xf32, #tpu.memory_space<vmem>>, vector<1x256x4xf32>,
    return
  }
  func.func @transform_0(%arg0: i32) -> (i32, i32, i32) {
    %c0_i32 = arith.constant 0 : i32
    %c0_i32_0 = arith.constant 0 : i32
    %c0_i32_1 = arith.constant 0 : i32
    return %arg0, %c0_i32, %c0_i32_0 : i32, i32, i32
  }
  func.func @transform_1(%arg0: i32) -> (i32, i32) {
    %c0_i32 = arith.constant 0 : i32
    %c0_i32_0 = arith.constant 0 : i32
    %c0_i32_1 = arith.constant 0 : i32
    return %c0_i32, %c0_i32_0 : i32, i32
  }
  func.func @transform_2(%arg0: i32) -> (i32, i32) {
    %c0_i32 = arith.constant 0 : i32
    %c0_i32_0 = arith.constant 0 : i32
    %c0_i32_1 = arith.constant 0 : i32
    return %c0_i32, %c0_i32_0 : i32, i32
  }
  func.func @transform_3(%arg0: i32) -> (i32, i32) {
    %c0_i32 = arith.constant 0 : i32
    %c0_i32_0 = arith.constant 0 : i32
    %c0_i32_1 = arith.constant 0 : i32
    return %c0_i32, %c0_i32_0 : i32, i32
  }
  func.func @transform_4(%arg0: i32) -> (i32, i32) {
    %c0_i32 = arith.constant 0 : i32
    %c0_i32_0 = arith.constant 0 : i32
    %c0_i32_1 = arith.constant 0 : i32
    return %c0_i32, %c0_i32_0 : i32, i32
  }
  func.func @transform_5(%arg0: i32) -> (i32, i32, i32) {
    %c0_i32 = arith.constant 0 : i32
    %c0_i32_0 = arith.constant 0 : i32
    %c0_i32_1 = arith.constant 0 : i32
    return %arg0, %c0_i32, %c0_i32_0 : i32, i32, i32
  }
}

</mosaic_0001>

<llo_original>
// kernel: tpu_custom_call.1
$region0: #{tpu_custom_call.1}
  #allocation0 [shape = 'u32[]', space=smem, size = 0x4, offset = 0x4, fixed_abs, tag = 'smem constant byte address 0x4 - core index']
  #allocation1 [shape = 'u32[72,128]{1,0:T(1,128)}', space=vmem, size = 0x9000, scoped, tag = 'internal scratch']
  %s0 = inlined_call_operand.vmem [shape: f32[2,256,4], index: 0, kind: input, shape index: {}]
  %s1 = inlined_call_operand.vmem [shape: f32[12,12], index: 1, kind: input, shape index: {}]
  %s2 = inlined_call_operand.vmem [shape: f32[1,4], index: 2, kind: input, shape index: {}]
  %s3 = inlined_call_operand.vmem [shape: f32[12,12], index: 3, kind: input, shape index: {}]
  %s4 = inlined_call_operand.vmem [shape: f32[1,4], index: 4, kind: input, shape index: {}]
  %s5 = inlined_call_operand.vmem [shape: f32[2,256,4], index: 5, kind: output, shape index: {}]
  %s6 = sld [smem:[#allocation0]]
  $region53: #{tpu_custom_call.1} parent=0
    _
  %s8 = ssub.s32 1, %s6
  %s9 = scalar_select 0, %s8, %s6
  loop: start=0, step=1, limit=4
  $region2: #{tpu_custom_call.1} parent=0 // loop_pre_header
    _
  $region3: #{tpu_custom_call.1} parent=0 // loop_header
    %s11 = sphi 0, %s15
    %p12 = scmp.ge.s32.totalorder %s11, 4
    %s21 = sphi 0, %s23
    %s24 = sphi 0, %s21
    %s25 = sphi 0, %s24
    %s41 = sphi 0, %s25
    %s45 = sphi 0, %s45
    %s47 = sphi 0, %s45
    %s48 = sphi 0, %s47
    %s62 = sphi 0, %s48
    %s66 = sphi 0, %s66
    %s68 = sphi 0, %s66
    %s69 = sphi 0, %s68
    %s83 = sphi 0, %s69
    %s87 = sphi 0, %s87
    %s89 = sphi 0, %s87
    %s90 = sphi 0, %s89
    %s104 = sphi 0, %s90
    %s108 = sphi 0, %s108
    %s110 = sphi 0, %s108
    %s111 = sphi 0, %s110
    %s125 = sphi 0, %s111
    %s131 = sphi 0, %s133
    %s134 = sphi 0, %s131
    %s135 = sphi 0, %s134
    %s151 = sphi 0, %s135
  $region4: #{tpu_custom_call.1} parent=0 // loop_header_branch
    %14 = sbr.rel (%p12) target = $region8
  $region5: #{tpu_custom_call.1} parent=0 // loop_body
    %s16 = ssub.s32 %s11, 1
    %s17 = ssub.s32 %s11, 2
    %s18 = sadd.s32 %s11, 1
    %s19 = ssub.s32 %s11, %s18
    %p20 = scmp.eq.s32.totalorder %s19, 0
    %s22 = sadd.s32 %s21, 1
    %s23 = scalar_select %p20, %s21, %s22
    %p26 = pneg %p20
    %p27 = scmp.eq.s32.totalorder %s11, 1
    %p28 = por %p26, %p27
    %p29 = scmp.ne.s32.totalorder %s21, %s24
    %p30 = scmp.eq.s32.totalorder %s11, 0
    %p31 = por %p29, %p30
    %p32 = scmp.ne.s32.totalorder %s21, %s24
    %p33 = scmp.eq.s32.totalorder %s16, 1
    %p34 = por %p32, %p33
    %p35 = scmp.ne.s32.totalorder %s24, %s25
    %p36 = scmp.eq.s32.totalorder %s16, 0
    %p37 = por %p35, %p36
    %p38 = scmp.ne.s32.totalorder %s24, %s25
    %p39 = scmp.eq.s32.totalorder %s17, 1
    %p40 = por %p38, %p39
    %p42 = scmp.ne.s32.totalorder %s25, %s41
    %p43 = scmp.eq.s32.totalorder %s17, 0
    %p44 = por %p42, %p43
    %s46 = sadd.s32 %s45, 1
    %p49 = scmp.eq.s32.totalorder %s11, 1
    %p50 = scmp.ne.s32.totalorder %s45, %s47
    %p51 = scmp.eq.s32.totalorder %s11, 0
    %p52 = por %p50, %p51
    %p53 = scmp.ne.s32.totalorder %s45, %s47
    %p54 = scmp.eq.s32.totalorder %s16, 1
    %p55 = por %p53, %p54
    %p56 = scmp.ne.s32.totalorder %s47, %s48
    %p57 = scmp.eq.s32.totalorder %s16, 0
    %p58 = por %p56, %p57
    %p59 = scmp.ne.s32.totalorder %s47, %s48
    %p60 = scmp.eq.s32.totalorder %s17, 1
    %p61 = por %p59, %p60
    %p63 = scmp.ne.s32.totalorder %s48, %s62
    %p64 = scmp.eq.s32.totalorder %s17, 0
    %p65 = por %p63, %p64
    %s67 = sadd.s32 %s66, 1
    %p70 = scmp.eq.s32.totalorder %s11, 1
    %p71 = scmp.ne.s32.totalorder %s66, %s68
    %p72 = scmp.eq.s32.totalorder %s11, 0
    %p73 = por %p71, %p72
    %p74 = scmp.ne.s32.totalorder %s66, %s68
    %p75 = scmp.eq.s32.totalorder %s16, 1
    %p76 = por %p74, %p75
    %p77 = scmp.ne.s32.totalorder %s68, %s69
    %p78 = scmp.eq.s32.totalorder %s16, 0
    %p79 = por %p77, %p78
    %p80 = scmp.ne.s32.totalorder %s68, %s69
    %p81 = scmp.eq.s32.totalorder %s17, 1
    %p82 = por %p80, %p81
    %p84 = scmp.ne.s32.totalorder %s69, %s83
    %p85 = scmp.eq.s32.totalorder %s17, 0
    %p86 = por %p84, %p85
    %s88 = sadd.s32 %s87, 1
    %p91 = scmp.eq.s32.totalorder %s11, 1
    %p92 = scmp.ne.s32.totalorder %s87, %s89
    %p93 = scmp.eq.s32.totalorder %s11, 0
    %p94 = por %p92, %p93
    %p95 = scmp.ne.s32.totalorder %s87, %s89
    %p96 = scmp.eq.s32.totalorder %s16, 1
    %p97 = por %p95, %p96
    %p98 = scmp.ne.s32.totalorder %s89, %s90
    %p99 = scmp.eq.s32.totalorder %s16, 0
    %p100 = por %p98, %p99
    %p101 = scmp.ne.s32.totalorder %s89, %s90
    %p102 = scmp.eq.s32.totalorder %s17, 1
    %p103 = por %p101, %p102
    %p105 = scmp.ne.s32.totalorder %s90, %s104
    %p106 = scmp.eq.s32.totalorder %s17, 0
    %p107 = por %p105, %p106
    %s109 = sadd.s32 %s108, 1
    %p112 = scmp.eq.s32.totalorder %s11, 1
    %p113 = scmp.ne.s32.totalorder %s108, %s110
    %p114 = scmp.eq.s32.totalorder %s11, 0
    %p115 = por %p113, %p114
    %p116 = scmp.ne.s32.totalorder %s108, %s110
    %p117 = scmp.eq.s32.totalorder %s16, 1
    %p118 = por %p116, %p117
    %p119 = scmp.ne.s32.totalorder %s110, %s111
    %p120 = scmp.eq.s32.totalorder %s16, 0
    %p121 = por %p119, %p120
    %p122 = scmp.ne.s32.totalorder %s110, %s111
    %p123 = scmp.eq.s32.totalorder %s17, 1
    %p124 = por %p122, %p123
    %p126 = scmp.ne.s32.totalorder %s111, %s125
    %p127 = scmp.eq.s32.totalorder %s17, 0
    %p128 = por %p126, %p127
    %s129 = ssub.s32 %s11, %s18
    %p130 = scmp.eq.s32.totalorder %s129, 0
    %s132 = sadd.s32 %s131, 1
    %s133 = scalar_select %p130, %s131, %s132
    %p136 = pneg %p130
    %p137 = scmp.eq.s32.totalorder %s11, 1
    %p138 = por %p136, %p137
    %p139 = scmp.ne.s32.totalorder %s131, %s134
    %p140 = scmp.eq.s32.totalorder %s11, 0
    %p141 = por %p139, %p140
    %p142 = scmp.ne.s32.totalorder %s131, %s134
    %p143 = scmp.eq.s32.totalorder %s16, 1
    %p144 = por %p142, %p143
    %p145 = scmp.ne.s32.totalorder %s134, %s135
    %p146 = scmp.eq.s32.totalorder %s16, 0
    %p147 = por %p145, %p146
    %p148 = scmp.ne.s32.totalorder %s134, %s135
    %p149 = scmp.eq.s32.totalorder %s17, 1
    %p150 = por %p148, %p149
    %p152 = scmp.ne.s32.totalorder %s135, %s151
    %p153 = scmp.eq.s32.totalorder %s17, 0
    %p154 = por %p152, %p153
    %p155 = scmp.le.s32.totalorder 1, %s11
    %p156 = scmp.lt.s32.totalorder %s11, 3
    %p157 = pnand %p155, %p156
    %p158 = pneg %p157
    // Predicated region
    $region9: #{tpu_custom_call.1} parent=5 // pred_check
      _
    $region10: #{tpu_custom_call.1} parent=5 // pred_check_branch
      %160 = sbr.rel (%p157) target = $region12
    $region11: #{tpu_custom_call.1} parent=5 // pred_region
      %s161 = ssub.s32 %s11, 1
      // Predicated region
      $region13: #{tpu_custom_call.1} parent=11 // pred_check
        %p162 = pneg %p58
      $region14: #{tpu_custom_call.1} parent=11 // pred_check_branch
        %164 = sbr.rel (%p162) target = $region16
      $region15: #{tpu_custom_call.1} parent=11 // pred_region
        _
      $region16: #{tpu_custom_call.1} parent=11 // pred_fallthru
        _
      // Predicated region
      $region17: #{tpu_custom_call.1} parent=11 // pred_check
        %p165 = pneg %p79
      $region18: #{tpu_custom_call.1} parent=11 // pred_check_branch
        %167 = sbr.rel (%p165) target = $region20
      $region19: #{tpu_custom_call.1} parent=11 // pred_region
        _
      $region20: #{tpu_custom_call.1} parent=11 // pred_fallthru
        _
      // Predicated region
      $region21: #{tpu_custom_call.1} parent=11 // pred_check
        %p168 = pneg %p100
      $region22: #{tpu_custom_call.1} parent=11 // pred_check_branch
        %170 = sbr.rel (%p168) target = $region24
      $region23: #{tpu_custom_call.1} parent=11 // pred_region
        _
      $region24: #{tpu_custom_call.1} parent=11 // pred_fallthru
        _
      // Predicated region
      $region25: #{tpu_custom_call.1} parent=11 // pred_check
        %p171 = pneg %p121
      $region26: #{tpu_custom_call.1} parent=11 // pred_check_branch
        %173 = sbr.rel (%p171) target = $region28
      $region27: #{tpu_custom_call.1} parent=11 // pred_region
        _
      $region28: #{tpu_custom_call.1} parent=11 // pred_fallthru
        _
    $region12: #{tpu_custom_call.1} parent=5 // pred_fallthru
      _
    %p174 = scmp.lt.s32.totalorder %s11, 2
    // Predicated region
    $region29: #{tpu_custom_call.1} parent=5 // pred_check
      %p175 = pneg %p174
    $region30: #{tpu_custom_call.1} parent=5 // pred_check_branch
      %177 = sbr.rel (%p175) target = $region32
    $region31: #{tpu_custom_call.1} parent=5 // pred_region
      // Predicated region
      $region33: #{tpu_custom_call.1} parent=31 // pred_check
        %p178 = pneg %p31
      $region34: #{tpu_custom_call.1} parent=31 // pred_check_branch
        %180 = sbr.rel (%p178) target = $region36
      $region35: #{tpu_custom_call.1} parent=31 // pred_region
        %p181 = scmp.lt.s32.totalorder %s11, 1
        %s182 = scalar_select %p181, %s11, 1
        %s183 = smul.addr %s182, 32
        %s184 = smul.addr %s183, 8
        %s185 = scalar_lea.vmem %s0, %s184
      $region36: #{tpu_custom_call.1} parent=31 // pred_fallthru
        _
    $region32: #{tpu_custom_call.1} parent=5 // pred_fallthru
      _
    %p186 = scmp.le.s32.totalorder 1, %s11
    %p187 = scmp.lt.s32.totalorder %s11, 3
    %p188 = pnand %p186, %p187
    %p189 = pneg %p188
    // Predicated region
    $region37: #{tpu_custom_call.1} parent=5 // pred_check
      _
    $region38: #{tpu_custom_call.1} parent=5 // pred_check_branch
      %191 = sbr.rel (%p188) target = $region40
    $region39: #{tpu_custom_call.1} parent=5 // pred_region
      %s192 = ssub.s32 %s11, 1
      %p193 = scmp.lt.s32.totalorder %s16, 1
      %s194 = scalar_select %p193, %s16, 1
      %s195 = smul.addr %s194, 32
      %s196 = smul.addr %s195, 8
      %s197 = scalar_lea.vmem %s0, %s196
      %p198 = pneg %p37
      %p199 = pneg %p34
      %p200 = pneg %p58
      %p201 = pneg %p55
      %p202 = pneg %p79
      %p203 = pneg %p76
      %p204 = pneg %p100
      %p205 = pneg %p97
      %p206 = pneg %p121
      %p207 = pneg %p118
      %p208 = pneg %p147
      %p209 = pneg %p144
      %p210 = scmp.lt.s32.totalorder %s16, 1
      %s211 = scalar_select %p210, %s16, 1
      %s212 = smul.addr %s211, 32
      %s213 = smul.addr %s212, 8
      %s214 = scalar_lea.vmem %s5, %s213
      %p215 = scmp.lt.s32.totalorder %s16, 1
      %s216 = scalar_select %p215, %s16, 1
      %s217 = smul.addr %s216, 32
      %s218 = smul.addr %s217, 8
      %s219 = scalar_lea.vmem %s0, %s218
      %p220 = scmp.lt.s32.totalorder %s16, 1
      %s221 = scalar_select %p220, %s16, 1
      %s222 = smul.addr %s221, 32
      %s223 = smul.addr %s222, 8
      %s224 = scalar_lea.vmem %s5, %s223
      %v225 = vld [vmem:[%s219] sm:$0xff]
      %v226 = vld [vmem:[%s219 + $0x8] sm:$0xff]
      %v227 = vld [vmem:[%s219 + $0x10] sm:$0xff]
      %v228 = vld [vmem:[%s219 + $0x18] sm:$0xff]
      %v229 = vld [vmem:[%s219 + $0x20] sm:$0xff]
      %v230 = vld [vmem:[%s219 + $0x28] sm:$0xff]
      %v231 = vld [vmem:[%s219 + $0x30] sm:$0xff]
      %v232 = vld [vmem:[%s219 + $0x38] sm:$0xff]
      %v233 = vld [vmem:[%s219 + $0x40] sm:$0xff]
      %v234 = vld [vmem:[%s219 + $0x48] sm:$0xff]
      %v235 = vld [vmem:[%s219 + $0x50] sm:$0xff]
      %v236 = vld [vmem:[%s219 + $0x58] sm:$0xff]
      %v237 = vld [vmem:[%s219 + $0x60] sm:$0xff]
      %v238 = vld [vmem:[%s219 + $0x68] sm:$0xff]
      %v239 = vld [vmem:[%s219 + $0x70] sm:$0xff]
      %v240 = vld [vmem:[%s219 + $0x78] sm:$0xff]
      %v241 = vld [vmem:[%s219 + $0x80] sm:$0xff]
      %v242 = vld [vmem:[%s219 + $0x88] sm:$0xff]
      %v243 = vld [vmem:[%s219 + $0x90] sm:$0xff]
      %v244 = vld [vmem:[%s219 + $0x98] sm:$0xff]
      %v245 = vld [vmem:[%s219 + $0xa0] sm:$0xff]
      %v246 = vld [vmem:[%s219 + $0xa8] sm:$0xff]
      %v247 = vld [vmem:[%s219 + $0xb0] sm:$0xff]
      %v248 = vld [vmem:[%s219 + $0xb8] sm:$0xff]
      %v249 = vld [vmem:[%s219 + $0xc0] sm:$0xff]
      %v250 = vld [vmem:[%s219 + $0xc8] sm:$0xff]
      %v251 = vld [vmem:[%s219 + $0xd0] sm:$0xff]
      %v252 = vld [vmem:[%s219 + $0xd8] sm:$0xff]
      %v253 = vld [vmem:[%s219 + $0xe0] sm:$0xff]
      %v254 = vld [vmem:[%s219 + $0xe8] sm:$0xff]
      %v255 = vld [vmem:[%s219 + $0xf0] sm:$0xff]
      %v256 = vld [vmem:[%s219 + $0xf8] sm:$0xff]
      %v257 = vlaneseq
      %v258 = vshrl.u32 %v257, 7
      %v259 = vadd.s32 %v258, 8
      %v260 = vadd.s32 %v258, 16
      %v261 = vadd.s32 %v258, 24
      %v262 = vadd.s32 %v258, 32
      %v263 = vadd.s32 %v258, 40
      %v264 = vadd.s32 %v258, 48
      %v265 = vadd.s32 %v258, 56
      %v266 = vadd.s32 %v258, 64
      %v267 = vadd.s32 %v258, 72
      %v268 = vadd.s32 %v258, 80
      %v269 = vadd.s32 %v258, 88
      %v270 = vadd.s32 %v258, 96
      %v271 = vadd.s32 %v258, 104
      %v272 = vadd.s32 %v258, 112
      %v273 = vadd.s32 %v258, 120
      %v274 = vadd.s32 %v258, 128
      %v275 = vadd.s32 %v258, 136
      %v276 = vadd.s32 %v258, 144
      %v277 = vadd.s32 %v258, 152
      %v278 = vadd.s32 %v258, 160
      %v279 = vadd.s32 %v258, 168
      %v280 = vadd.s32 %v258, 176
      %v281 = vadd.s32 %v258, 184
      %v282 = vadd.s32 %v258, 192
      %v283 = vadd.s32 %v258, 200
      %v284 = vadd.s32 %v258, 208
      %v285 = vadd.s32 %v258, 216
      %v286 = vadd.s32 %v258, 224
      %v287 = vadd.s32 %v258, 232
      %v288 = vadd.s32 %v258, 240
      %v289 = vadd.s32 %v258, 248
      %vm290 = vcmp.lt.s32.totalorder %v258, 0
      %v291 = vsub.s32 0, %v258
      %v292 = vsel %vm290, %v291, %v258
      %v293 = vshrl.u32 %v292, 4
      %v294 = vand.u32 %v292, 15
      %v295 = vsub.s32 0, %v294
      %v296 = vsel %vm290, %v295, %v294
      %vm297 = vcmp.lt.s32.totalorder %v259, 0
      %v298 = vsub.s32 0, %v259
      %v299 = vsel %vm297, %v298, %v259
      %v300 = vshrl.u32 %v299, 4
      %v301 = vand.u32 %v299, 15
      %v302 = vsub.s32 0, %v301
      %v303 = vsel %vm297, %v302, %v301
      %vm304 = vcmp.lt.s32.totalorder %v260, 0
      %v305 = vsub.s32 0, %v260
      %v306 = vsel %vm304, %v305, %v260
      %v307 = vshrl.u32 %v306, 4
      %v308 = vand.u32 %v306, 15
      %v309 = vsub.s32 0, %v308
      %v310 = vsel %vm304, %v309, %v308
      %vm311 = vcmp.lt.s32.totalorder %v261, 0
      %v312 = vsub.s32 0, %v261
      %v313 = vsel %vm311, %v312, %v261
      %v314 = vshrl.u32 %v313, 4
      %v315 = vand.u32 %v313, 15
      %v316 = vsub.s32 0, %v315
      %v317 = vsel %vm311, %v316, %v315
      %vm318 = vcmp.lt.s32.totalorder %v262, 0
      %v319 = vsub.s32 0, %v262
      %v320 = vsel %vm318, %v319, %v262
      %v321 = vshrl.u32 %v320, 4
      %v322 = vand.u32 %v320, 15
      %v323 = vsub.s32 0, %v322
      %v324 = vsel %vm318, %v323, %v322
      %vm325 = vcmp.lt.s32.totalorder %v263, 0
      %v326 = vsub.s32 0, %v263
      %v327 = vsel %vm325, %v326, %v263
      %v328 = vshrl.u32 %v327, 4
      %v329 = vand.u32 %v327, 15
      %v330 = vsub.s32 0, %v329
      %v331 = vsel %vm325, %v330, %v329
      %vm332 = vcmp.lt.s32.totalorder %v264, 0
      %v333 = vsub.s32 0, %v264
      %v334 = vsel %vm332, %v333, %v264
      %v335 = vshrl.u32 %v334, 4
      %v336 = vand.u32 %v334, 15
      %v337 = vsub.s32 0, %v336
      %v338 = vsel %vm332, %v337, %v336
      %vm339 = vcmp.lt.s32.totalorder %v265, 0
      %v340 = vsub.s32 0, %v265
      %v341 = vsel %vm339, %v340, %v265
      %v342 = vshrl.u32 %v341, 4
      %v343 = vand.u32 %v341, 15
      %v344 = vsub.s32 0, %v343
      %v345 = vsel %vm339, %v344, %v343
      %vm346 = vcmp.lt.s32.totalorder %v266, 0
      %v347 = vsub.s32 0, %v266
      %v348 = vsel %vm346, %v347, %v266
      %v349 = vshrl.u32 %v348, 4
      %v350 = vand.u32 %v348, 15
      %v351 = vsub.s32 0, %v350
      %v352 = vsel %vm346, %v351, %v350
      %vm353 = vcmp.lt.s32.totalorder %v267, 0
      %v354 = vsub.s32 0, %v267
      %v355 = vsel %vm353, %v354, %v267
      %v356 = vshrl.u32 %v355, 4
      %v357 = vand.u32 %v355, 15
      %v358 = vsub.s32 0, %v357
      %v359 = vsel %vm353, %v358, %v357
      %vm360 = vcmp.lt.s32.totalorder %v268, 0
      %v361 = vsub.s32 0, %v268
      %v362 = vsel %vm360, %v361, %v268
      %v363 = vshrl.u32 %v362, 4
      %v364 = vand.u32 %v362, 15
      %v365 = vsub.s32 0, %v364
      %v366 = vsel %vm360, %v365, %v364
      %vm367 = vcmp.lt.s32.totalorder %v269, 0
      %v368 = vsub.s32 0, %v269
      %v369 = vsel %vm367, %v368, %v269
      %v370 = vshrl.u32 %v369, 4
      %v371 = vand.u32 %v369, 15
      %v372 = vsub.s32 0, %v371
      %v373 = vsel %vm367, %v372, %v371
      %vm374 = vcmp.lt.s32.totalorder %v270, 0
      %v375 = vsub.s32 0, %v270
      %v376 = vsel %vm374, %v375, %v270
      %v377 = vshrl.u32 %v376, 4
      %v378 = vand.u32 %v376, 15
      %v379 = vsub.s32 0, %v378
      %v380 = vsel %vm374, %v379, %v378
      %vm381 = vcmp.lt.s32.totalorder %v271, 0
      %v382 = vsub.s32 0, %v271
      %v383 = vsel %vm381, %v382, %v271
      %v384 = vshrl.u32 %v383, 4
      %v385 = vand.u32 %v383, 15
      %v386 = vsub.s32 0, %v385
      %v387 = vsel %vm381, %v386, %v385
      %vm388 = vcmp.lt.s32.totalorder %v272, 0
      %v389 = vsub.s32 0, %v272
      %v390 = vsel %vm388, %v389, %v272
      %v391 = vshrl.u32 %v390, 4
      %v392 = vand.u32 %v390, 15
      %v393 = vsub.s32 0, %v392
      %v394 = vsel %vm388, %v393, %v392
      %vm395 = vcmp.lt.s32.totalorder %v273, 0
      %v396 = vsub.s32 0, %v273
      %v397 = vsel %vm395, %v396, %v273
      %v398 = vshrl.u32 %v397, 4
      %v399 = vand.u32 %v397, 15
      %v400 = vsub.s32 0, %v399
      %v401 = vsel %vm395, %v400, %v399
      %vm402 = vcmp.lt.s32.totalorder %v274, 0
      %v403 = vsub.s32 0, %v274
      %v404 = vsel %vm402, %v403, %v274
      %v405 = vshrl.u32 %v404, 4
      %v406 = vand.u32 %v404, 15
      %v407 = vsub.s32 0, %v406
      %v408 = vsel %vm402, %v407, %v406
      %vm409 = vcmp.lt.s32.totalorder %v275, 0
      %v410 = vsub.s32 0, %v275
      %v411 = vsel %vm409, %v410, %v275
      %v412 = vshrl.u32 %v411, 4
      %v413 = vand.u32 %v411, 15
      %v414 = vsub.s32 0, %v413
      %v415 = vsel %vm409, %v414, %v413
      %vm416 = vcmp.lt.s32.totalorder %v276, 0
      %v417 = vsub.s32 0, %v276
      %v418 = vsel %vm416, %v417, %v276
      %v419 = vshrl.u32 %v418, 4
      %v420 = vand.u32 %v418, 15
      %v421 = vsub.s32 0, %v420
      %v422 = vsel %vm416, %v421, %v420
      %vm423 = vcmp.lt.s32.totalorder %v277, 0
      %v424 = vsub.s32 0, %v277
      %v425 = vsel %vm423, %v424, %v277
      %v426 = vshrl.u32 %v425, 4
      %v427 = vand.u32 %v425, 15
      %v428 = vsub.s32 0, %v427
      %v429 = vsel %vm423, %v428, %v427
      %vm430 = vcmp.lt.s32.totalorder %v278, 0
      %v431 = vsub.s32 0, %v278
      %v432 = vsel %vm430, %v431, %v278
      %v433 = vshrl.u32 %v432, 4
      %v434 = vand.u32 %v432, 15
      %v435 = vsub.s32 0, %v434
      %v436 = vsel %vm430, %v435, %v434
      %vm437 = vcmp.lt.s32.totalorder %v279, 0
      %v438 = vsub.s32 0, %v279
      %v439 = vsel %vm437, %v438, %v279
      %v440 = vshrl.u32 %v439, 4
      %v441 = vand.u32 %v439, 15
      %v442 = vsub.s32 0, %v441
      %v443 = vsel %vm437, %v442, %v441
      %vm444 = vcmp.lt.s32.totalorder %v280, 0
      %v445 = vsub.s32 0, %v280
      %v446 = vsel %vm444, %v445, %v280
      %v447 = vshrl.u32 %v446, 4
      %v448 = vand.u32 %v446, 15
      %v449 = vsub.s32 0, %v448
      %v450 = vsel %vm444, %v449, %v448
      %vm451 = vcmp.lt.s32.totalorder %v281, 0
      %v452 = vsub.s32 0, %v281
      %v453 = vsel %vm451, %v452, %v281
      %v454 = vshrl.u32 %v453, 4
      %v455 = vand.u32 %v453, 15
      %v456 = vsub.s32 0, %v455
      %v457 = vsel %vm451, %v456, %v455
      %vm458 = vcmp.lt.s32.totalorder %v282, 0
      %v459 = vsub.s32 0, %v282
      %v460 = vsel %vm458, %v459, %v282
      %v461 = vshrl.u32 %v460, 4
      %v462 = vand.u32 %v460, 15
      %v463 = vsub.s32 0, %v462
      %v464 = vsel %vm458, %v463, %v462
      %vm465 = vcmp.lt.s32.totalorder %v283, 0
      %v466 = vsub.s32 0, %v283
      %v467 = vsel %vm465, %v466, %v283
      %v468 = vshrl.u32 %v467, 4
      %v469 = vand.u32 %v467, 15
      %v470 = vsub.s32 0, %v469
      %v471 = vsel %vm465, %v470, %v469
      %vm472 = vcmp.lt.s32.totalorder %v284, 0
      %v473 = vsub.s32 0, %v284
      %v474 = vsel %vm472, %v473, %v284
      %v475 = vshrl.u32 %v474, 4
      %v476 = vand.u32 %v474, 15
      %v477 = vsub.s32 0, %v476
      %v478 = vsel %vm472, %v477, %v476
      %vm479 = vcmp.lt.s32.totalorder %v285, 0
      %v480 = vsub.s32 0, %v285
      %v481 = vsel %vm479, %v480, %v285
      %v482 = vshrl.u32 %v481, 4
      %v483 = vand.u32 %v481, 15
      %v484 = vsub.s32 0, %v483
      %v485 = vsel %vm479, %v484, %v483
      %vm486 = vcmp.lt.s32.totalorder %v286, 0
      %v487 = vsub.s32 0, %v286
      %v488 = vsel %vm486, %v487, %v286
      %v489 = vshrl.u32 %v488, 4
      %v490 = vand.u32 %v488, 15
      %v491 = vsub.s32 0, %v490
      %v492 = vsel %vm486, %v491, %v490
      %vm493 = vcmp.lt.s32.totalorder %v287, 0
      %v494 = vsub.s32 0, %v287
      %v495 = vsel %vm493, %v494, %v287
      %v496 = vshrl.u32 %v495, 4
      %v497 = vand.u32 %v495, 15
      %v498 = vsub.s32 0, %v497
      %v499 = vsel %vm493, %v498, %v497
      %vm500 = vcmp.lt.s32.totalorder %v288, 0
      %v501 = vsub.s32 0, %v288
      %v502 = vsel %vm500, %v501, %v288
      %v503 = vshrl.u32 %v502, 4
      %v504 = vand.u32 %v502, 15
      %v505 = vsub.s32 0, %v504
      %v506 = vsel %vm500, %v505, %v504
      %vm507 = vcmp.lt.s32.totalorder %v289, 0
      %v508 = vsub.s32 0, %v289
      %v509 = vsel %vm507, %v508, %v289
      %v510 = vshrl.u32 %v509, 4
      %v511 = vand.u32 %v509, 15
      %v512 = vsub.s32 0, %v511
      %v513 = vsel %vm507, %v512, %v511
      %vm514 = vcmp.ne.s32.totalorder %v296, 0
      %vm515 = vcmp.ne.s32.totalorder %v303, 0
      %vm516 = vcmp.ne.s32.totalorder %v310, 0
      %vm517 = vcmp.ne.s32.totalorder %v317, 0
      %vm518 = vcmp.ne.s32.totalorder %v324, 0
      %vm519 = vcmp.ne.s32.totalorder %v331, 0
      %vm520 = vcmp.ne.s32.totalorder %v338, 0
      %vm521 = vcmp.ne.s32.totalorder %v345, 0
      %vm522 = vcmp.ne.s32.totalorder %v352, 0
      %vm523 = vcmp.ne.s32.totalorder %v359, 0
      %vm524 = vcmp.ne.s32.totalorder %v366, 0
      %vm525 = vcmp.ne.s32.totalorder %v373, 0
      %vm526 = vcmp.ne.s32.totalorder %v380, 0
      %vm527 = vcmp.ne.s32.totalorder %v387, 0
      %vm528 = vcmp.ne.s32.totalorder %v394, 0
      %vm529 = vcmp.ne.s32.totalorder %v401, 0
      %vm530 = vcmp.ne.s32.totalorder %v408, 0
      %vm531 = vcmp.ne.s32.totalorder %v415, 0
      %vm532 = vcmp.ne.s32.totalorder %v422, 0
      %vm533 = vcmp.ne.s32.totalorder %v429, 0
      %vm534 = vcmp.ne.s32.totalorder %v436, 0
      %vm535 = vcmp.ne.s32.totalorder %v443, 0
      %vm536 = vcmp.ne.s32.totalorder %v450, 0
      %vm537 = vcmp.ne.s32.totalorder %v457, 0
      %vm538 = vcmp.ne.s32.totalorder %v464, 0
      %vm539 = vcmp.ne.s32.totalorder %v471, 0
      %vm540 = vcmp.ne.s32.totalorder %v478, 0
      %vm541 = vcmp.ne.s32.totalorder %v485, 0
      %vm542 = vcmp.ne.s32.totalorder %v492, 0
      %vm543 = vcmp.ne.s32.totalorder %v499, 0
      %vm544 = vcmp.ne.s32.totalorder %v506, 0
      %vm545 = vcmp.ne.s32.totalorder %v513, 0
      %vm546 = vcmp.lt.s32.totalorder %v296, 0
      %vm547 = vcmp.lt.s32.totalorder %v303, 0
      %vm548 = vcmp.lt.s32.totalorder %v310, 0
      %vm549 = vcmp.lt.s32.totalorder %v317, 0
      %vm550 = vcmp.lt.s32.totalorder %v324, 0
      %vm551 = vcmp.lt.s32.totalorder %v331, 0
      %vm552 = vcmp.lt.s32.totalorder %v338, 0
      %vm553 = vcmp.lt.s32.totalorder %v345, 0
      %vm554 = vcmp.lt.s32.totalorder %v352, 0
      %vm555 = vcmp.lt.s32.totalorder %v359, 0
      %vm556 = vcmp.lt.s32.totalorder %v366, 0
      %vm557 = vcmp.lt.s32.totalorder %v373, 0
      %vm558 = vcmp.lt.s32.totalorder %v380, 0
      %vm559 = vcmp.lt.s32.totalorder %v387, 0
      %vm560 = vcmp.lt.s32.totalorder %v394, 0
      %vm561 = vcmp.lt.s32.totalorder %v401, 0
      %vm562 = vcmp.lt.s32.totalorder %v408, 0
      %vm563 = vcmp.lt.s32.totalorder %v415, 0
      %vm564 = vcmp.lt.s32.totalorder %v422, 0
      %vm565 = vcmp.lt.s32.totalorder %v429, 0
      %vm566 = vcmp.lt.s32.totalorder %v436, 0
      %vm567 = vcmp.lt.s32.totalorder %v443, 0
      %vm568 = vcmp.lt.s32.totalorder %v450, 0
      %vm569 = vcmp.lt.s32.totalorder %v457, 0
      %vm570 = vcmp.lt.s32.totalorder %v464, 0
      %vm571 = vcmp.lt.s32.totalorder %v471, 0
      %vm572 = vcmp.lt.s32.totalorder %v478, 0
      %vm573 = vcmp.lt.s32.totalorder %v485, 0
      %vm574 = vcmp.lt.s32.totalorder %v492, 0
      %vm575 = vcmp.lt.s32.totalorder %v499, 0
      %vm576 = vcmp.lt.s32.totalorder %v506, 0
      %vm577 = vcmp.lt.s32.totalorder %v513, 0
      %vm578 = vmand %vm546, %vm514
      %vm579 = vmand %vm547, %vm515
      %vm580 = vmand %vm548, %vm516
      %vm581 = vmand %vm549, %vm517
      %vm582 = vmand %vm550, %vm518
      %vm583 = vmand %vm551, %vm519
      %vm584 = vmand %vm552, %vm520
      %vm585 = vmand %vm553, %vm521
      %vm586 = vmand %vm554, %vm522
      %vm587 = vmand %vm555, %vm523
      %vm588 = vmand %vm556, %vm524
      %vm589 = vmand %vm557, %vm525
      %vm590 = vmand %vm558, %vm526
      %vm591 = vmand %vm559, %vm527
      %vm592 = vmand %vm560, %vm528
      %vm593 = vmand %vm561, %vm529
      %vm594 = vmand %vm562, %vm530
      %vm595 = vmand %vm563, %vm531
      %vm596 = vmand %vm564, %vm532
      %vm597 = vmand %vm565, %vm533
      %vm598 = vmand %vm566, %vm534
      %vm599 = vmand %vm567, %vm535
      %vm600 = vmand %vm568, %vm536
      %vm601 = vmand %vm569, %vm537
      %vm602 = vmand %vm570, %vm538
      %vm603 = vmand %vm571, %vm539
      %vm604 = vmand %vm572, %vm540
      %vm605 = vmand %vm573, %vm541
      %vm606 = vmand %vm574, %vm542
      %vm607 = vmand %vm575, %vm543
      %vm608 = vmand %vm576, %vm544
      %vm609 = vmand %vm577, %vm545
      %v610 = vadd.s32 %v296, 16
      %v611 = vadd.s32 %v303, 16
      %v612 = vadd.s32 %v310, 16
      %v613 = vadd.s32 %v317, 16
      %v614 = vadd.s32 %v324, 16
      %v615 = vadd.s32 %v331, 16
      %v616 = vadd.s32 %v338, 16
      %v617 = vadd.s32 %v345, 16
      %v618 = vadd.s32 %v352, 16
      %v619 = vadd.s32 %v359, 16
      %v620 = vadd.s32 %v366, 16
      %v621 = vadd.s32 %v373, 16
      %v622 = vadd.s32 %v380, 16
      %v623 = vadd.s32 %v387, 16
      %v624 = vadd.s32 %v394, 16
      %v625 = vadd.s32 %v401, 16
      %v626 = vadd.s32 %v408, 16
      %v627 = vadd.s32 %v415, 16
      %v628 = vadd.s32 %v422, 16
      %v629 = vadd.s32 %v429, 16
      %v630 = vadd.s32 %v436, 16
      %v631 = vadd.s32 %v443, 16
      %v632 = vadd.s32 %v450, 16
      %v633 = vadd.s32 %v457, 16
      %v634 = vadd.s32 %v464, 16
      %v635 = vadd.s32 %v471, 16
      %v636 = vadd.s32 %v478, 16
      %v637 = vadd.s32 %v485, 16
      %v638 = vadd.s32 %v492, 16
      %v639 = vadd.s32 %v499, 16
      %v640 = vadd.s32 %v506, 16
      %v641 = vadd.s32 %v513, 16
      %v642 = vsel %vm578, %v610, %v296
      %v643 = vsel %vm579, %v611, %v303
      %v644 = vsel %vm580, %v612, %v310
      %v645 = vsel %vm581, %v613, %v317
      %v646 = vsel %vm582, %v614, %v324
      %v647 = vsel %vm583, %v615, %v331
      %v648 = vsel %vm584, %v616, %v338
      %v649 = vsel %vm585, %v617, %v345
      %v650 = vsel %vm586, %v618, %v352
      %v651 = vsel %vm587, %v619, %v359
      %v652 = vsel %vm588, %v620, %v366
      %v653 = vsel %vm589, %v621, %v373
      %v654 = vsel %vm590, %v622, %v380
      %v655 = vsel %vm591, %v623, %v387
      %v656 = vsel %vm592, %v624, %v394
      %v657 = vsel %vm593, %v625, %v401
      %v658 = vsel %vm594, %v626, %v408
      %v659 = vsel %vm595, %v627, %v415
      %v660 = vsel %vm596, %v628, %v422
      %v661 = vsel %vm597, %v629, %v429
      %v662 = vsel %vm598, %v630, %v436
      %v663 = vsel %vm599, %v631, %v443
      %v664 = vsel %vm600, %v632, %v450
      %v665 = vsel %vm601, %v633, %v457
      %v666 = vsel %vm602, %v634, %v464
      %v667 = vsel %vm603, %v635, %v471
      %v668 = vsel %vm604, %v636, %v478
      %v669 = vsel %vm605, %v637, %v485
      %v670 = vsel %vm606, %v638, %v492
      %v671 = vsel %vm607, %v639, %v499
      %v672 = vsel %vm608, %v640, %v506
      %v673 = vsel %vm609, %v641, %v513
      %vm674 = vcmp.eq.s32.totalorder %v642, 0
      %vm675 = vcmp.eq.s32.totalorder %v643, 0
      %vm676 = vcmp.eq.s32.totalorder %v644, 0
      %vm677 = vcmp.eq.s32.totalorder %v645, 0
      %vm678 = vcmp.eq.s32.totalorder %v646, 0
      %vm679 = vcmp.eq.s32.totalorder %v647, 0
      %vm680 = vcmp.eq.s32.totalorder %v648, 0
      %vm681 = vcmp.eq.s32.totalorder %v649, 0
      %vm682 = vcmp.eq.s32.totalorder %v650, 0
      %vm683 = vcmp.eq.s32.totalorder %v651, 0
      %vm684 = vcmp.eq.s32.totalorder %v652, 0
      %vm685 = vcmp.eq.s32.totalorder %v653, 0
      %vm686 = vcmp.eq.s32.totalorder %v654, 0
      %vm687 = vcmp.eq.s32.totalorder %v655, 0
      %vm688 = vcmp.eq.s32.totalorder %v656, 0
      %vm689 = vcmp.eq.s32.totalorder %v657, 0
      %vm690 = vcmp.eq.s32.totalorder %v658, 0
      %vm691 = vcmp.eq.s32.totalorder %v659, 0
      %vm692 = vcmp.eq.s32.totalorder %v660, 0
      %vm693 = vcmp.eq.s32.totalorder %v661, 0
      %vm694 = vcmp.eq.s32.totalorder %v662, 0
      %vm695 = vcmp.eq.s32.totalorder %v663, 0
      %vm696 = vcmp.eq.s32.totalorder %v664, 0
      %vm697 = vcmp.eq.s32.totalorder %v665, 0
      %vm698 = vcmp.eq.s32.totalorder %v666, 0
      %vm699 = vcmp.eq.s32.totalorder %v667, 0
      %vm700 = vcmp.eq.s32.totalorder %v668, 0
      %vm701 = vcmp.eq.s32.totalorder %v669, 0
      %vm702 = vcmp.eq.s32.totalorder %v670, 0
      %vm703 = vcmp.eq.s32.totalorder %v671, 0
      %vm704 = vcmp.eq.s32.totalorder %v672, 0
      %vm705 = vcmp.eq.s32.totalorder %v673, 0
      %vm706 = vcmp.eq.s32.totalorder %v642, 15
      %vm707 = vcmp.eq.s32.totalorder %v643, 15
      %vm708 = vcmp.eq.s32.totalorder %v644, 15
      %vm709 = vcmp.eq.s32.totalorder %v645, 15
      %vm710 = vcmp.eq.s32.totalorder %v646, 15
      %vm711 = vcmp.eq.s32.totalorder %v647, 15
      %vm712 = vcmp.eq.s32.totalorder %v648, 15
      %vm713 = vcmp.eq.s32.totalorder %v649, 15
      %vm714 = vcmp.eq.s32.totalorder %v650, 15
      %vm715 = vcmp.eq.s32.totalorder %v651, 15
      %vm716 = vcmp.eq.s32.totalorder %v652, 15
      %vm717 = vcmp.eq.s32.totalorder %v653, 15
      %vm718 = vcmp.eq.s32.totalorder %v654, 15
      %vm719 = vcmp.eq.s32.totalorder %v655, 15
      %vm720 = vcmp.eq.s32.totalorder %v656, 15
      %vm721 = vcmp.eq.s32.totalorder %v657, 15
      %vm722 = vcmp.eq.s32.totalorder %v658, 15
      %vm723 = vcmp.eq.s32.totalorder %v659, 15
      %vm724 = vcmp.eq.s32.totalorder %v660, 15
      %vm725 = vcmp.eq.s32.totalorder %v661, 15
      %vm726 = vcmp.eq.s32.totalorder %v662, 15
      %vm727 = vcmp.eq.s32.totalorder %v663, 15
      %vm728 = vcmp.eq.s32.totalorder %v664, 15
      %vm729 = vcmp.eq.s32.totalorder %v665, 15
      %vm730 = vcmp.eq.s32.totalorder %v666, 15
      %vm731 = vcmp.eq.s32.totalorder %v667, 15
      %vm732 = vcmp.eq.s32.totalorder %v668, 15
      %vm733 = vcmp.eq.s32.totalorder %v669, 15
      %vm734 = vcmp.eq.s32.totalorder %v670, 15
      %vm735 = vcmp.eq.s32.totalorder %v671, 15
      %vm736 = vcmp.eq.s32.totalorder %v672, 15
      %vm737 = vcmp.eq.s32.totalorder %v673, 15
      %vm738 = vcmp.lt.s32.totalorder %v258, 16
      %vm739 = vcmp.lt.s32.totalorder %v259, 16
      %vm740 = vcmp.lt.s32.totalorder %v260, 16
      %vm741 = vcmp.lt.s32.totalorder %v261, 16
      %vm742 = vcmp.lt.s32.totalorder %v262, 16
      %vm743 = vcmp.lt.s32.totalorder %v263, 16
      %vm744 = vcmp.lt.s32.totalorder %v264, 16
      %vm745 = vcmp.lt.s32.totalorder %v265, 16
      %vm746 = vcmp.lt.s32.totalorder %v266, 16
      %vm747 = vcmp.lt.s32.totalorder %v267, 16
      %vm748 = vcmp.lt.s32.totalorder %v268, 16
      %vm749 = vcmp.lt.s32.totalorder %v269, 16
      %vm750 = vcmp.lt.s32.totalorder %v270, 16
      %vm751 = vcmp.lt.s32.totalorder %v271, 16
      %vm752 = vcmp.lt.s32.totalorder %v272, 16
      %vm753 = vcmp.lt.s32.totalorder %v273, 16
      %vm754 = vcmp.lt.s32.totalorder %v274, 16
      %vm755 = vcmp.lt.s32.totalorder %v275, 16
      %vm756 = vcmp.lt.s32.totalorder %v276, 16
      %vm757 = vcmp.lt.s32.totalorder %v277, 16
      %vm758 = vcmp.lt.s32.totalorder %v278, 16
      %vm759 = vcmp.lt.s32.totalorder %v279, 16
      %vm760 = vcmp.lt.s32.totalorder %v280, 16
      %vm761 = vcmp.lt.s32.totalorder %v281, 16
      %vm762 = vcmp.lt.s32.totalorder %v282, 16
      %vm763 = vcmp.lt.s32.totalorder %v283, 16
      %vm764 = vcmp.lt.s32.totalorder %v284, 16
      %vm765 = vcmp.lt.s32.totalorder %v285, 16
      %vm766 = vcmp.lt.s32.totalorder %v286, 16
      %vm767 = vcmp.lt.s32.totalorder %v287, 16
      %vm768 = vcmp.lt.s32.totalorder %v288, 16
      %vm769 = vcmp.lt.s32.totalorder %v289, 16
      %vm770 = vcmp.ge.s32.totalorder %v258, 240
      %vm771 = vcmp.ge.s32.totalorder %v259, 240
      %vm772 = vcmp.ge.s32.totalorder %v260, 240
      %vm773 = vcmp.ge.s32.totalorder %v261, 240
      %vm774 = vcmp.ge.s32.totalorder %v262, 240
      %vm775 = vcmp.ge.s32.totalorder %v263, 240
      %vm776 = vcmp.ge.s32.totalorder %v264, 240
      %vm777 = vcmp.ge.s32.totalorder %v265, 240
      %vm778 = vcmp.ge.s32.totalorder %v266, 240
      %vm779 = vcmp.ge.s32.totalorder %v267, 240
      %vm780 = vcmp.ge.s32.totalorder %v268, 240
      %vm781 = vcmp.ge.s32.totalorder %v269, 240
      %vm782 = vcmp.ge.s32.totalorder %v270, 240
      %vm783 = vcmp.ge.s32.totalorder %v271, 240
      %vm784 = vcmp.ge.s32.totalorder %v272, 240
      %vm785 = vcmp.ge.s32.totalorder %v273, 240
      %vm786 = vcmp.ge.s32.totalorder %v274, 240
      %vm787 = vcmp.ge.s32.totalorder %v275, 240
      %vm788 = vcmp.ge.s32.totalorder %v276, 240
      %vm789 = vcmp.ge.s32.totalorder %v277, 240
      %vm790 = vcmp.ge.s32.totalorder %v278, 240
      %vm791 = vcmp.ge.s32.totalorder %v279, 240
      %vm792 = vcmp.ge.s32.totalorder %v280, 240
      %vm793 = vcmp.ge.s32.totalorder %v281, 240
      %vm794 = vcmp.ge.s32.totalorder %v282, 240
      %vm795 = vcmp.ge.s32.totalorder %v283, 240
      %vm796 = vcmp.ge.s32.totalorder %v284, 240
      %vm797 = vcmp.ge.s32.totalorder %v285, 240
      %vm798 = vcmp.ge.s32.totalorder %v286, 240
      %vm799 = vcmp.ge.s32.totalorder %v287, 240
      %vm800 = vcmp.ge.s32.totalorder %v288, 240
      %vm801 = vcmp.ge.s32.totalorder %v289, 240
      %v802 = vrot.slane %v225, 7
      %v803 = vrot.slane %v226, 7
      %v804 = vrot.slane %v227, 7
      %v805 = vrot.slane %v228, 7
      %v806 = vrot.slane %v229, 7
      %v807 = vrot.slane %v230, 7
      %v808 = vrot.slane %v231, 7
      %v809 = vrot.slane %v232, 7
      %v810 = vrot.slane %v233, 7
      %v811 = vrot.slane %v234, 7
      %v812 = vrot.slane %v235, 7
      %v813 = vrot.slane %v236, 7
      %v814 = vrot.slane %v237, 7
      %v815 = vrot.slane %v238, 7
      %v816 = vrot.slane %v239, 7
      %v817 = vrot.slane %v240, 7
      %v818 = vrot.slane %v241, 7
      %v819 = vrot.slane %v242, 7
      %v820 = vrot.slane %v243, 7
      %v821 = vrot.slane %v244, 7
      %v822 = vrot.slane %v245, 7
      %v823 = vrot.slane %v246, 7
      %v824 = vrot.slane %v247, 7
      %v825 = vrot.slane %v248, 7
      %v826 = vrot.slane %v249, 7
      %v827 = vrot.slane %v250, 7
      %v828 = vrot.slane %v251, 7
      %v829 = vrot.slane %v252, 7
      %v830 = vrot.slane %v253, 7
      %v831 = vrot.slane %v254, 7
      %v832 = vrot.slane %v255, 7
      %v833 = vrot.slane %v256, 7
      %vm834 = vcmp.lt.s32.totalorder %v258, 1
      %v835 = vsel %vm834, %v832, %v833
      %v836 = vsel %vm834, %v831, %v832
      %v837 = vsel %vm834, %v830, %v831
      %v838 = vsel %vm834, %v829, %v830
      %v839 = vsel %vm834, %v828, %v829
      %v840 = vsel %vm834, %v827, %v828
      %v841 = vsel %vm834, %v826, %v827
      %v842 = vsel %vm834, %v825, %v826
      %v843 = vsel %vm834, %v824, %v825
      %v844 = vsel %vm834, %v823, %v824
      %v845 = vsel %vm834, %v822, %v823
      %v846 = vsel %vm834, %v821, %v822
      %v847 = vsel %vm834, %v820, %v821
      %v848 = vsel %vm834, %v819, %v820
      %v849 = vsel %vm834, %v818, %v819
      %v850 = vsel %vm834, %v817, %v818
      %v851 = vsel %vm834, %v816, %v817
      %v852 = vsel %vm834, %v815, %v816
      %v853 = vsel %vm834, %v814, %v815
      %v854 = vsel %vm834, %v813, %v814
      %v855 = vsel %vm834, %v812, %v813
      %v856 = vsel %vm834, %v811, %v812
      %v857 = vsel %vm834, %v810, %v811
      %v858 = vsel %vm834, %v809, %v810
      %v859 = vsel %vm834, %v808, %v809
      %v860 = vsel %vm834, %v807, %v808
      %v861 = vsel %vm834, %v806, %v807
      %v862 = vsel %vm834, %v805, %v806
      %v863 = vsel %vm834, %v804, %v805
      %v864 = vsel %vm834, %v803, %v804
      %v865 = vsel %vm834, %v802, %v803
      %v866 = vsel %vm834, %v833, %v802
      %v867 = vrot.slane %v225, 1
      %v868 = vrot.slane %v226, 1
      %v869 = vrot.slane %v227, 1
      %v870 = vrot.slane %v228, 1
      %v871 = vrot.slane %v229, 1
      %v872 = vrot.slane %v230, 1
      %v873 = vrot.slane %v231, 1
      %v874 = vrot.slane %v232, 1
      %v875 = vrot.slane %v233, 1
      %v876 = vrot.slane %v234, 1
      %v877 = vrot.slane %v235, 1
      %v878 = vrot.slane %v236, 1
      %v879 = vrot.slane %v237, 1
      %v880 = vrot.slane %v238, 1
      %v881 = vrot.slane %v239, 1
      %v882 = vrot.slane %v240, 1
      %v883 = vrot.slane %v241, 1
      %v884 = vrot.slane %v242, 1
      %v885 = vrot.slane %v243, 1
      %v886 = vrot.slane %v244, 1
      %v887 = vrot.slane %v245, 1
      %v888 = vrot.slane %v246, 1
      %v889 = vrot.slane %v247, 1
      %v890 = vrot.slane %v248, 1
      %v891 = vrot.slane %v249, 1
      %v892 = vrot.slane %v250, 1
      %v893 = vrot.slane %v251, 1
      %v894 = vrot.slane %v252, 1
      %v895 = vrot.slane %v253, 1
      %v896 = vrot.slane %v254, 1
      %v897 = vrot.slane %v255, 1
      %v898 = vrot.slane %v256, 1
      %vm899 = vcmp.lt.s32.totalorder %v258, 7
      %v900 = vsel %vm899, %v897, %v898
      %v901 = vsel %vm899, %v896, %v897
      %v902 = vsel %vm899, %v895, %v896
      %v903 = vsel %vm899, %v894, %v895
      %v904 = vsel %vm899, %v893, %v894
      %v905 = vsel %vm899, %v892, %v893
      %v906 = vsel %vm899, %v891, %v892
      %v907 = vsel %vm899, %v890, %v891
      %v908 = vsel %vm899, %v889, %v890
      %v909 = vsel %vm899, %v888, %v889
      %v910 = vsel %vm899, %v887, %v888
      %v911 = vsel %vm899, %v886, %v887
      %v912 = vsel %vm899, %v885, %v886
      %v913 = vsel %vm899, %v884, %v885
      %v914 = vsel %vm899, %v883, %v884
      %v915 = vsel %vm899, %v882, %v883
      %v916 = vsel %vm899, %v881, %v882
      %v917 = vsel %vm899, %v880, %v881
      %v918 = vsel %vm899, %v879, %v880
      %v919 = vsel %vm899, %v878, %v879
      %v920 = vsel %vm899, %v877, %v878
      %v921 = vsel %vm899, %v876, %v877
      %v922 = vsel %vm899, %v875, %v876
      %v923 = vsel %vm899, %v874, %v875
      %v924 = vsel %vm899, %v873, %v874
      %v925 = vsel %vm899, %v872, %v873
      %v926 = vsel %vm899, %v871, %v872
      %v927 = vsel %vm899, %v870, %v871
      %v928 = vsel %vm899, %v869, %v870
      %v929 = vsel %vm899, %v868, %v869
      %v930 = vsel %vm899, %v867, %v868
      %v931 = vsel %vm899, %v898, %v867
      %v932 = vsel %vm674, 1, 0
      %v933 = vsel %vm675, 1, 0
      %v934 = vsel %vm676, 1, 0
      %v935 = vsel %vm677, 1, 0
      %v936 = vsel %vm678, 1, 0
      %v937 = vsel %vm679, 1, 0
      %v938 = vsel %vm680, 1, 0
      %v939 = vsel %vm681, 1, 0
      %v940 = vsel %vm682, 1, 0
      %v941 = vsel %vm683, 1, 0
      %v942 = vsel %vm684, 1, 0
      %v943 = vsel %vm685, 1, 0
      %v944 = vsel %vm686, 1, 0
      %v945 = vsel %vm687, 1, 0
      %v946 = vsel %vm688, 1, 0
      %v947 = vsel %vm689, 1, 0
      %v948 = vsel %vm690, 1, 0
      %v949 = vsel %vm691, 1, 0
      %v950 = vsel %vm692, 1, 0
      %v951 = vsel %vm693, 1, 0
      %v952 = vsel %vm694, 1, 0
      %v953 = vsel %vm695, 1, 0
      %v954 = vsel %vm696, 1, 0
      %v955 = vsel %vm697, 1, 0
      %v956 = vsel %vm698, 1, 0
      %v957 = vsel %vm699, 1, 0
      %v958 = vsel %vm700, 1, 0
      %v959 = vsel %vm701, 1, 0
      %v960 = vsel %vm702, 1, 0
      %v961 = vsel %vm703, 1, 0
      %v962 = vsel %vm704, 1, 0
      %v963 = vsel %vm705, 1, 0
      %vm964 = vcmp.eq.s32.totalorder %v932, 1
      %vm965 = vcmp.eq.s32.totalorder %v933, 1
      %vm966 = vcmp.eq.s32.totalorder %v934, 1
      %vm967 = vcmp.eq.s32.totalorder %v935, 1
      %vm968 = vcmp.eq.s32.totalorder %v936, 1
      %vm969 = vcmp.eq.s32.totalorder %v937, 1
      %vm970 = vcmp.eq.s32.totalorder %v938, 1
      %vm971 = vcmp.eq.s32.totalorder %v939, 1
      %vm972 = vcmp.eq.s32.totalorder %v940, 1
      %vm973 = vcmp.eq.s32.totalorder %v941, 1
      %vm974 = vcmp.eq.s32.totalorder %v942, 1
      %vm975 = vcmp.eq.s32.totalorder %v943, 1
      %vm976 = vcmp.eq.s32.totalorder %v944, 1
      %vm977 = vcmp.eq.s32.totalorder %v945, 1
      %vm978 = vcmp.eq.s32.totalorder %v946, 1
      %vm979 = vcmp.eq.s32.totalorder %v947, 1
      %vm980 = vcmp.eq.s32.totalorder %v948, 1
      %vm981 = vcmp.eq.s32.totalorder %v949, 1
      %vm982 = vcmp.eq.s32.totalorder %v950, 1
      %vm983 = vcmp.eq.s32.totalorder %v951, 1
      %vm984 = vcmp.eq.s32.totalorder %v952, 1
      %vm985 = vcmp.eq.s32.totalorder %v953, 1
      %vm986 = vcmp.eq.s32.totalorder %v954, 1
      %vm987 = vcmp.eq.s32.totalorder %v955, 1
      %vm988 = vcmp.eq.s32.totalorder %v956, 1
      %vm989 = vcmp.eq.s32.totalorder %v957, 1
      %vm990 = vcmp.eq.s32.totalorder %v958, 1
      %vm991 = vcmp.eq.s32.totalorder %v959, 1
      %vm992 = vcmp.eq.s32.totalorder %v960, 1
      %vm993 = vcmp.eq.s32.totalorder %v961, 1
      %vm994 = vcmp.eq.s32.totalorder %v962, 1
      %vm995 = vcmp.eq.s32.totalorder %v963, 1
      %v996 = vsel %vm964, %v930, %v866
      %v997 = vsel %vm965, %v929, %v865
      %v998 = vsel %vm966, %v928, %v864
      %v999 = vsel %vm967, %v927, %v863
      %v1000 = vsel %vm968, %v926, %v862
      %v1001 = vsel %vm969, %v925, %v861
      %v1002 = vsel %vm970, %v924, %v860
      %v1003 = vsel %vm971, %v923, %v859
      %v1004 = vsel %vm972, %v922, %v858
      %v1005 = vsel %vm973, %v921, %v857
      %v1006 = vsel %vm974, %v920, %v856
      %v1007 = vsel %vm975, %v919, %v855
      %v1008 = vsel %vm976, %v918, %v854
      %v1009 = vsel %vm977, %v917, %v853
      %v1010 = vsel %vm978, %v916, %v852
      %v1011 = vsel %vm979, %v915, %v851
      %v1012 = vsel %vm980, %v914, %v850
      %v1013 = vsel %vm981, %v913, %v849
      %v1014 = vsel %vm982, %v912, %v848
      %v1015 = vsel %vm983, %v911, %v847
      %v1016 = vsel %vm984, %v910, %v846
      %v1017 = vsel %vm985, %v909, %v845
      %v1018 = vsel %vm986, %v908, %v844
      %v1019 = vsel %vm987, %v907, %v843
      %v1020 = vsel %vm988, %v906, %v842
      %v1021 = vsel %vm989, %v905, %v841
      %v1022 = vsel %vm990, %v904, %v840
      %v1023 = vsel %vm991, %v903, %v839
      %v1024 = vsel %vm992, %v902, %v838
      %v1025 = vsel %vm993, %v901, %v837
      %v1026 = vsel %vm994, %v900, %v836
      %v1027 = vsel %vm995, %v931, %v835
      %v1028 = vsel %vm706, 1, 0
      %v1029 = vsel %vm707, 1, 0
      %v1030 = vsel %vm708, 1, 0
      %v1031 = vsel %vm709, 1, 0
      %v1032 = vsel %vm710, 1, 0
      %v1033 = vsel %vm711, 1, 0
      %v1034 = vsel %vm712, 1, 0
      %v1035 = vsel %vm713, 1, 0
      %v1036 = vsel %vm714, 1, 0
      %v1037 = vsel %vm715, 1, 0
      %v1038 = vsel %vm716, 1, 0
      %v1039 = vsel %vm717, 1, 0
      %v1040 = vsel %vm718, 1, 0
      %v1041 = vsel %vm719, 1, 0
      %v1042 = vsel %vm720, 1, 0
      %v1043 = vsel %vm721, 1, 0
      %v1044 = vsel %vm722, 1, 0
      %v1045 = vsel %vm723, 1, 0
      %v1046 = vsel %vm724, 1, 0
      %v1047 = vsel %vm725, 1, 0
      %v1048 = vsel %vm726, 1, 0
      %v1049 = vsel %vm727, 1, 0
      %v1050 = vsel %vm728, 1, 0
      %v1051 = vsel %vm729, 1, 0
      %v1052 = vsel %vm730, 1, 0
      %v1053 = vsel %vm731, 1, 0
      %v1054 = vsel %vm732, 1, 0
      %v1055 = vsel %vm733, 1, 0
      %v1056 = vsel %vm734, 1, 0
      %v1057 = vsel %vm735, 1, 0
      %v1058 = vsel %vm736, 1, 0
      %v1059 = vsel %vm737, 1, 0
      %vm1060 = vcmp.eq.s32.totalorder %v1028, 1
      %vm1061 = vcmp.eq.s32.totalorder %v1029, 1
      %vm1062 = vcmp.eq.s32.totalorder %v1030, 1
      %vm1063 = vcmp.eq.s32.totalorder %v1031, 1
      %vm1064 = vcmp.eq.s32.totalorder %v1032, 1
      %vm1065 = vcmp.eq.s32.totalorder %v1033, 1
      %vm1066 = vcmp.eq.s32.totalorder %v1034, 1
      %vm1067 = vcmp.eq.s32.totalorder %v1035, 1
      %vm1068 = vcmp.eq.s32.totalorder %v1036, 1
      %vm1069 = vcmp.eq.s32.totalorder %v1037, 1
      %vm1070 = vcmp.eq.s32.totalorder %v1038, 1
      %vm1071 = vcmp.eq.s32.totalorder %v1039, 1
      %vm1072 = vcmp.eq.s32.totalorder %v1040, 1
      %vm1073 = vcmp.eq.s32.totalorder %v1041, 1
      %vm1074 = vcmp.eq.s32.totalorder %v1042, 1
      %vm1075 = vcmp.eq.s32.totalorder %v1043, 1
      %vm1076 = vcmp.eq.s32.totalorder %v1044, 1
      %vm1077 = vcmp.eq.s32.totalorder %v1045, 1
      %vm1078 = vcmp.eq.s32.totalorder %v1046, 1
      %vm1079 = vcmp.eq.s32.totalorder %v1047, 1
      %vm1080 = vcmp.eq.s32.totalorder %v1048, 1
      %vm1081 = vcmp.eq.s32.totalorder %v1049, 1
      %vm1082 = vcmp.eq.s32.totalorder %v1050, 1
      %vm1083 = vcmp.eq.s32.totalorder %v1051, 1
      %vm1084 = vcmp.eq.s32.totalorder %v1052, 1
      %vm1085 = vcmp.eq.s32.totalorder %v1053, 1
      %vm1086 = vcmp.eq.s32.totalorder %v1054, 1
      %vm1087 = vcmp.eq.s32.totalorder %v1055, 1
      %vm1088 = vcmp.eq.s32.totalorder %v1056, 1
      %vm1089 = vcmp.eq.s32.totalorder %v1057, 1
      %vm1090 = vcmp.eq.s32.totalorder %v1058, 1
      %vm1091 = vcmp.eq.s32.totalorder %v1059, 1
      %v1092 = vsel %vm1060, %v866, %v930
      %v1093 = vsel %vm1061, %v865, %v929
      %v1094 = vsel %vm1062, %v864, %v928
      %v1095 = vsel %vm1063, %v863, %v927
      %v1096 = vsel %vm1064, %v862, %v926
      %v1097 = vsel %vm1065, %v861, %v925
      %v1098 = vsel %vm1066, %v860, %v924
      %v1099 = vsel %vm1067, %v859, %v923
      %v1100 = vsel %vm1068, %v858, %v922
      %v1101 = vsel %vm1069, %v857, %v921
      %v1102 = vsel %vm1070, %v856, %v920
      %v1103 = vsel %vm1071, %v855, %v919
      %v1104 = vsel %vm1072, %v854, %v918
      %v1105 = vsel %vm1073, %v853, %v917
      %v1106 = vsel %vm1074, %v852, %v916
      %v1107 = vsel %vm1075, %v851, %v915
      %v1108 = vsel %vm1076, %v850, %v914
      %v1109 = vsel %vm1077, %v849, %v913
      %v1110 = vsel %vm1078, %v848, %v912
      %v1111 = vsel %vm1079, %v847, %v911
      %v1112 = vsel %vm1080, %v846, %v910
      %v1113 = vsel %vm1081, %v845, %v909
      %v1114 = vsel %vm1082, %v844, %v908
      %v1115 = vsel %vm1083, %v843, %v907
      %v1116 = vsel %vm1084, %v842, %v906
      %v1117 = vsel %vm1085, %v841, %v905
      %v1118 = vsel %vm1086, %v840, %v904
      %v1119 = vsel %vm1087, %v839, %v903
      %v1120 = vsel %vm1088, %v838, %v902
      %v1121 = vsel %vm1089, %v837, %v901
      %v1122 = vsel %vm1090, %v836, %v900
      %v1123 = vsel %vm1091, %v835, %v931
      %1156 = vrot.lane.b32.xlu0 %v225, 4
      %v1157 = vpop.permute.xlu0 %1156
      %1158 = vrot.lane.b32.xlu0 %v226, 4
      %v1159 = vpop.permute.xlu0 %1158
      %1160 = vrot.lane.b32.xlu0 %v227, 4
      %v1161 = vpop.permute.xlu0 %1160
      %1162 = vrot.lane.b32.xlu0 %v228, 4
      %v1163 = vpop.permute.xlu0 %1162
      %1164 = vrot.lane.b32.xlu0 %v229, 4
      %v1165 = vpop.permute.xlu0 %1164
      %1166 = vrot.lane.b32.xlu0 %v230, 4
      %v1167 = vpop.permute.xlu0 %1166
      %1168 = vrot.lane.b32.xlu0 %v231, 4
      %v1169 = vpop.permute.xlu0 %1168
      %1170 = vrot.lane.b32.xlu0 %v232, 4
      %v1171 = vpop.permute.xlu0 %1170
      %1172 = vrot.lane.b32.xlu0 %v233, 4
      %v1173 = vpop.permute.xlu0 %1172
      %1174 = vrot.lane.b32.xlu0 %v234, 4
      %v1175 = vpop.permute.xlu0 %1174
      %1176 = vrot.lane.b32.xlu0 %v235, 4
      %v1177 = vpop.permute.xlu0 %1176
      %1178 = vrot.lane.b32.xlu0 %v236, 4
      %v1179 = vpop.permute.xlu0 %1178
      %1180 = vrot.lane.b32.xlu0 %v237, 4
      %v1181 = vpop.permute.xlu0 %1180
      %1182 = vrot.lane.b32.xlu0 %v238, 4
      %v1183 = vpop.permute.xlu0 %1182
      %1184 = vrot.lane.b32.xlu0 %v239, 4
      %v1185 = vpop.permute.xlu0 %1184
      %1186 = vrot.lane.b32.xlu0 %v240, 4
      %v1187 = vpop.permute.xlu0 %1186
      %1188 = vrot.lane.b32.xlu0 %v241, 4
      %v1189 = vpop.permute.xlu0 %1188
      %1190 = vrot.lane.b32.xlu0 %v242, 4
      %v1191 = vpop.permute.xlu0 %1190
      %1192 = vrot.lane.b32.xlu0 %v243, 4
      %v1193 = vpop.permute.xlu0 %1192
      %1194 = vrot.lane.b32.xlu0 %v244, 4
      %v1195 = vpop.permute.xlu0 %1194
      %1196 = vrot.lane.b32.xlu0 %v245, 4
      %v1197 = vpop.permute.xlu0 %1196
      %1198 = vrot.lane.b32.xlu0 %v246, 4
      %v1199 = vpop.permute.xlu0 %1198
      %1200 = vrot.lane.b32.xlu0 %v247, 4
      %v1201 = vpop.permute.xlu0 %1200
      %1202 = vrot.lane.b32.xlu0 %v248, 4
      %v1203 = vpop.permute.xlu0 %1202
      %1204 = vrot.lane.b32.xlu0 %v249, 4
      %v1205 = vpop.permute.xlu0 %1204
      %1206 = vrot.lane.b32.xlu0 %v250, 4
      %v1207 = vpop.permute.xlu0 %1206
      %1208 = vrot.lane.b32.xlu0 %v251, 4
      %v1209 = vpop.permute.xlu0 %1208
      %1210 = vrot.lane.b32.xlu0 %v252, 4
      %v1211 = vpop.permute.xlu0 %1210
      %1212 = vrot.lane.b32.xlu0 %v253, 4
      %v1213 = vpop.permute.xlu0 %1212
      %1214 = vrot.lane.b32.xlu0 %v254, 4
      %v1215 = vpop.permute.xlu0 %1214
      %1216 = vrot.lane.b32.xlu0 %v255, 4
      %v1217 = vpop.permute.xlu0 %1216
      %1218 = vrot.lane.b32.xlu0 %v256, 4
      %v1219 = vpop.permute.xlu0 %1218
      %1284 = vrot.lane.b32.xlu0 %v1092, 8
      %v1285 = vpop.permute.xlu0 %1284
      %1286 = vrot.lane.b32.xlu0 %v1093, 8
      %v1287 = vpop.permute.xlu0 %1286
      %1288 = vrot.lane.b32.xlu0 %v1094, 8
      %v1289 = vpop.permute.xlu0 %1288
      %1290 = vrot.lane.b32.xlu0 %v1095, 8
      %v1291 = vpop.permute.xlu0 %1290
      %1292 = vrot.lane.b32.xlu0 %v1096, 8
      %v1293 = vpop.permute.xlu0 %1292
      %1294 = vrot.lane.b32.xlu0 %v1097, 8
      %v1295 = vpop.permute.xlu0 %1294
      %1296 = vrot.lane.b32.xlu0 %v1098, 8
      %v1297 = vpop.permute.xlu0 %1296
      %1298 = vrot.lane.b32.xlu0 %v1099, 8
      %v1299 = vpop.permute.xlu0 %1298
      %1300 = vrot.lane.b32.xlu0 %v1100, 8
      %v1301 = vpop.permute.xlu0 %1300
      %1302 = vrot.lane.b32.xlu0 %v1101, 8
      %v1303 = vpop.permute.xlu0 %1302
      %1304 = vrot.lane.b32.xlu0 %v1102, 8
      %v1305 = vpop.permute.xlu0 %1304
      %1306 = vrot.lane.b32.xlu0 %v1103, 8
      %v1307 = vpop.permute.xlu0 %1306
      %1308 = vrot.lane.b32.xlu0 %v1104, 8
      %v1309 = vpop.permute.xlu0 %1308
      %1310 = vrot.lane.b32.xlu0 %v1105, 8
      %v1311 = vpop.permute.xlu0 %1310
      %1312 = vrot.lane.b32.xlu0 %v1106, 8
      %v1313 = vpop.permute.xlu0 %1312
      %1314 = vrot.lane.b32.xlu0 %v1107, 8
      %v1315 = vpop.permute.xlu0 %1314
      %1316 = vrot.lane.b32.xlu0 %v1108, 8
      %v1317 = vpop.permute.xlu0 %1316
      %1318 = vrot.lane.b32.xlu0 %v1109, 8
      %v1319 = vpop.permute.xlu0 %1318
      %1320 = vrot.lane.b32.xlu0 %v1110, 8
      %v1321 = vpop.permute.xlu0 %1320
      %1322 = vrot.lane.b32.xlu0 %v1111, 8
      %v1323 = vpop.permute.xlu0 %1322
      %1324 = vrot.lane.b32.xlu0 %v1112, 8
      %v1325 = vpop.permute.xlu0 %1324
      %1326 = vrot.lane.b32.xlu0 %v1113, 8
      %v1327 = vpop.permute.xlu0 %1326
      %1328 = vrot.lane.b32.xlu0 %v1114, 8
      %v1329 = vpop.permute.xlu0 %1328
      %1330 = vrot.lane.b32.xlu0 %v1115, 8
      %v1331 = vpop.permute.xlu0 %1330
      %1332 = vrot.lane.b32.xlu0 %v1116, 8
      %v1333 = vpop.permute.xlu0 %1332
      %1334 = vrot.lane.b32.xlu0 %v1117, 8
      %v1335 = vpop.permute.xlu0 %1334
      %1336 = vrot.lane.b32.xlu0 %v1118, 8
      %v1337 = vpop.permute.xlu0 %1336
      %1338 = vrot.lane.b32.xlu0 %v1119, 8
      %v1339 = vpop.permute.xlu0 %1338
      %1340 = vrot.lane.b32.xlu0 %v1120, 8
      %v1341 = vpop.permute.xlu0 %1340
      %1342 = vrot.lane.b32.xlu0 %v1121, 8
      %v1343 = vpop.permute.xlu0 %1342
      %1344 = vrot.lane.b32.xlu0 %v1122, 8
      %v1345 = vpop.permute.xlu0 %1344
      %1346 = vrot.lane.b32.xlu0 %v1123, 8
      %v1347 = vpop.permute.xlu0 %1346
      %vm1380 = vcmask 31744
      %v1381 = vsel %vm1380, %v996, %v1157
      %v1382 = vsel %vm1380, %v997, %v1159
      %v1383 = vsel %vm1380, %v998, %v1161
      %v1384 = vsel %vm1380, %v999, %v1163
      %v1385 = vsel %vm1380, %v1000, %v1165
      %v1386 = vsel %vm1380, %v1001, %v1167
      %v1387 = vsel %vm1380, %v1002, %v1169
      %v1388 = vsel %vm1380, %v1003, %v1171
      %v1389 = vsel %vm1380, %v1004, %v1173
      %v1390 = vsel %vm1380, %v1005, %v1175
      %v1391 = vsel %vm1380, %v1006, %v1177
      %v1392 = vsel %vm1380, %v1007, %v1179
      %v1393 = vsel %vm1380, %v1008, %v1181
      %v1394 = vsel %vm1380, %v1009, %v1183
      %v1395 = vsel %vm1380, %v1010, %v1185
      %v1396 = vsel %vm1380, %v1011, %v1187
      %v1397 = vsel %vm1380, %v1012, %v1189
      %v1398 = vsel %vm1380, %v1013, %v1191
      %v1399 = vsel %vm1380, %v1014, %v1193
      %v1400 = vsel %vm1380, %v1015, %v1195
      %v1401 = vsel %vm1380, %v1016, %v1197
      %v1402 = vsel %vm1380, %v1017, %v1199
      %v1403 = vsel %vm1380, %v1018, %v1201
      %v1404 = vsel %vm1380, %v1019, %v1203
      %v1405 = vsel %vm1380, %v1020, %v1205
      %v1406 = vsel %vm1380, %v1021, %v1207
      %v1407 = vsel %vm1380, %v1022, %v1209
      %v1408 = vsel %vm1380, %v1023, %v1211
      %v1409 = vsel %vm1380, %v1024, %v1213
      %v1410 = vsel %vm1380, %v1025, %v1215
      %v1411 = vsel %vm1380, %v1026, %v1217
      %v1412 = vsel %vm1380, %v1027, %v1219
      %vm1413 = vcmask 64512
      %v1414 = vsel %vm1413, %v1381, %v1285
      %v1415 = vsel %vm1413, %v1382, %v1287
      %v1416 = vsel %vm1413, %v1383, %v1289
      %v1417 = vsel %vm1413, %v1384, %v1291
      %v1418 = vsel %vm1413, %v1385, %v1293
      %v1419 = vsel %vm1413, %v1386, %v1295
      %v1420 = vsel %vm1413, %v1387, %v1297
      %v1421 = vsel %vm1413, %v1388, %v1299
      %v1422 = vsel %vm1413, %v1389, %v1301
      %v1423 = vsel %vm1413, %v1390, %v1303
      %v1424 = vsel %vm1413, %v1391, %v1305
      %v1425 = vsel %vm1413, %v1392, %v1307
      %v1426 = vsel %vm1413, %v1393, %v1309
      %v1427 = vsel %vm1413, %v1394, %v1311
      %v1428 = vsel %vm1413, %v1395, %v1313
      %v1429 = vsel %vm1413, %v1396, %v1315
      %v1430 = vsel %vm1413, %v1397, %v1317
      %v1431 = vsel %vm1413, %v1398, %v1319
      %v1432 = vsel %vm1413, %v1399, %v1321
      %v1433 = vsel %vm1413, %v1400, %v1323
      %v1434 = vsel %vm1413, %v1401, %v1325
      %v1435 = vsel %vm1413, %v1402, %v1327
      %v1436 = vsel %vm1413, %v1403, %v1329
      %v1437 = vsel %vm1413, %v1404, %v1331
      %v1438 = vsel %vm1413, %v1405, %v1333
      %v1439 = vsel %vm1413, %v1406, %v1335
      %v1440 = vsel %vm1413, %v1407, %v1337
      %v1441 = vsel %vm1413, %v1408, %v1339
      %v1442 = vsel %vm1413, %v1409, %v1341
      %v1443 = vsel %vm1413, %v1410, %v1343
      %v1444 = vsel %vm1413, %v1411, %v1345
      %v1445 = vsel %vm1413, %v1412, %v1347
      %v1446 = vld [vmem:[%s1] sm:$0xff]
      %v1447 = vld [vmem:[%s1 + $0x8] sm:$0xf]
      %vm1448 = vcmask 97280
      %v1450 = vsel %vm1448, %v1414, 0
      %v1453 = vsel %vm1448, %v1415, 0
      %v1456 = vsel %vm1448, %v1416, 0
      %v1459 = vsel %vm1448, %v1417, 0
      %v1462 = vsel %vm1448, %v1418, 0
      %v1465 = vsel %vm1448, %v1419, 0
      %v1468 = vsel %vm1448, %v1420, 0
      %v1471 = vsel %vm1448, %v1421, 0
      %v1474 = vsel %vm1448, %v1422, 0
      %v1477 = vsel %vm1448, %v1423, 0
      %v1480 = vsel %vm1448, %v1424, 0
      %v1483 = vsel %vm1448, %v1425, 0
      %v1486 = vsel %vm1448, %v1426, 0
      %v1489 = vsel %vm1448, %v1427, 0
      %v1492 = vsel %vm1448, %v1428, 0
      %v1495 = vsel %vm1448, %v1429, 0
      %v1498 = vsel %vm1448, %v1430, 0
      %v1501 = vsel %vm1448, %v1431, 0
      %v1504 = vsel %vm1448, %v1432, 0
      %v1507 = vsel %vm1448, %v1433, 0
      %v1510 = vsel %vm1448, %v1434, 0
      %v1513 = vsel %vm1448, %v1435, 0
      %v1516 = vsel %vm1448, %v1436, 0
      %v1519 = vsel %vm1448, %v1437, 0
      %v1522 = vsel %vm1448, %v1438, 0
      %v1525 = vsel %vm1448, %v1439, 0
      %v1528 = vsel %vm1448, %v1440, 0
      %v1531 = vsel %vm1448, %v1441, 0
      %v1534 = vsel %vm1448, %v1442, 0
      %v1537 = vsel %vm1448, %v1443, 0
      %v1540 = vsel %vm1448, %v1444, 0
      %v1543 = vsel %vm1448, %v1445, 0
      %vm1545 = vcmask 1043456
      %v1547 = vsel %vm1545, %v1447, 0
      %1549 = vmatpush.msra.mxu0 0.0
      %1550 = vmatpush.msra.mxu0 0.0
      %1551 = vmatpush.msra.mxu0 0.0
      %1552 = vmatpush.msra.mxu0 0.0
      %1553 = vmatpush.msra.mxu0 0.0
      %1554 = vmatpush.msra.mxu0 0.0
      %1555 = vmatpush.msra.mxu0 0.0
      %1556 = vmatpush.msra.mxu0 0.0
      %1557 = vmatpush.msra.mxu0 0.0
      %1558 = vmatpush.msra.mxu0 0.0
      %1559 = vmatpush.msra.mxu0 0.0
      %1560 = vmatpush.msra.mxu0 0.0
      %1561 = vmatpush.msra.mxu0 0.0
      %1562 = vmatpush.msra.mxu0 0.0
      %1563 = vmatpush.msra.mxu0 %v1547
      %1564 = vmatpush.msra.mxu0 %v1446
      %1565 = vmatmul.f32.gmra.mxu0 %v1450
      %v1566 = vpop.f32.mrf.mxu0
      %v1567 = vadd.f32 0.0, %v1566
      %1568 = vmatmul.f32.gmra.mxu0 %v1453
      %v1569 = vpop.f32.mrf.mxu0
      %v1570 = vadd.f32 0.0, %v1569
      %1571 = vmatmul.f32.gmra.mxu0 %v1456
      %v1572 = vpop.f32.mrf.mxu0
      %v1573 = vadd.f32 0.0, %v1572
      %1574 = vmatmul.f32.gmra.mxu0 %v1459
      %v1575 = vpop.f32.mrf.mxu0
      %v1576 = vadd.f32 0.0, %v1575
      %1577 = vmatmul.f32.gmra.mxu0 %v1462
      %v1578 = vpop.f32.mrf.mxu0
      %v1579 = vadd.f32 0.0, %v1578
      %1580 = vmatmul.f32.gmra.mxu0 %v1465
      %v1581 = vpop.f32.mrf.mxu0
      %v1582 = vadd.f32 0.0, %v1581
      %1583 = vmatmul.f32.gmra.mxu0 %v1468
      %v1584 = vpop.f32.mrf.mxu0
      %v1585 = vadd.f32 0.0, %v1584
      %1586 = vmatmul.f32.gmra.mxu0 %v1471
      %v1587 = vpop.f32.mrf.mxu0
      %v1588 = vadd.f32 0.0, %v1587
      %1589 = vmatmul.f32.gmra.mxu0 %v1474
      %v1590 = vpop.f32.mrf.mxu0
      %v1591 = vadd.f32 0.0, %v1590
      %1592 = vmatmul.f32.gmra.mxu0 %v1477
      %v1593 = vpop.f32.mrf.mxu0
      %v1594 = vadd.f32 0.0, %v1593
      %1595 = vmatmul.f32.gmra.mxu0 %v1480
      %v1596 = vpop.f32.mrf.mxu0
      %v1597 = vadd.f32 0.0, %v1596
      %1598 = vmatmul.f32.gmra.mxu0 %v1483
      %v1599 = vpop.f32.mrf.mxu0
      %v1600 = vadd.f32 0.0, %v1599
      %1601 = vmatmul.f32.gmra.mxu0 %v1486
      %v1602 = vpop.f32.mrf.mxu0
      %v1603 = vadd.f32 0.0, %v1602
      %1604 = vmatmul.f32.gmra.mxu0 %v1489
      %v1605 = vpop.f32.mrf.mxu0
      %v1606 = vadd.f32 0.0, %v1605
      %1607 = vmatmul.f32.gmra.mxu0 %v1492
      %v1608 = vpop.f32.mrf.mxu0
      %v1609 = vadd.f32 0.0, %v1608
      %1610 = vmatmul.f32.gmra.mxu0 %v1495
      %v1611 = vpop.f32.mrf.mxu0
      %v1612 = vadd.f32 0.0, %v1611
      %1613 = vmatmul.f32.gmra.mxu0 %v1498
      %v1614 = vpop.f32.mrf.mxu0
      %v1615 = vadd.f32 0.0, %v1614
      %1616 = vmatmul.f32.gmra.mxu0 %v1501
      %v1617 = vpop.f32.mrf.mxu0
      %v1618 = vadd.f32 0.0, %v1617
      %1619 = vmatmul.f32.gmra.mxu0 %v1504
      %v1620 = vpop.f32.mrf.mxu0
      %v1621 = vadd.f32 0.0, %v1620
      %1622 = vmatmul.f32.gmra.mxu0 %v1507
      %v1623 = vpop.f32.mrf.mxu0
      %v1624 = vadd.f32 0.0, %v1623
      %1625 = vmatmul.f32.gmra.mxu0 %v1510
      %v1626 = vpop.f32.mrf.mxu0
      %v1627 = vadd.f32 0.0, %v1626
      %1628 = vmatmul.f32.gmra.mxu0 %v1513
      %v1629 = vpop.f32.mrf.mxu0
      %v1630 = vadd.f32 0.0, %v1629
      %1631 = vmatmul.f32.gmra.mxu0 %v1516
      %v1632 = vpop.f32.mrf.mxu0
      %v1633 = vadd.f32 0.0, %v1632
      %1634 = vmatmul.f32.gmra.mxu0 %v1519
      %v1635 = vpop.f32.mrf.mxu0
      %v1636 = vadd.f32 0.0, %v1635
      %1637 = vmatmul.f32.gmra.mxu0 %v1522
      %v1638 = vpop.f32.mrf.mxu0
      %v1639 = vadd.f32 0.0, %v1638
      %1640 = vmatmul.f32.gmra.mxu0 %v1525
      %v1641 = vpop.f32.mrf.mxu0
      %v1642 = vadd.f32 0.0, %v1641
      %1643 = vmatmul.f32.gmra.mxu0 %v1528
      %v1644 = vpop.f32.mrf.mxu0
      %v1645 = vadd.f32 0.0, %v1644
      %1646 = vmatmul.f32.gmra.mxu0 %v1531
      %v1647 = vpop.f32.mrf.mxu0
      %v1648 = vadd.f32 0.0, %v1647
      %1649 = vmatmul.f32.gmra.mxu0 %v1534
      %v1650 = vpop.f32.mrf.mxu0
      %v1651 = vadd.f32 0.0, %v1650
      %1652 = vmatmul.f32.gmra.mxu0 %v1537
      %v1653 = vpop.f32.mrf.mxu0
      %v1654 = vadd.f32 0.0, %v1653
      %1655 = vmatmul.f32.gmra.mxu0 %v1540
      %v1656 = vpop.f32.mrf.mxu0
      %v1657 = vadd.f32 0.0, %v1656
      %1658 = vmatmul.f32.gmra.mxu0 %v1543
      %v1659 = vpop.f32.mrf.mxu0
      %v1660 = vadd.f32 0.0, %v1659
      %1661 = vdwg.mxu0
      %v1662 = vsel %vm738, 1, 0
      %v1663 = vsel %vm739, 1, 0
      %v1664 = vsel %vm740, 1, 0
      %v1665 = vsel %vm741, 1, 0
      %v1666 = vsel %vm742, 1, 0
      %v1667 = vsel %vm743, 1, 0
      %v1668 = vsel %vm744, 1, 0
      %v1669 = vsel %vm745, 1, 0
      %v1670 = vsel %vm746, 1, 0
      %v1671 = vsel %vm747, 1, 0
      %v1672 = vsel %vm748, 1, 0
      %v1673 = vsel %vm749, 1, 0
      %v1674 = vsel %vm750, 1, 0
      %v1675 = vsel %vm751, 1, 0
      %v1676 = vsel %vm752, 1, 0
      %v1677 = vsel %vm753, 1, 0
      %v1678 = vsel %vm754, 1, 0
      %v1679 = vsel %vm755, 1, 0
      %v1680 = vsel %vm756, 1, 0
      %v1681 = vsel %vm757, 1, 0
      %v1682 = vsel %vm758, 1, 0
      %v1683 = vsel %vm759, 1, 0
      %v1684 = vsel %vm760, 1, 0
      %v1685 = vsel %vm761, 1, 0
      %v1686 = vsel %vm762, 1, 0
      %v1687 = vsel %vm763, 1, 0
      %v1688 = vsel %vm764, 1, 0
      %v1689 = vsel %vm765, 1, 0
      %v1690 = vsel %vm766, 1, 0
      %v1691 = vsel %vm767, 1, 0
      %v1692 = vsel %vm768, 1, 0
      %v1693 = vsel %vm769, 1, 0
      %vm1694 = vcmp.eq.s32.totalorder %v1662, 1
      %vm1695 = vcmp.eq.s32.totalorder %v1663, 1
      %vm1696 = vcmp.eq.s32.totalorder %v1664, 1
      %vm1697 = vcmp.eq.s32.totalorder %v1665, 1
      %vm1698 = vcmp.eq.s32.totalorder %v1666, 1
      %vm1699 = vcmp.eq.s32.totalorder %v1667, 1
      %vm1700 = vcmp.eq.s32.totalorder %v1668, 1
      %vm1701 = vcmp.eq.s32.totalorder %v1669, 1
      %vm1702 = vcmp.eq.s32.totalorder %v1670, 1
      %vm1703 = vcmp.eq.s32.totalorder %v1671, 1
      %vm1704 = vcmp.eq.s32.totalorder %v1672, 1
      %vm1705 = vcmp.eq.s32.totalorder %v1673, 1
      %vm1706 = vcmp.eq.s32.totalorder %v1674, 1
      %vm1707 = vcmp.eq.s32.totalorder %v1675, 1
      %vm1708 = vcmp.eq.s32.totalorder %v1676, 1
      %vm1709 = vcmp.eq.s32.totalorder %v1677, 1
      %vm1710 = vcmp.eq.s32.totalorder %v1678, 1
      %vm1711 = vcmp.eq.s32.totalorder %v1679, 1
      %vm1712 = vcmp.eq.s32.totalorder %v1680, 1
      %vm1713 = vcmp.eq.s32.totalorder %v1681, 1
      %vm1714 = vcmp.eq.s32.totalorder %v1682, 1
      %vm1715 = vcmp.eq.s32.totalorder %v1683, 1
      %vm1716 = vcmp.eq.s32.totalorder %v1684, 1
      %vm1717 = vcmp.eq.s32.totalorder %v1685, 1
      %vm1718 = vcmp.eq.s32.totalorder %v1686, 1
      %vm1719 = vcmp.eq.s32.totalorder %v1687, 1
      %vm1720 = vcmp.eq.s32.totalorder %v1688, 1
      %vm1721 = vcmp.eq.s32.totalorder %v1689, 1
      %vm1722 = vcmp.eq.s32.totalorder %v1690, 1
      %vm1723 = vcmp.eq.s32.totalorder %v1691, 1
      %vm1724 = vcmp.eq.s32.totalorder %v1692, 1
      %vm1725 = vcmp.eq.s32.totalorder %v1693, 1
      %v1726 = vsel %vm1694, %v1573, %v1657
      %v1727 = vsel %vm1695, %v1576, %v1660
      %v1728 = vsel %vm1696, %v1579, %v1567
      %v1729 = vsel %vm1697, %v1582, %v1570
      %v1730 = vsel %vm1698, %v1585, %v1573
      %v1731 = vsel %vm1699, %v1588, %v1576
      %v1732 = vsel %vm1700, %v1591, %v1579
      %v1733 = vsel %vm1701, %v1594, %v1582
      %v1734 = vsel %vm1702, %v1597, %v1585
      %v1735 = vsel %vm1703, %v1600, %v1588
      %v1736 = vsel %vm1704, %v1603, %v1591
      %v1737 = vsel %vm1705, %v1606, %v1594
      %v1738 = vsel %vm1706, %v1609, %v1597
      %v1739 = vsel %vm1707, %v1612, %v1600
      %v1740 = vsel %vm1708, %v1615, %v1603
      %v1741 = vsel %vm1709, %v1618, %v1606
      %v1742 = vsel %vm1710, %v1621, %v1609
      %v1743 = vsel %vm1711, %v1624, %v1612
      %v1744 = vsel %vm1712, %v1627, %v1615
      %v1745 = vsel %vm1713, %v1630, %v1618
      %v1746 = vsel %vm1714, %v1633, %v1621
      %v1747 = vsel %vm1715, %v1636, %v1624
      %v1748 = vsel %vm1716, %v1639, %v1627
      %v1749 = vsel %vm1717, %v1642, %v1630
      %v1750 = vsel %vm1718, %v1645, %v1633
      %v1751 = vsel %vm1719, %v1648, %v1636
      %v1752 = vsel %vm1720, %v1651, %v1639
      %v1753 = vsel %vm1721, %v1654, %v1642
      %v1754 = vsel %vm1722, %v1657, %v1645
      %v1755 = vsel %vm1723, %v1660, %v1648
      %v1756 = vsel %vm1724, %v1567, %v1651
      %v1757 = vsel %vm1725, %v1570, %v1654
      %1790 = vrot.lane.b32.xlu0 %v1567, 120
      %v1791 = vpop.permute.xlu0 %1790
      %1792 = vrot.lane.b32.xlu0 %v1570, 120
      %v1793 = vpop.permute.xlu0 %1792
      %1794 = vrot.lane.b32.xlu0 %v1573, 120
      %v1795 = vpop.permute.xlu0 %1794
      %1796 = vrot.lane.b32.xlu0 %v1576, 120
      %v1797 = vpop.permute.xlu0 %1796
      %1798 = vrot.lane.b32.xlu0 %v1579, 120
      %v1799 = vpop.permute.xlu0 %1798
      %1800 = vrot.lane.b32.xlu0 %v1582, 120
      %v1801 = vpop.permute.xlu0 %1800
      %1802 = vrot.lane.b32.xlu0 %v1585, 120
      %v1803 = vpop.permute.xlu0 %1802
      %1804 = vrot.lane.b32.xlu0 %v1588, 120
      %v1805 = vpop.permute.xlu0 %1804
      %1806 = vrot.lane.b32.xlu0 %v1591, 120
      %v1807 = vpop.permute.xlu0 %1806
      %1808 = vrot.lane.b32.xlu0 %v1594, 120
      %v1809 = vpop.permute.xlu0 %1808
      %1810 = vrot.lane.b32.xlu0 %v1597, 120
      %v1811 = vpop.permute.xlu0 %1810
      %1812 = vrot.lane.b32.xlu0 %v1600, 120
      %v1813 = vpop.permute.xlu0 %1812
      %1814 = vrot.lane.b32.xlu0 %v1603, 120
      %v1815 = vpop.permute.xlu0 %1814
      %1816 = vrot.lane.b32.xlu0 %v1606, 120
      %v1817 = vpop.permute.xlu0 %1816
      %1818 = vrot.lane.b32.xlu0 %v1609, 120
      %v1819 = vpop.permute.xlu0 %1818
      %1820 = vrot.lane.b32.xlu0 %v1612, 120
      %v1821 = vpop.permute.xlu0 %1820
      %1822 = vrot.lane.b32.xlu0 %v1615, 120
      %v1823 = vpop.permute.xlu0 %1822
      %1824 = vrot.lane.b32.xlu0 %v1618, 120
      %v1825 = vpop.permute.xlu0 %1824
      %1826 = vrot.lane.b32.xlu0 %v1621, 120
      %v1827 = vpop.permute.xlu0 %1826
      %1828 = vrot.lane.b32.xlu0 %v1624, 120
      %v1829 = vpop.permute.xlu0 %1828
      %1830 = vrot.lane.b32.xlu0 %v1627, 120
      %v1831 = vpop.permute.xlu0 %1830
      %1832 = vrot.lane.b32.xlu0 %v1630, 120
      %v1833 = vpop.permute.xlu0 %1832
      %1834 = vrot.lane.b32.xlu0 %v1633, 120
      %v1835 = vpop.permute.xlu0 %1834
      %1836 = vrot.lane.b32.xlu0 %v1636, 120
      %v1837 = vpop.permute.xlu0 %1836
      %1838 = vrot.lane.b32.xlu0 %v1639, 120
      %v1839 = vpop.permute.xlu0 %1838
      %1840 = vrot.lane.b32.xlu0 %v1642, 120
      %v1841 = vpop.permute.xlu0 %1840
      %1842 = vrot.lane.b32.xlu0 %v1645, 120
      %v1843 = vpop.permute.xlu0 %1842
      %1844 = vrot.lane.b32.xlu0 %v1648, 120
      %v1845 = vpop.permute.xlu0 %1844
      %1846 = vrot.lane.b32.xlu0 %v1651, 120
      %v1847 = vpop.permute.xlu0 %1846
      %1848 = vrot.lane.b32.xlu0 %v1654, 120
      %v1849 = vpop.permute.xlu0 %1848
      %1850 = vrot.lane.b32.xlu0 %v1657, 120
      %v1851 = vpop.permute.xlu0 %1850
      %1852 = vrot.lane.b32.xlu0 %v1660, 120
      %v1853 = vpop.permute.xlu0 %1852
      %v1886 = vsel %vm770, 1, 0
      %v1887 = vsel %vm771, 1, 0
      %v1888 = vsel %vm772, 1, 0
      %v1889 = vsel %vm773, 1, 0
      %v1890 = vsel %vm774, 1, 0
      %v1891 = vsel %vm775, 1, 0
      %v1892 = vsel %vm776, 1, 0
      %v1893 = vsel %vm777, 1, 0
      %v1894 = vsel %vm778, 1, 0
      %v1895 = vsel %vm779, 1, 0
      %v1896 = vsel %vm780, 1, 0
      %v1897 = vsel %vm781, 1, 0
      %v1898 = vsel %vm782, 1, 0
      %v1899 = vsel %vm783, 1, 0
      %v1900 = vsel %vm784, 1, 0
      %v1901 = vsel %vm785, 1, 0
      %v1902 = vsel %vm786, 1, 0
      %v1903 = vsel %vm787, 1, 0
      %v1904 = vsel %vm788, 1, 0
      %v1905 = vsel %vm789, 1, 0
      %v1906 = vsel %vm790, 1, 0
      %v1907 = vsel %vm791, 1, 0
      %v1908 = vsel %vm792, 1, 0
      %v1909 = vsel %vm793, 1, 0
      %v1910 = vsel %vm794, 1, 0
      %v1911 = vsel %vm795, 1, 0
      %v1912 = vsel %vm796, 1, 0
      %v1913 = vsel %vm797, 1, 0
      %v1914 = vsel %vm798, 1, 0
      %v1915 = vsel %vm799, 1, 0
      %v1916 = vsel %vm800, 1, 0
      %v1917 = vsel %vm801, 1, 0
      %vm1918 = vcmp.eq.s32.totalorder %v1886, 1
      %vm1919 = vcmp.eq.s32.totalorder %v1887, 1
      %vm1920 = vcmp.eq.s32.totalorder %v1888, 1
      %vm1921 = vcmp.eq.s32.totalorder %v1889, 1
      %vm1922 = vcmp.eq.s32.totalorder %v1890, 1
      %vm1923 = vcmp.eq.s32.totalorder %v1891, 1
      %vm1924 = vcmp.eq.s32.totalorder %v1892, 1
      %vm1925 = vcmp.eq.s32.totalorder %v1893, 1
      %vm1926 = vcmp.eq.s32.totalorder %v1894, 1
      %vm1927 = vcmp.eq.s32.totalorder %v1895, 1
      %vm1928 = vcmp.eq.s32.totalorder %v1896, 1
      %vm1929 = vcmp.eq.s32.totalorder %v1897, 1
      %vm1930 = vcmp.eq.s32.totalorder %v1898, 1
      %vm1931 = vcmp.eq.s32.totalorder %v1899, 1
      %vm1932 = vcmp.eq.s32.totalorder %v1900, 1
      %vm1933 = vcmp.eq.s32.totalorder %v1901, 1
      %vm1934 = vcmp.eq.s32.totalorder %v1902, 1
      %vm1935 = vcmp.eq.s32.totalorder %v1903, 1
      %vm1936 = vcmp.eq.s32.totalorder %v1904, 1
      %vm1937 = vcmp.eq.s32.totalorder %v1905, 1
      %vm1938 = vcmp.eq.s32.totalorder %v1906, 1
      %vm1939 = vcmp.eq.s32.totalorder %v1907, 1
      %vm1940 = vcmp.eq.s32.totalorder %v1908, 1
      %vm1941 = vcmp.eq.s32.totalorder %v1909, 1
      %vm1942 = vcmp.eq.s32.totalorder %v1910, 1
      %vm1943 = vcmp.eq.s32.totalorder %v1911, 1
      %vm1944 = vcmp.eq.s32.totalorder %v1912, 1
      %vm1945 = vcmp.eq.s32.totalorder %v1913, 1
      %vm1946 = vcmp.eq.s32.totalorder %v1914, 1
      %vm1947 = vcmp.eq.s32.totalorder %v1915, 1
      %vm1948 = vcmp.eq.s32.totalorder %v1916, 1
      %vm1949 = vcmp.eq.s32.totalorder %v1917, 1
      %v1950 = vsel %vm1918, %v1851, %v1795
      %v1951 = vsel %vm1919, %v1853, %v1797
      %v1952 = vsel %vm1920, %v1791, %v1799
      %v1953 = vsel %vm1921, %v1793, %v1801
      %v1954 = vsel %vm1922, %v1795, %v1803
      %v1955 = vsel %vm1923, %v1797, %v1805
      %v1956 = vsel %vm1924, %v1799, %v1807
      %v1957 = vsel %vm1925, %v1801, %v1809
      %v1958 = vsel %vm1926, %v1803, %v1811
      %v1959 = vsel %vm1927, %v1805, %v1813
      %v1960 = vsel %vm1928, %v1807, %v1815
      %v1961 = vsel %vm1929, %v1809, %v1817
      %v1962 = vsel %vm1930, %v1811, %v1819
      %v1963 = vsel %vm1931, %v1813, %v1821
      %v1964 = vsel %vm1932, %v1815, %v1823
      %v1965 = vsel %vm1933, %v1817, %v1825
      %v1966 = vsel %vm1934, %v1819, %v1827
      %v1967 = vsel %vm1935, %v1821, %v1829
      %v1968 = vsel %vm1936, %v1823, %v1831
      %v1969 = vsel %vm1937, %v1825, %v1833
      %v1970 = vsel %vm1938, %v1827, %v1835
      %v1971 = vsel %vm1939, %v1829, %v1837
      %v1972 = vsel %vm1940, %v1831, %v1839
      %v1973 = vsel %vm1941, %v1833, %v1841
      %v1974 = vsel %vm1942, %v1835, %v1843
      %v1975 = vsel %vm1943, %v1837, %v1845
      %v1976 = vsel %vm1944, %v1839, %v1847
      %v1977 = vsel %vm1945, %v1841, %v1849
      %v1978 = vsel %vm1946, %v1843, %v1851
      %v1979 = vsel %vm1947, %v1845, %v1853
      %v1980 = vsel %vm1948, %v1847, %v1791
      %v1981 = vsel %vm1949, %v1849, %v1793
      %v1982 = vld [vmem:[%s2] sm:$0x1]
      %v1984 = vperm.slane %v1982, 0
      %v1986 = vadd.f32 %v1984, %v1726
      %v1987 = vadd.f32 %v1984, %v1727
      %v1988 = vadd.f32 %v1984, %v1728
      %v1989 = vadd.f32 %v1984, %v1729
      %v1990 = vadd.f32 %v1984, %v1730
      %v1991 = vadd.f32 %v1984, %v1731
      %v1992 = vadd.f32 %v1984, %v1732
      %v1993 = vadd.f32 %v1984, %v1733
      %v1994 = vadd.f32 %v1984, %v1734
      %v1995 = vadd.f32 %v1984, %v1735
      %v1996 = vadd.f32 %v1984, %v1736
      %v1997 = vadd.f32 %v1984, %v1737
      %v1998 = vadd.f32 %v1984, %v1738
      %v1999 = vadd.f32 %v1984, %v1739
      %v2000 = vadd.f32 %v1984, %v1740
      %v2001 = vadd.f32 %v1984, %v1741
      %v2002 = vadd.f32 %v1984, %v1742
      %v2003 = vadd.f32 %v1984, %v1743
      %v2004 = vadd.f32 %v1984, %v1744
      %v2005 = vadd.f32 %v1984, %v1745
      %v2006 = vadd.f32 %v1984, %v1746
      %v2007 = vadd.f32 %v1984, %v1747
      %v2008 = vadd.f32 %v1984, %v1748
      %v2009 = vadd.f32 %v1984, %v1749
      %v2010 = vadd.f32 %v1984, %v1750
      %v2011 = vadd.f32 %v1984, %v1751
      %v2012 = vadd.f32 %v1984, %v1752
      %v2013 = vadd.f32 %v1984, %v1753
      %v2014 = vadd.f32 %v1984, %v1754
      %v2015 = vadd.f32 %v1984, %v1755
      %v2016 = vadd.f32 %v1984, %v1756
      %v2017 = vadd.f32 %v1984, %v1757
      %2018 = vrot.lane.b32.xlu0 %v1567, 124
      %v2019 = vpop.permute.xlu0 %2018
      %2020 = vrot.lane.b32.xlu0 %v1570, 124
      %v2021 = vpop.permute.xlu0 %2020
      %2022 = vrot.lane.b32.xlu0 %v1573, 124
      %v2023 = vpop.permute.xlu0 %2022
      %2024 = vrot.lane.b32.xlu0 %v1576, 124
      %v2025 = vpop.permute.xlu0 %2024
      %2026 = vrot.lane.b32.xlu0 %v1579, 124
      %v2027 = vpop.permute.xlu0 %2026
      %2028 = vrot.lane.b32.xlu0 %v1582, 124
      %v2029 = vpop.permute.xlu0 %2028
      %2030 = vrot.lane.b32.xlu0 %v1585, 124
      %v2031 = vpop.permute.xlu0 %2030
      %2032 = vrot.lane.b32.xlu0 %v1588, 124
      %v2033 = vpop.permute.xlu0 %2032
      %2034 = vrot.lane.b32.xlu0 %v1591, 124
      %v2035 = vpop.permute.xlu0 %2034
      %2036 = vrot.lane.b32.xlu0 %v1594, 124
      %v2037 = vpop.permute.xlu0 %2036
      %2038 = vrot.lane.b32.xlu0 %v1597, 124
      %v2039 = vpop.permute.xlu0 %2038
      %2040 = vrot.lane.b32.xlu0 %v1600, 124
      %v2041 = vpop.permute.xlu0 %2040
      %2042 = vrot.lane.b32.xlu0 %v1603, 124
      %v2043 = vpop.permute.xlu0 %2042
      %2044 = vrot.lane.b32.xlu0 %v1606, 124
      %v2045 = vpop.permute.xlu0 %2044
      %2046 = vrot.lane.b32.xlu0 %v1609, 124
      %v2047 = vpop.permute.xlu0 %2046
      %2048 = vrot.lane.b32.xlu0 %v1612, 124
      %v2049 = vpop.permute.xlu0 %2048
      %2050 = vrot.lane.b32.xlu0 %v1615, 124
      %v2051 = vpop.permute.xlu0 %2050
      %2052 = vrot.lane.b32.xlu0 %v1618, 124
      %v2053 = vpop.permute.xlu0 %2052
      %2054 = vrot.lane.b32.xlu0 %v1621, 124
      %v2055 = vpop.permute.xlu0 %2054
      %2056 = vrot.lane.b32.xlu0 %v1624, 124
      %v2057 = vpop.permute.xlu0 %2056
      %2058 = vrot.lane.b32.xlu0 %v1627, 124
      %v2059 = vpop.permute.xlu0 %2058
      %2060 = vrot.lane.b32.xlu0 %v1630, 124
      %v2061 = vpop.permute.xlu0 %2060
      %2062 = vrot.lane.b32.xlu0 %v1633, 124
      %v2063 = vpop.permute.xlu0 %2062
      %2064 = vrot.lane.b32.xlu0 %v1636, 124
      %v2065 = vpop.permute.xlu0 %2064
      %2066 = vrot.lane.b32.xlu0 %v1639, 124
      %v2067 = vpop.permute.xlu0 %2066
      %2068 = vrot.lane.b32.xlu0 %v1642, 124
      %v2069 = vpop.permute.xlu0 %2068
      %2070 = vrot.lane.b32.xlu0 %v1645, 124
      %v2071 = vpop.permute.xlu0 %2070
      %2072 = vrot.lane.b32.xlu0 %v1648, 124
      %v2073 = vpop.permute.xlu0 %2072
      %2074 = vrot.lane.b32.xlu0 %v1651, 124
      %v2075 = vpop.permute.xlu0 %2074
      %2076 = vrot.lane.b32.xlu0 %v1654, 124
      %v2077 = vpop.permute.xlu0 %2076
      %2078 = vrot.lane.b32.xlu0 %v1657, 124
      %v2079 = vpop.permute.xlu0 %2078
      %2080 = vrot.lane.b32.xlu0 %v1660, 124
      %v2081 = vpop.permute.xlu0 %2080
      %v2114 = vadd.f32 %v1986, %v2019
      %v2115 = vadd.f32 %v1987, %v2021
      %v2116 = vadd.f32 %v1988, %v2023
      %v2117 = vadd.f32 %v1989, %v2025
      %v2118 = vadd.f32 %v1990, %v2027
      %v2119 = vadd.f32 %v1991, %v2029
      %v2120 = vadd.f32 %v1992, %v2031
      %v2121 = vadd.f32 %v1993, %v2033
      %v2122 = vadd.f32 %v1994, %v2035
      %v2123 = vadd.f32 %v1995, %v2037
      %v2124 = vadd.f32 %v1996, %v2039
      %v2125 = vadd.f32 %v1997, %v2041
      %v2126 = vadd.f32 %v1998, %v2043
      %v2127 = vadd.f32 %v1999, %v2045
      %v2128 = vadd.f32 %v2000, %v2047
      %v2129 = vadd.f32 %v2001, %v2049
      %v2130 = vadd.f32 %v2002, %v2051
      %v2131 = vadd.f32 %v2003, %v2053
      %v2132 = vadd.f32 %v2004, %v2055
      %v2133 = vadd.f32 %v2005, %v2057
      %v2134 = vadd.f32 %v2006, %v2059
      %v2135 = vadd.f32 %v2007, %v2061
      %v2136 = vadd.f32 %v2008, %v2063
      %v2137 = vadd.f32 %v2009, %v2065
      %v2138 = vadd.f32 %v2010, %v2067
      %v2139 = vadd.f32 %v2011, %v2069
      %v2140 = vadd.f32 %v2012, %v2071
      %v2141 = vadd.f32 %v2013, %v2073
      %v2142 = vadd.f32 %v2014, %v2075
      %v2143 = vadd.f32 %v2015, %v2077
      %v2144 = vadd.f32 %v2016, %v2079
      %v2145 = vadd.f32 %v2017, %v2081
      %v2146 = vadd.f32 %v2114, %v1950
      %v2147 = vadd.f32 %v2115, %v1951
      %v2148 = vadd.f32 %v2116, %v1952
      %v2149 = vadd.f32 %v2117, %v1953
      %v2150 = vadd.f32 %v2118, %v1954
      %v2151 = vadd.f32 %v2119, %v1955
      %v2152 = vadd.f32 %v2120, %v1956
      %v2153 = vadd.f32 %v2121, %v1957
      %v2154 = vadd.f32 %v2122, %v1958
      %v2155 = vadd.f32 %v2123, %v1959
      %v2156 = vadd.f32 %v2124, %v1960
      %v2157 = vadd.f32 %v2125, %v1961
      %v2158 = vadd.f32 %v2126, %v1962
      %v2159 = vadd.f32 %v2127, %v1963
      %v2160 = vadd.f32 %v2128, %v1964
      %v2161 = vadd.f32 %v2129, %v1965
      %v2162 = vadd.f32 %v2130, %v1966
      %v2163 = vadd.f32 %v2131, %v1967
      %v2164 = vadd.f32 %v2132, %v1968
      %v2165 = vadd.f32 %v2133, %v1969
      %v2166 = vadd.f32 %v2134, %v1970
      %v2167 = vadd.f32 %v2135, %v1971
      %v2168 = vadd.f32 %v2136, %v1972
      %v2169 = vadd.f32 %v2137, %v1973
      %v2170 = vadd.f32 %v2138, %v1974
      %v2171 = vadd.f32 %v2139, %v1975
      %v2172 = vadd.f32 %v2140, %v1976
      %v2173 = vadd.f32 %v2141, %v1977
      %v2174 = vadd.f32 %v2142, %v1978
      %v2175 = vadd.f32 %v2143, %v1979
      %v2176 = vadd.f32 %v2144, %v1980
      %v2177 = vadd.f32 %v2145, %v1981
      %v2178 = vsel %vm1380, %v2146, 0.0
      %v2179 = vsel %vm1380, %v2147, 0.0
      %v2180 = vadd.f32 %v2178, %v2179
      %v2181 = vsel %vm1380, %v2148, 0.0
      %v2182 = vadd.f32 %v2180, %v2181
      %v2183 = vsel %vm1380, %v2149, 0.0
      %v2184 = vadd.f32 %v2182, %v2183
      %v2185 = vsel %vm1380, %v2150, 0.0
      %v2186 = vadd.f32 %v2184, %v2185
      %v2187 = vsel %vm1380, %v2151, 0.0
      %v2188 = vadd.f32 %v2186, %v2187
      %v2189 = vsel %vm1380, %v2152, 0.0
      %v2190 = vadd.f32 %v2188, %v2189
      %v2191 = vsel %vm1380, %v2153, 0.0
      %v2192 = vadd.f32 %v2190, %v2191
      %v2193 = vsel %vm1380, %v2154, 0.0
      %v2194 = vadd.f32 %v2192, %v2193
      %v2195 = vsel %vm1380, %v2155, 0.0
      %v2196 = vadd.f32 %v2194, %v2195
      %v2197 = vsel %vm1380, %v2156, 0.0
      %v2198 = vadd.f32 %v2196, %v2197
      %v2199 = vsel %vm1380, %v2157, 0.0
      %v2200 = vadd.f32 %v2198, %v2199
      %v2201 = vsel %vm1380, %v2158, 0.0
      %v2202 = vadd.f32 %v2200, %v2201
      %v2203 = vsel %vm1380, %v2159, 0.0
      %v2204 = vadd.f32 %v2202, %v2203
      %v2205 = vsel %vm1380, %v2160, 0.0
      %v2206 = vadd.f32 %v2204, %v2205
      %v2207 = vsel %vm1380, %v2161, 0.0
      %v2208 = vadd.f32 %v2206, %v2207
      %v2209 = vsel %vm1380, %v2162, 0.0
      %v2210 = vadd.f32 %v2208, %v2209
      %v2211 = vsel %vm1380, %v2163, 0.0
      %v2212 = vadd.f32 %v2210, %v2211
      %v2213 = vsel %vm1380, %v2164, 0.0
      %v2214 = vadd.f32 %v2212, %v2213
      %v2215 = vsel %vm1380, %v2165, 0.0
      %v2216 = vadd.f32 %v2214, %v2215
      %v2217 = vsel %vm1380, %v2166, 0.0
      %v2218 = vadd.f32 %v2216, %v2217
      %v2219 = vsel %vm1380, %v2167, 0.0
      %v2220 = vadd.f32 %v2218, %v2219
      %v2221 = vsel %vm1380, %v2168, 0.0
      %v2222 = vadd.f32 %v2220, %v2221
      %v2223 = vsel %vm1380, %v2169, 0.0
      %v2224 = vadd.f32 %v2222, %v2223
      %v2225 = vsel %vm1380, %v2170, 0.0
      %v2226 = vadd.f32 %v2224, %v2225
      %v2227 = vsel %vm1380, %v2171, 0.0
      %v2228 = vadd.f32 %v2226, %v2227
      %v2229 = vsel %vm1380, %v2172, 0.0
      %v2230 = vadd.f32 %v2228, %v2229
      %v2231 = vsel %vm1380, %v2173, 0.0
      %v2232 = vadd.f32 %v2230, %v2231
      %v2233 = vsel %vm1380, %v2174, 0.0
      %v2234 = vadd.f32 %v2232, %v2233
      %v2235 = vsel %vm1380, %v2175, 0.0
      %v2236 = vadd.f32 %v2234, %v2235
      %v2237 = vsel %vm1380, %v2176, 0.0
      %v2238 = vadd.f32 %v2236, %v2237
      %v2239 = vsel %vm1380, %v2177, 0.0
      %v2240 = vadd.f32 %v2238, %v2239
      %v2241 = vrot.slane %v2240, 4
      %v2242 = vadd.f32 %v2240, %v2241
      %v2243 = vrot.slane %v2242, 2
      %v2244 = vadd.f32 %v2242, %v2243
      %v2245 = vrot.slane %v2244, 1
      %v2246 = vadd.f32 %v2244, %v2245
      %v2247 = vmul.f32 %v2246, 0.00390625
      %v2248 = vsub.f32 %v2146, %v2247
      %v2249 = vsub.f32 %v2147, %v2247
      %v2250 = vsub.f32 %v2148, %v2247
      %v2251 = vsub.f32 %v2149, %v2247
      %v2252 = vsub.f32 %v2150, %v2247
      %v2253 = vsub.f32 %v2151, %v2247
      %v2254 = vsub.f32 %v2152, %v2247
      %v2255 = vsub.f32 %v2153, %v2247
      %v2256 = vsub.f32 %v2154, %v2247
      %v2257 = vsub.f32 %v2155, %v2247
      %v2258 = vsub.f32 %v2156, %v2247
      %v2259 = vsub.f32 %v2157, %v2247
      %v2260 = vsub.f32 %v2158, %v2247
      %v2261 = vsub.f32 %v2159, %v2247
      %v2262 = vsub.f32 %v2160, %v2247
      %v2263 = vsub.f32 %v2161, %v2247
      %v2264 = vsub.f32 %v2162, %v2247
      %v2265 = vsub.f32 %v2163, %v2247
      %v2266 = vsub.f32 %v2164, %v2247
      %v2267 = vsub.f32 %v2165, %v2247
      %v2268 = vsub.f32 %v2166, %v2247
      %v2269 = vsub.f32 %v2167, %v2247
      %v2270 = vsub.f32 %v2168, %v2247
      %v2271 = vsub.f32 %v2169, %v2247
      %v2272 = vsub.f32 %v2170, %v2247
      %v2273 = vsub.f32 %v2171, %v2247
      %v2274 = vsub.f32 %v2172, %v2247
      %v2275 = vsub.f32 %v2173, %v2247
      %v2276 = vsub.f32 %v2174, %v2247
      %v2277 = vsub.f32 %v2175, %v2247
      %v2278 = vsub.f32 %v2176, %v2247
      %v2279 = vsub.f32 %v2177, %v2247
      %v2280 = vmul.f32 %v2248, %v2248
      %v2281 = vmul.f32 %v2249, %v2249
      %v2282 = vmul.f32 %v2250, %v2250
      %v2283 = vmul.f32 %v2251, %v2251
      %v2284 = vmul.f32 %v2252, %v2252
      %v2285 = vmul.f32 %v2253, %v2253
      %v2286 = vmul.f32 %v2254, %v2254
      %v2287 = vmul.f32 %v2255, %v2255
      %v2288 = vmul.f32 %v2256, %v2256
      %v2289 = vmul.f32 %v2257, %v2257
      %v2290 = vmul.f32 %v2258, %v2258
      %v2291 = vmul.f32 %v2259, %v2259
      %v2292 = vmul.f32 %v2260, %v2260
      %v2293 = vmul.f32 %v2261, %v2261
      %v2294 = vmul.f32 %v2262, %v2262
      %v2295 = vmul.f32 %v2263, %v2263
      %v2296 = vmul.f32 %v2264, %v2264
      %v2297 = vmul.f32 %v2265, %v2265
      %v2298 = vmul.f32 %v2266, %v2266
      %v2299 = vmul.f32 %v2267, %v2267
      %v2300 = vmul.f32 %v2268, %v2268
      %v2301 = vmul.f32 %v2269, %v2269
      %v2302 = vmul.f32 %v2270, %v2270
      %v2303 = vmul.f32 %v2271, %v2271
      %v2304 = vmul.f32 %v2272, %v2272
      %v2305 = vmul.f32 %v2273, %v2273
      %v2306 = vmul.f32 %v2274, %v2274
      %v2307 = vmul.f32 %v2275, %v2275
      %v2308 = vmul.f32 %v2276, %v2276
      %v2309 = vmul.f32 %v2277, %v2277
      %v2310 = vmul.f32 %v2278, %v2278
      %v2311 = vmul.f32 %v2279, %v2279
      %v2312 = vsel %vm1380, %v2280, 0.0
      %v2313 = vsel %vm1380, %v2281, 0.0
      %v2314 = vadd.f32 %v2312, %v2313
      %v2315 = vsel %vm1380, %v2282, 0.0
      %v2316 = vadd.f32 %v2314, %v2315
      %v2317 = vsel %vm1380, %v2283, 0.0
      %v2318 = vadd.f32 %v2316, %v2317
      %v2319 = vsel %vm1380, %v2284, 0.0
      %v2320 = vadd.f32 %v2318, %v2319
      %v2321 = vsel %vm1380, %v2285, 0.0
      %v2322 = vadd.f32 %v2320, %v2321
      %v2323 = vsel %vm1380, %v2286, 0.0
      %v2324 = vadd.f32 %v2322, %v2323
      %v2325 = vsel %vm1380, %v2287, 0.0
      %v2326 = vadd.f32 %v2324, %v2325
      %v2327 = vsel %vm1380, %v2288, 0.0
      %v2328 = vadd.f32 %v2326, %v2327
      %v2329 = vsel %vm1380, %v2289, 0.0
      %v2330 = vadd.f32 %v2328, %v2329
      %v2331 = vsel %vm1380, %v2290, 0.0
      %v2332 = vadd.f32 %v2330, %v2331
      %v2333 = vsel %vm1380, %v2291, 0.0
      %v2334 = vadd.f32 %v2332, %v2333
      %v2335 = vsel %vm1380, %v2292, 0.0
      %v2336 = vadd.f32 %v2334, %v2335
      %v2337 = vsel %vm1380, %v2293, 0.0
      %v2338 = vadd.f32 %v2336, %v2337
      %v2339 = vsel %vm1380, %v2294, 0.0
      %v2340 = vadd.f32 %v2338, %v2339
      %v2341 = vsel %vm1380, %v2295, 0.0
      %v2342 = vadd.f32 %v2340, %v2341
      %v2343 = vsel %vm1380, %v2296, 0.0
      %v2344 = vadd.f32 %v2342, %v2343
      %v2345 = vsel %vm1380, %v2297, 0.0
      %v2346 = vadd.f32 %v2344, %v2345
      %v2347 = vsel %vm1380, %v2298, 0.0
      %v2348 = vadd.f32 %v2346, %v2347
      %v2349 = vsel %vm1380, %v2299, 0.0
      %v2350 = vadd.f32 %v2348, %v2349
      %v2351 = vsel %vm1380, %v2300, 0.0
      %v2352 = vadd.f32 %v2350, %v2351
      %v2353 = vsel %vm1380, %v2301, 0.0
      %v2354 = vadd.f32 %v2352, %v2353
      %v2355 = vsel %vm1380, %v2302, 0.0
      %v2356 = vadd.f32 %v2354, %v2355
      %v2357 = vsel %vm1380, %v2303, 0.0
      %v2358 = vadd.f32 %v2356, %v2357
      %v2359 = vsel %vm1380, %v2304, 0.0
      %v2360 = vadd.f32 %v2358, %v2359
      %v2361 = vsel %vm1380, %v2305, 0.0
      %v2362 = vadd.f32 %v2360, %v2361
      %v2363 = vsel %vm1380, %v2306, 0.0
      %v2364 = vadd.f32 %v2362, %v2363
      %v2365 = vsel %vm1380, %v2307, 0.0
      %v2366 = vadd.f32 %v2364, %v2365
      %v2367 = vsel %vm1380, %v2308, 0.0
      %v2368 = vadd.f32 %v2366, %v2367
      %v2369 = vsel %vm1380, %v2309, 0.0
      %v2370 = vadd.f32 %v2368, %v2369
      %v2371 = vsel %vm1380, %v2310, 0.0
      %v2372 = vadd.f32 %v2370, %v2371
      %v2373 = vsel %vm1380, %v2311, 0.0
      %v2374 = vadd.f32 %v2372, %v2373
      %v2375 = vrot.slane %v2374, 4
      %v2376 = vadd.f32 %v2374, %v2375
      %v2377 = vrot.slane %v2376, 2
      %v2378 = vadd.f32 %v2376, %v2377
      %v2379 = vrot.slane %v2378, 1
      %v2380 = vadd.f32 %v2378, %v2379
      %v2381 = vmul.f32 %v2380, 0.00390625
      %v2382 = vadd.f32 %v2381, 1e-05
      %v2383 = vrsqrt.pop %v2382
      %v2384 = vmul.f32 %v2383, %v2382
      %v2385 = vmul.f32 %v2384, %v2383
      %v2386 = vmul.f32 0.5, %v2385
      %v2387 = vsub.f32 1.5, %v2386
      %v2388 = vmul.f32 %v2383, %v2387
      %vm2389 = vweird.f32 %v2382
      %vm2390 = vweird.f32 %v2383
      %vm2391 = vmor %vm2389, %vm2390
      %v2392 = vsel %vm2391, %v2383, %v2388
      %v2393 = vmul.f32 %v2248, %v2392
      %v2394 = vmul.f32 %v2249, %v2392
      %v2395 = vmul.f32 %v2250, %v2392
      %v2396 = vmul.f32 %v2251, %v2392
      %v2397 = vmul.f32 %v2252, %v2392
      %v2398 = vmul.f32 %v2253, %v2392
      %v2399 = vmul.f32 %v2254, %v2392
      %v2400 = vmul.f32 %v2255, %v2392
      %v2401 = vmul.f32 %v2256, %v2392
      %v2402 = vmul.f32 %v2257, %v2392
      %v2403 = vmul.f32 %v2258, %v2392
      %v2404 = vmul.f32 %v2259, %v2392
      %v2405 = vmul.f32 %v2260, %v2392
      %v2406 = vmul.f32 %v2261, %v2392
      %v2407 = vmul.f32 %v2262, %v2392
      %v2408 = vmul.f32 %v2263, %v2392
      %v2409 = vmul.f32 %v2264, %v2392
      %v2410 = vmul.f32 %v2265, %v2392
      %v2411 = vmul.f32 %v2266, %v2392
      %v2412 = vmul.f32 %v2267, %v2392
      %v2413 = vmul.f32 %v2268, %v2392
      %v2414 = vmul.f32 %v2269, %v2392
      %v2415 = vmul.f32 %v2270, %v2392
      %v2416 = vmul.f32 %v2271, %v2392
      %v2417 = vmul.f32 %v2272, %v2392
      %v2418 = vmul.f32 %v2273, %v2392
      %v2419 = vmul.f32 %v2274, %v2392
      %v2420 = vmul.f32 %v2275, %v2392
      %v2421 = vmul.f32 %v2276, %v2392
      %v2422 = vmul.f32 %v2277, %v2392
      %v2423 = vmul.f32 %v2278, %v2392
      %v2424 = vmul.f32 %v2279, %v2392
      %v2425 = vmax.f32 %v2393, 0.0
      %v2426 = vmax.f32 %v2394, 0.0
      %v2427 = vmax.f32 %v2395, 0.0
      %v2428 = vmax.f32 %v2396, 0.0
      %v2429 = vmax.f32 %v2397, 0.0
      %v2430 = vmax.f32 %v2398, 0.0
      %v2431 = vmax.f32 %v2399, 0.0
      %v2432 = vmax.f32 %v2400, 0.0
      %v2433 = vmax.f32 %v2401, 0.0
      %v2434 = vmax.f32 %v2402, 0.0
      %v2435 = vmax.f32 %v2403, 0.0
      %v2436 = vmax.f32 %v2404, 0.0
      %v2437 = vmax.f32 %v2405, 0.0
      %v2438 = vmax.f32 %v2406, 0.0
      %v2439 = vmax.f32 %v2407, 0.0
      %v2440 = vmax.f32 %v2408, 0.0
      %v2441 = vmax.f32 %v2409, 0.0
      %v2442 = vmax.f32 %v2410, 0.0
      %v2443 = vmax.f32 %v2411, 0.0
      %v2444 = vmax.f32 %v2412, 0.0
      %v2445 = vmax.f32 %v2413, 0.0
      %v2446 = vmax.f32 %v2414, 0.0
      %v2447 = vmax.f32 %v2415, 0.0
      %v2448 = vmax.f32 %v2416, 0.0
      %v2449 = vmax.f32 %v2417, 0.0
      %v2450 = vmax.f32 %v2418, 0.0
      %v2451 = vmax.f32 %v2419, 0.0
      %v2452 = vmax.f32 %v2420, 0.0
      %v2453 = vmax.f32 %v2421, 0.0
      %v2454 = vmax.f32 %v2422, 0.0
      %v2455 = vmax.f32 %v2423, 0.0
      %v2456 = vmax.f32 %v2424, 0.0
      %v2457 = vrot.slane %v2425, 7
      %v2458 = vrot.slane %v2426, 7
      %v2459 = vrot.slane %v2427, 7
      %v2460 = vrot.slane %v2428, 7
      %v2461 = vrot.slane %v2429, 7
      %v2462 = vrot.slane %v2430, 7
      %v2463 = vrot.slane %v2431, 7
      %v2464 = vrot.slane %v2432, 7
      %v2465 = vrot.slane %v2433, 7
      %v2466 = vrot.slane %v2434, 7
      %v2467 = vrot.slane %v2435, 7
      %v2468 = vrot.slane %v2436, 7
      %v2469 = vrot.slane %v2437, 7
      %v2470 = vrot.slane %v2438, 7
      %v2471 = vrot.slane %v2439, 7
      %v2472 = vrot.slane %v2440, 7
      %v2473 = vrot.slane %v2441, 7
      %v2474 = vrot.slane %v2442, 7
      %v2475 = vrot.slane %v2443, 7
      %v2476 = vrot.slane %v2444, 7
      %v2477 = vrot.slane %v2445, 7
      %v2478 = vrot.slane %v2446, 7
      %v2479 = vrot.slane %v2447, 7
      %v2480 = vrot.slane %v2448, 7
      %v2481 = vrot.slane %v2449, 7
      %v2482 = vrot.slane %v2450, 7
      %v2483 = vrot.slane %v2451, 7
      %v2484 = vrot.slane %v2452, 7
      %v2485 = vrot.slane %v2453, 7
      %v2486 = vrot.slane %v2454, 7
      %v2487 = vrot.slane %v2455, 7
      %v2488 = vrot.slane %v2456, 7
      %v2489 = vsel %vm834, %v2487, %v2488
      %v2490 = vsel %vm834, %v2486, %v2487
      %v2491 = vsel %vm834, %v2485, %v2486
      %v2492 = vsel %vm834, %v2484, %v2485
      %v2493 = vsel %vm834, %v2483, %v2484
      %v2494 = vsel %vm834, %v2482, %v2483
      %v2495 = vsel %vm834, %v2481, %v2482
      %v2496 = vsel %vm834, %v2480, %v2481
      %v2497 = vsel %vm834, %v2479, %v2480
      %v2498 = vsel %vm834, %v2478, %v2479
      %v2499 = vsel %vm834, %v2477, %v2478
      %v2500 = vsel %vm834, %v2476, %v2477
      %v2501 = vsel %vm834, %v2475, %v2476
      %v2502 = vsel %vm834, %v2474, %v2475
      %v2503 = vsel %vm834, %v2473, %v2474
      %v2504 = vsel %vm834, %v2472, %v2473
      %v2505 = vsel %vm834, %v2471, %v2472
      %v2506 = vsel %vm834, %v2470, %v2471
      %v2507 = vsel %vm834, %v2469, %v2470
      %v2508 = vsel %vm834, %v2468, %v2469
      %v2509 = vsel %vm834, %v2467, %v2468
      %v2510 = vsel %vm834, %v2466, %v2467
      %v2511 = vsel %vm834, %v2465, %v2466
      %v2512 = vsel %vm834, %v2464, %v2465
      %v2513 = vsel %vm834, %v2463, %v2464
      %v2514 = vsel %vm834, %v2462, %v2463
      %v2515 = vsel %vm834, %v2461, %v2462
      %v2516 = vsel %vm834, %v2460, %v2461
      %v2517 = vsel %vm834, %v2459, %v2460
      %v2518 = vsel %vm834, %v2458, %v2459
      %v2519 = vsel %vm834, %v2457, %v2458
      %v2520 = vsel %vm834, %v2488, %v2457
      %v2521 = vrot.slane %v2425, 1
      %v2522 = vrot.slane %v2426, 1
      %v2523 = vrot.slane %v2427, 1
      %v2524 = vrot.slane %v2428, 1
      %v2525 = vrot.slane %v2429, 1
      %v2526 = vrot.slane %v2430, 1
      %v2527 = vrot.slane %v2431, 1
      %v2528 = vrot.slane %v2432, 1
      %v2529 = vrot.slane %v2433, 1
      %v2530 = vrot.slane %v2434, 1
      %v2531 = vrot.slane %v2435, 1
      %v2532 = vrot.slane %v2436, 1
      %v2533 = vrot.slane %v2437, 1
      %v2534 = vrot.slane %v2438, 1
      %v2535 = vrot.slane %v2439, 1
      %v2536 = vrot.slane %v2440, 1
      %v2537 = vrot.slane %v2441, 1
      %v2538 = vrot.slane %v2442, 1
      %v2539 = vrot.slane %v2443, 1
      %v2540 = vrot.slane %v2444, 1
      %v2541 = vrot.slane %v2445, 1
      %v2542 = vrot.slane %v2446, 1
      %v2543 = vrot.slane %v2447, 1
      %v2544 = vrot.slane %v2448, 1
      %v2545 = vrot.slane %v2449, 1
      %v2546 = vrot.slane %v2450, 1
      %v2547 = vrot.slane %v2451, 1
      %v2548 = vrot.slane %v2452, 1
      %v2549 = vrot.slane %v2453, 1
      %v2550 = vrot.slane %v2454, 1
      %v2551 = vrot.slane %v2455, 1
      %v2552 = vrot.slane %v2456, 1
      %v2553 = vsel %vm899, %v2551, %v2552
      %v2554 = vsel %vm899, %v2550, %v2551
      %v2555 = vsel %vm899, %v2549, %v2550
      %v2556 = vsel %vm899, %v2548, %v2549
      %v2557 = vsel %vm899, %v2547, %v2548
      %v2558 = vsel %vm899, %v2546, %v2547
      %v2559 = vsel %vm899, %v2545, %v2546
      %v2560 = vsel %vm899, %v2544, %v2545
      %v2561 = vsel %vm899, %v2543, %v2544
      %v2562 = vsel %vm899, %v2542, %v2543
      %v2563 = vsel %vm899, %v2541, %v2542
      %v2564 = vsel %vm899, %v2540, %v2541
      %v2565 = vsel %vm899, %v2539, %v2540
      %v2566 = vsel %vm899, %v2538, %v2539
      %v2567 = vsel %vm899, %v2537, %v2538
      %v2568 = vsel %vm899, %v2536, %v2537
      %v2569 = vsel %vm899, %v2535, %v2536
      %v2570 = vsel %vm899, %v2534, %v2535
      %v2571 = vsel %vm899, %v2533, %v2534
      %v2572 = vsel %vm899, %v2532, %v2533
      %v2573 = vsel %vm899, %v2531, %v2532
      %v2574 = vsel %vm899, %v2530, %v2531
      %v2575 = vsel %vm899, %v2529, %v2530
      %v2576 = vsel %vm899, %v2528, %v2529
      %v2577 = vsel %vm899, %v2527, %v2528
      %v2578 = vsel %vm899, %v2526, %v2527
      %v2579 = vsel %vm899, %v2525, %v2526
      %v2580 = vsel %vm899, %v2524, %v2525
      %v2581 = vsel %vm899, %v2523, %v2524
      %v2582 = vsel %vm899, %v2522, %v2523
      %v2583 = vsel %vm899, %v2521, %v2522
      %v2584 = vsel %vm899, %v2552, %v2521
      %v2585 = vsel %vm964, %v2583, %v2520
      %v2586 = vsel %vm965, %v2582, %v2519
      %v2587 = vsel %vm966, %v2581, %v2518
      %v2588 = vsel %vm967, %v2580, %v2517
      %v2589 = vsel %vm968, %v2579, %v2516
      %v2590 = vsel %vm969, %v2578, %v2515
      %v2591 = vsel %vm970, %v2577, %v2514
      %v2592 = vsel %vm971, %v2576, %v2513
      %v2593 = vsel %vm972, %v2575, %v2512
      %v2594 = vsel %vm973, %v2574, %v2511
      %v2595 = vsel %vm974, %v2573, %v2510
      %v2596 = vsel %vm975, %v2572, %v2509
      %v2597 = vsel %vm976, %v2571, %v2508
      %v2598 = vsel %vm977, %v2570, %v2507
      %v2599 = vsel %vm978, %v2569, %v2506
      %v2600 = vsel %vm979, %v2568, %v2505
      %v2601 = vsel %vm980, %v2567, %v2504
      %v2602 = vsel %vm981, %v2566, %v2503
      %v2603 = vsel %vm982, %v2565, %v2502
      %v2604 = vsel %vm983, %v2564, %v2501
      %v2605 = vsel %vm984, %v2563, %v2500
      %v2606 = vsel %vm985, %v2562, %v2499
      %v2607 = vsel %vm986, %v2561, %v2498
      %v2608 = vsel %vm987, %v2560, %v2497
      %v2609 = vsel %vm988, %v2559, %v2496
      %v2610 = vsel %vm989, %v2558, %v2495
      %v2611 = vsel %vm990, %v2557, %v2494
      %v2612 = vsel %vm991, %v2556, %v2493
      %v2613 = vsel %vm992, %v2555, %v2492
      %v2614 = vsel %vm993, %v2554, %v2491
      %v2615 = vsel %vm994, %v2553, %v2490
      %v2616 = vsel %vm995, %v2584, %v2489
      %v2617 = vsel %vm1060, %v2520, %v2583
      %v2618 = vsel %vm1061, %v2519, %v2582
      %v2619 = vsel %vm1062, %v2518, %v2581
      %v2620 = vsel %vm1063, %v2517, %v2580
      %v2621 = vsel %vm1064, %v2516, %v2579
      %v2622 = vsel %vm1065, %v2515, %v2578
      %v2623 = vsel %vm1066, %v2514, %v2577
      %v2624 = vsel %vm1067, %v2513, %v2576
      %v2625 = vsel %vm1068, %v2512, %v2575
      %v2626 = vsel %vm1069, %v2511, %v2574
      %v2627 = vsel %vm1070, %v2510, %v2573
      %v2628 = vsel %vm1071, %v2509, %v2572
      %v2629 = vsel %vm1072, %v2508, %v2571
      %v2630 = vsel %vm1073, %v2507, %v2570
      %v2631 = vsel %vm1074, %v2506, %v2569
      %v2632 = vsel %vm1075, %v2505, %v2568
      %v2633 = vsel %vm1076, %v2504, %v2567
      %v2634 = vsel %vm1077, %v2503, %v2566
      %v2635 = vsel %vm1078, %v2502, %v2565
      %v2636 = vsel %vm1079, %v2501, %v2564
      %v2637 = vsel %vm1080, %v2500, %v2563
      %v2638 = vsel %vm1081, %v2499, %v2562
      %v2639 = vsel %vm1082, %v2498, %v2561
      %v2640 = vsel %vm1083, %v2497, %v2560
      %v2641 = vsel %vm1084, %v2496, %v2559
      %v2642 = vsel %vm1085, %v2495, %v2558
      %v2643 = vsel %vm1086, %v2494, %v2557
      %v2644 = vsel %vm1087, %v2493, %v2556
      %v2645 = vsel %vm1088, %v2492, %v2555
      %v2646 = vsel %vm1089, %v2491, %v2554
      %v2647 = vsel %vm1090, %v2490, %v2553
      %v2648 = vsel %vm1091, %v2489, %v2584
      %2681 = vrot.lane.b32.xlu0 %v2425, 4
      %v2682 = vpop.permute.xlu0 %2681
      %2683 = vrot.lane.b32.xlu0 %v2426, 4
      %v2684 = vpop.permute.xlu0 %2683
      %2685 = vrot.lane.b32.xlu0 %v2427, 4
      %v2686 = vpop.permute.xlu0 %2685
      %2687 = vrot.lane.b32.xlu0 %v2428, 4
      %v2688 = vpop.permute.xlu0 %2687
      %2689 = vrot.lane.b32.xlu0 %v2429, 4
      %v2690 = vpop.permute.xlu0 %2689
      %2691 = vrot.lane.b32.xlu0 %v2430, 4
      %v2692 = vpop.permute.xlu0 %2691
      %2693 = vrot.lane.b32.xlu0 %v2431, 4
      %v2694 = vpop.permute.xlu0 %2693
      %2695 = vrot.lane.b32.xlu0 %v2432, 4
      %v2696 = vpop.permute.xlu0 %2695
      %2697 = vrot.lane.b32.xlu0 %v2433, 4
      %v2698 = vpop.permute.xlu0 %2697
      %2699 = vrot.lane.b32.xlu0 %v2434, 4
      %v2700 = vpop.permute.xlu0 %2699
      %2701 = vrot.lane.b32.xlu0 %v2435, 4
      %v2702 = vpop.permute.xlu0 %2701
      %2703 = vrot.lane.b32.xlu0 %v2436, 4
      %v2704 = vpop.permute.xlu0 %2703
      %2705 = vrot.lane.b32.xlu0 %v2437, 4
      %v2706 = vpop.permute.xlu0 %2705
      %2707 = vrot.lane.b32.xlu0 %v2438, 4
      %v2708 = vpop.permute.xlu0 %2707
      %2709 = vrot.lane.b32.xlu0 %v2439, 4
      %v2710 = vpop.permute.xlu0 %2709
      %2711 = vrot.lane.b32.xlu0 %v2440, 4
      %v2712 = vpop.permute.xlu0 %2711
      %2713 = vrot.lane.b32.xlu0 %v2441, 4
      %v2714 = vpop.permute.xlu0 %2713
      %2715 = vrot.lane.b32.xlu0 %v2442, 4
      %v2716 = vpop.permute.xlu0 %2715
      %2717 = vrot.lane.b32.xlu0 %v2443, 4
      %v2718 = vpop.permute.xlu0 %2717
      %2719 = vrot.lane.b32.xlu0 %v2444, 4
      %v2720 = vpop.permute.xlu0 %2719
      %2721 = vrot.lane.b32.xlu0 %v2445, 4
      %v2722 = vpop.permute.xlu0 %2721
      %2723 = vrot.lane.b32.xlu0 %v2446, 4
      %v2724 = vpop.permute.xlu0 %2723
      %2725 = vrot.lane.b32.xlu0 %v2447, 4
      %v2726 = vpop.permute.xlu0 %2725
      %2727 = vrot.lane.b32.xlu0 %v2448, 4
      %v2728 = vpop.permute.xlu0 %2727
      %2729 = vrot.lane.b32.xlu0 %v2449, 4
      %v2730 = vpop.permute.xlu0 %2729
      %2731 = vrot.lane.b32.xlu0 %v2450, 4
      %v2732 = vpop.permute.xlu0 %2731
      %2733 = vrot.lane.b32.xlu0 %v2451, 4
      %v2734 = vpop.permute.xlu0 %2733
      %2735 = vrot.lane.b32.xlu0 %v2452, 4
      %v2736 = vpop.permute.xlu0 %2735
      %2737 = vrot.lane.b32.xlu0 %v2453, 4
      %v2738 = vpop.permute.xlu0 %2737
      %2739 = vrot.lane.b32.xlu0 %v2454, 4
      %v2740 = vpop.permute.xlu0 %2739
      %2741 = vrot.lane.b32.xlu0 %v2455, 4
      %v2742 = vpop.permute.xlu0 %2741
      %2743 = vrot.lane.b32.xlu0 %v2456, 4
      %v2744 = vpop.permute.xlu0 %2743
      %2809 = vrot.lane.b32.xlu0 %v2617, 8
      %v2810 = vpop.permute.xlu0 %2809
      %2811 = vrot.lane.b32.xlu0 %v2618, 8
      %v2812 = vpop.permute.xlu0 %2811
      %2813 = vrot.lane.b32.xlu0 %v2619, 8
      %v2814 = vpop.permute.xlu0 %2813
      %2815 = vrot.lane.b32.xlu0 %v2620, 8
      %v2816 = vpop.permute.xlu0 %2815
      %2817 = vrot.lane.b32.xlu0 %v2621, 8
      %v2818 = vpop.permute.xlu0 %2817
      %2819 = vrot.lane.b32.xlu0 %v2622, 8
      %v2820 = vpop.permute.xlu0 %2819
      %2821 = vrot.lane.b32.xlu0 %v2623, 8
      %v2822 = vpop.permute.xlu0 %2821
      %2823 = vrot.lane.b32.xlu0 %v2624, 8
      %v2824 = vpop.permute.xlu0 %2823
      %2825 = vrot.lane.b32.xlu0 %v2625, 8
      %v2826 = vpop.permute.xlu0 %2825
      %2827 = vrot.lane.b32.xlu0 %v2626, 8
      %v2828 = vpop.permute.xlu0 %2827
      %2829 = vrot.lane.b32.xlu0 %v2627, 8
      %v2830 = vpop.permute.xlu0 %2829
      %2831 = vrot.lane.b32.xlu0 %v2628, 8
      %v2832 = vpop.permute.xlu0 %2831
      %2833 = vrot.lane.b32.xlu0 %v2629, 8
      %v2834 = vpop.permute.xlu0 %2833
      %2835 = vrot.lane.b32.xlu0 %v2630, 8
      %v2836 = vpop.permute.xlu0 %2835
      %2837 = vrot.lane.b32.xlu0 %v2631, 8
      %v2838 = vpop.permute.xlu0 %2837
      %2839 = vrot.lane.b32.xlu0 %v2632, 8
      %v2840 = vpop.permute.xlu0 %2839
      %2841 = vrot.lane.b32.xlu0 %v2633, 8
      %v2842 = vpop.permute.xlu0 %2841
      %2843 = vrot.lane.b32.xlu0 %v2634, 8
      %v2844 = vpop.permute.xlu0 %2843
      %2845 = vrot.lane.b32.xlu0 %v2635, 8
      %v2846 = vpop.permute.xlu0 %2845
      %2847 = vrot.lane.b32.xlu0 %v2636, 8
      %v2848 = vpop.permute.xlu0 %2847
      %2849 = vrot.lane.b32.xlu0 %v2637, 8
      %v2850 = vpop.permute.xlu0 %2849
      %2851 = vrot.lane.b32.xlu0 %v2638, 8
      %v2852 = vpop.permute.xlu0 %2851
      %2853 = vrot.lane.b32.xlu0 %v2639, 8
      %v2854 = vpop.permute.xlu0 %2853
      %2855 = vrot.lane.b32.xlu0 %v2640, 8
      %v2856 = vpop.permute.xlu0 %2855
      %2857 = vrot.lane.b32.xlu0 %v2641, 8
      %v2858 = vpop.permute.xlu0 %2857
      %2859 = vrot.lane.b32.xlu0 %v2642, 8
      %v2860 = vpop.permute.xlu0 %2859
      %2861 = vrot.lane.b32.xlu0 %v2643, 8
      %v2862 = vpop.permute.xlu0 %2861
      %2863 = vrot.lane.b32.xlu0 %v2644, 8
      %v2864 = vpop.permute.xlu0 %2863
      %2865 = vrot.lane.b32.xlu0 %v2645, 8
      %v2866 = vpop.permute.xlu0 %2865
      %2867 = vrot.lane.b32.xlu0 %v2646, 8
      %v2868 = vpop.permute.xlu0 %2867
      %2869 = vrot.lane.b32.xlu0 %v2647, 8
      %v2870 = vpop.permute.xlu0 %2869
      %2871 = vrot.lane.b32.xlu0 %v2648, 8
      %v2872 = vpop.permute.xlu0 %2871
      %v2905 = vsel %vm1380, %v2585, %v2682
      %v2906 = vsel %vm1380, %v2586, %v2684
      %v2907 = vsel %vm1380, %v2587, %v2686
      %v2908 = vsel %vm1380, %v2588, %v2688
      %v2909 = vsel %vm1380, %v2589, %v2690
      %v2910 = vsel %vm1380, %v2590, %v2692
      %v2911 = vsel %vm1380, %v2591, %v2694
      %v2912 = vsel %vm1380, %v2592, %v2696
      %v2913 = vsel %vm1380, %v2593, %v2698
      %v2914 = vsel %vm1380, %v2594, %v2700
      %v2915 = vsel %vm1380, %v2595, %v2702
      %v2916 = vsel %vm1380, %v2596, %v2704
      %v2917 = vsel %vm1380, %v2597, %v2706
      %v2918 = vsel %vm1380, %v2598, %v2708
      %v2919 = vsel %vm1380, %v2599, %v2710
      %v2920 = vsel %vm1380, %v2600, %v2712
      %v2921 = vsel %vm1380, %v2601, %v2714
      %v2922 = vsel %vm1380, %v2602, %v2716
      %v2923 = vsel %vm1380, %v2603, %v2718
      %v2924 = vsel %vm1380, %v2604, %v2720
      %v2925 = vsel %vm1380, %v2605, %v2722
      %v2926 = vsel %vm1380, %v2606, %v2724
      %v2927 = vsel %vm1380, %v2607, %v2726
      %v2928 = vsel %vm1380, %v2608, %v2728
      %v2929 = vsel %vm1380, %v2609, %v2730
      %v2930 = vsel %vm1380, %v2610, %v2732
      %v2931 = vsel %vm1380, %v2611, %v2734
      %v2932 = vsel %vm1380, %v2612, %v2736
      %v2933 = vsel %vm1380, %v2613, %v2738
      %v2934 = vsel %vm1380, %v2614, %v2740
      %v2935 = vsel %vm1380, %v2615, %v2742
      %v2936 = vsel %vm1380, %v2616, %v2744
      %v2937 = vsel %vm1413, %v2905, %v2810
      %v2938 = vsel %vm1413, %v2906, %v2812
      %v2939 = vsel %vm1413, %v2907, %v2814
      %v2940 = vsel %vm1413, %v2908, %v2816
      %v2941 = vsel %vm1413, %v2909, %v2818
      %v2942 = vsel %vm1413, %v2910, %v2820
      %v2943 = vsel %vm1413, %v2911, %v2822
      %v2944 = vsel %vm1413, %v2912, %v2824
      %v2945 = vsel %vm1413, %v2913, %v2826
      %v2946 = vsel %vm1413, %v2914, %v2828
      %v2947 = vsel %vm1413, %v2915, %v2830
      %v2948 = vsel %vm1413, %v2916, %v2832
      %v2949 = vsel %vm1413, %v2917, %v2834
      %v2950 = vsel %vm1413, %v2918, %v2836
      %v2951 = vsel %vm1413, %v2919, %v2838
      %v2952 = vsel %vm1413, %v2920, %v2840
      %v2953 = vsel %vm1413, %v2921, %v2842
      %v2954 = vsel %vm1413, %v2922, %v2844
      %v2955 = vsel %vm1413, %v2923, %v2846
      %v2956 = vsel %vm1413, %v2924, %v2848
      %v2957 = vsel %vm1413, %v2925, %v2850
      %v2958 = vsel %vm1413, %v2926, %v2852
      %v2959 = vsel %vm1413, %v2927, %v2854
      %v2960 = vsel %vm1413, %v2928, %v2856
      %v2961 = vsel %vm1413, %v2929, %v2858
      %v2962 = vsel %vm1413, %v2930, %v2860
      %v2963 = vsel %vm1413, %v2931, %v2862
      %v2964 = vsel %vm1413, %v2932, %v2864
      %v2965 = vsel %vm1413, %v2933, %v2866
      %v2966 = vsel %vm1413, %v2934, %v2868
      %v2967 = vsel %vm1413, %v2935, %v2870
      %v2968 = vsel %vm1413, %v2936, %v2872
      %v2969 = vld [vmem:[%s3] sm:$0xff]
      %v2970 = vld [vmem:[%s3 + $0x8] sm:$0xf]
      %v2972 = vsel %vm1448, %v2937, 0
      %v2975 = vsel %vm1448, %v2938, 0
      %v2978 = vsel %vm1448, %v2939, 0
      %v2981 = vsel %vm1448, %v2940, 0
      %v2984 = vsel %vm1448, %v2941, 0
      %v2987 = vsel %vm1448, %v2942, 0
      %v2990 = vsel %vm1448, %v2943, 0
      %v2993 = vsel %vm1448, %v2944, 0
      %v2996 = vsel %vm1448, %v2945, 0
      %v2999 = vsel %vm1448, %v2946, 0
      %v3002 = vsel %vm1448, %v2947, 0
      %v3005 = vsel %vm1448, %v2948, 0
      %v3008 = vsel %vm1448, %v2949, 0
      %v3011 = vsel %vm1448, %v2950, 0
      %v3014 = vsel %vm1448, %v2951, 0
      %v3017 = vsel %vm1448, %v2952, 0
      %v3020 = vsel %vm1448, %v2953, 0
      %v3023 = vsel %vm1448, %v2954, 0
      %v3026 = vsel %vm1448, %v2955, 0
      %v3029 = vsel %vm1448, %v2956, 0
      %v3032 = vsel %vm1448, %v2957, 0
      %v3035 = vsel %vm1448, %v2958, 0
      %v3038 = vsel %vm1448, %v2959, 0
      %v3041 = vsel %vm1448, %v2960, 0
      %v3044 = vsel %vm1448, %v2961, 0
      %v3047 = vsel %vm1448, %v2962, 0
      %v3050 = vsel %vm1448, %v2963, 0
      %v3053 = vsel %vm1448, %v2964, 0
      %v3056 = vsel %vm1448, %v2965, 0
      %v3059 = vsel %vm1448, %v2966, 0
      %v3062 = vsel %vm1448, %v2967, 0
      %v3065 = vsel %vm1448, %v2968, 0
      %v3068 = vsel %vm1545, %v2970, 0
      %3070 = vmatpush.msra.mxu0 0.0
      %3071 = vmatpush.msra.mxu0 0.0
      %3072 = vmatpush.msra.mxu0 0.0
      %3073 = vmatpush.msra.mxu0 0.0
      %3074 = vmatpush.msra.mxu0 0.0
      %3075 = vmatpush.msra.mxu0 0.0
      %3076 = vmatpush.msra.mxu0 0.0
      %3077 = vmatpush.msra.mxu0 0.0
      %3078 = vmatpush.msra.mxu0 0.0
      %3079 = vmatpush.msra.mxu0 0.0
      %3080 = vmatpush.msra.mxu0 0.0
      %3081 = vmatpush.msra.mxu0 0.0
      %3082 = vmatpush.msra.mxu0 0.0
      %3083 = vmatpush.msra.mxu0 0.0
      %3084 = vmatpush.msra.mxu0 %v3068
      %3085 = vmatpush.msra.mxu0 %v2969
      %3086 = vmatmul.f32.gmra.mxu0 %v2972
      %v3087 = vpop.f32.mrf.mxu0
      %v3088 = vadd.f32 0.0, %v3087
      %3089 = vmatmul.f32.gmra.mxu0 %v2975
      %v3090 = vpop.f32.mrf.mxu0
      %v3091 = vadd.f32 0.0, %v3090
      %3092 = vmatmul.f32.gmra.mxu0 %v2978
      %v3093 = vpop.f32.mrf.mxu0
      %v3094 = vadd.f32 0.0, %v3093
      %3095 = vmatmul.f32.gmra.mxu0 %v2981
      %v3096 = vpop.f32.mrf.mxu0
      %v3097 = vadd.f32 0.0, %v3096
      %3098 = vmatmul.f32.gmra.mxu0 %v2984
      %v3099 = vpop.f32.mrf.mxu0
      %v3100 = vadd.f32 0.0, %v3099
      %3101 = vmatmul.f32.gmra.mxu0 %v2987
      %v3102 = vpop.f32.mrf.mxu0
      %v3103 = vadd.f32 0.0, %v3102
      %3104 = vmatmul.f32.gmra.mxu0 %v2990
      %v3105 = vpop.f32.mrf.mxu0
      %v3106 = vadd.f32 0.0, %v3105
      %3107 = vmatmul.f32.gmra.mxu0 %v2993
      %v3108 = vpop.f32.mrf.mxu0
      %v3109 = vadd.f32 0.0, %v3108
      %3110 = vmatmul.f32.gmra.mxu0 %v2996
      %v3111 = vpop.f32.mrf.mxu0
      %v3112 = vadd.f32 0.0, %v3111
      %3113 = vmatmul.f32.gmra.mxu0 %v2999
      %v3114 = vpop.f32.mrf.mxu0
      %v3115 = vadd.f32 0.0, %v3114
      %3116 = vmatmul.f32.gmra.mxu0 %v3002
      %v3117 = vpop.f32.mrf.mxu0
      %v3118 = vadd.f32 0.0, %v3117
      %3119 = vmatmul.f32.gmra.mxu0 %v3005
      %v3120 = vpop.f32.mrf.mxu0
      %v3121 = vadd.f32 0.0, %v3120
      %3122 = vmatmul.f32.gmra.mxu0 %v3008
      %v3123 = vpop.f32.mrf.mxu0
      %v3124 = vadd.f32 0.0, %v3123
      %3125 = vmatmul.f32.gmra.mxu0 %v3011
      %v3126 = vpop.f32.mrf.mxu0
      %v3127 = vadd.f32 0.0, %v3126
      %3128 = vmatmul.f32.gmra.mxu0 %v3014
      %v3129 = vpop.f32.mrf.mxu0
      %v3130 = vadd.f32 0.0, %v3129
      %3131 = vmatmul.f32.gmra.mxu0 %v3017
      %v3132 = vpop.f32.mrf.mxu0
      %v3133 = vadd.f32 0.0, %v3132
      %3134 = vmatmul.f32.gmra.mxu0 %v3020
      %v3135 = vpop.f32.mrf.mxu0
      %v3136 = vadd.f32 0.0, %v3135
      %3137 = vmatmul.f32.gmra.mxu0 %v3023
      %v3138 = vpop.f32.mrf.mxu0
      %v3139 = vadd.f32 0.0, %v3138
      %3140 = vmatmul.f32.gmra.mxu0 %v3026
      %v3141 = vpop.f32.mrf.mxu0
      %v3142 = vadd.f32 0.0, %v3141
      %3143 = vmatmul.f32.gmra.mxu0 %v3029
      %v3144 = vpop.f32.mrf.mxu0
      %v3145 = vadd.f32 0.0, %v3144
      %3146 = vmatmul.f32.gmra.mxu0 %v3032
      %v3147 = vpop.f32.mrf.mxu0
      %v3148 = vadd.f32 0.0, %v3147
      %3149 = vmatmul.f32.gmra.mxu0 %v3035
      %v3150 = vpop.f32.mrf.mxu0
      %v3151 = vadd.f32 0.0, %v3150
      %3152 = vmatmul.f32.gmra.mxu0 %v3038
      %v3153 = vpop.f32.mrf.mxu0
      %v3154 = vadd.f32 0.0, %v3153
      %3155 = vmatmul.f32.gmra.mxu0 %v3041
      %v3156 = vpop.f32.mrf.mxu0
      %v3157 = vadd.f32 0.0, %v3156
      %3158 = vmatmul.f32.gmra.mxu0 %v3044
      %v3159 = vpop.f32.mrf.mxu0
      %v3160 = vadd.f32 0.0, %v3159
      %3161 = vmatmul.f32.gmra.mxu0 %v3047
      %v3162 = vpop.f32.mrf.mxu0
      %v3163 = vadd.f32 0.0, %v3162
      %3164 = vmatmul.f32.gmra.mxu0 %v3050
      %v3165 = vpop.f32.mrf.mxu0
      %v3166 = vadd.f32 0.0, %v3165
      %3167 = vmatmul.f32.gmra.mxu0 %v3053
      %v3168 = vpop.f32.mrf.mxu0
      %v3169 = vadd.f32 0.0, %v3168
      %3170 = vmatmul.f32.gmra.mxu0 %v3056
      %v3171 = vpop.f32.mrf.mxu0
      %v3172 = vadd.f32 0.0, %v3171
      %3173 = vmatmul.f32.gmra.mxu0 %v3059
      %v3174 = vpop.f32.mrf.mxu0
      %v3175 = vadd.f32 0.0, %v3174
      %3176 = vmatmul.f32.gmra.mxu0 %v3062
      %v3177 = vpop.f32.mrf.mxu0
      %v3178 = vadd.f32 0.0, %v3177
      %3179 = vmatmul.f32.gmra.mxu0 %v3065
      %v3180 = vpop.f32.mrf.mxu0
      %v3181 = vadd.f32 0.0, %v3180
      %3182 = vdwg.mxu0
      %v3183 = vsel %vm1694, %v3094, %v3178
      %v3184 = vsel %vm1695, %v3097, %v3181
      %v3185 = vsel %vm1696, %v3100, %v3088
      %v3186 = vsel %vm1697, %v3103, %v3091
      %v3187 = vsel %vm1698, %v3106, %v3094
      %v3188 = vsel %vm1699, %v3109, %v3097
      %v3189 = vsel %vm1700, %v3112, %v3100
      %v3190 = vsel %vm1701, %v3115, %v3103
      %v3191 = vsel %vm1702, %v3118, %v3106
      %v3192 = vsel %vm1703, %v3121, %v3109
      %v3193 = vsel %vm1704, %v3124, %v3112
      %v3194 = vsel %vm1705, %v3127, %v3115
      %v3195 = vsel %vm1706, %v3130, %v3118
      %v3196 = vsel %vm1707, %v3133, %v3121
      %v3197 = vsel %vm1708, %v3136, %v3124
      %v3198 = vsel %vm1709, %v3139, %v3127
      %v3199 = vsel %vm1710, %v3142, %v3130
      %v3200 = vsel %vm1711, %v3145, %v3133
      %v3201 = vsel %vm1712, %v3148, %v3136
      %v3202 = vsel %vm1713, %v3151, %v3139
      %v3203 = vsel %vm1714, %v3154, %v3142
      %v3204 = vsel %vm1715, %v3157, %v3145
      %v3205 = vsel %vm1716, %v3160, %v3148
      %v3206 = vsel %vm1717, %v3163, %v3151
      %v3207 = vsel %vm1718, %v3166, %v3154
      %v3208 = vsel %vm1719, %v3169, %v3157
      %v3209 = vsel %vm1720, %v3172, %v3160
      %v3210 = vsel %vm1721, %v3175, %v3163
      %v3211 = vsel %vm1722, %v3178, %v3166
      %v3212 = vsel %vm1723, %v3181, %v3169
      %v3213 = vsel %vm1724, %v3088, %v3172
      %v3214 = vsel %vm1725, %v3091, %v3175
      %3247 = vrot.lane.b32.xlu0 %v3088, 120
      %v3248 = vpop.permute.xlu0 %3247
      %3249 = vrot.lane.b32.xlu0 %v3091, 120
      %v3250 = vpop.permute.xlu0 %3249
      %3251 = vrot.lane.b32.xlu0 %v3094, 120
      %v3252 = vpop.permute.xlu0 %3251
      %3253 = vrot.lane.b32.xlu0 %v3097, 120
      %v3254 = vpop.permute.xlu0 %3253
      %3255 = vrot.lane.b32.xlu0 %v3100, 120
      %v3256 = vpop.permute.xlu0 %3255
      %3257 = vrot.lane.b32.xlu0 %v3103, 120
      %v3258 = vpop.permute.xlu0 %3257
      %3259 = vrot.lane.b32.xlu0 %v3106, 120
      %v3260 = vpop.permute.xlu0 %3259
      %3261 = vrot.lane.b32.xlu0 %v3109, 120
      %v3262 = vpop.permute.xlu0 %3261
      %3263 = vrot.lane.b32.xlu0 %v3112, 120
      %v3264 = vpop.permute.xlu0 %3263
      %3265 = vrot.lane.b32.xlu0 %v3115, 120
      %v3266 = vpop.permute.xlu0 %3265
      %3267 = vrot.lane.b32.xlu0 %v3118, 120
      %v3268 = vpop.permute.xlu0 %3267
      %3269 = vrot.lane.b32.xlu0 %v3121, 120
      %v3270 = vpop.permute.xlu0 %3269
      %3271 = vrot.lane.b32.xlu0 %v3124, 120
      %v3272 = vpop.permute.xlu0 %3271
      %3273 = vrot.lane.b32.xlu0 %v3127, 120
      %v3274 = vpop.permute.xlu0 %3273
      %3275 = vrot.lane.b32.xlu0 %v3130, 120
      %v3276 = vpop.permute.xlu0 %3275
      %3277 = vrot.lane.b32.xlu0 %v3133, 120
      %v3278 = vpop.permute.xlu0 %3277
      %3279 = vrot.lane.b32.xlu0 %v3136, 120
      %v3280 = vpop.permute.xlu0 %3279
      %3281 = vrot.lane.b32.xlu0 %v3139, 120
      %v3282 = vpop.permute.xlu0 %3281
      %3283 = vrot.lane.b32.xlu0 %v3142, 120
      %v3284 = vpop.permute.xlu0 %3283
      %3285 = vrot.lane.b32.xlu0 %v3145, 120
      %v3286 = vpop.permute.xlu0 %3285
      %3287 = vrot.lane.b32.xlu0 %v3148, 120
      %v3288 = vpop.permute.xlu0 %3287
      %3289 = vrot.lane.b32.xlu0 %v3151, 120
      %v3290 = vpop.permute.xlu0 %3289
      %3291 = vrot.lane.b32.xlu0 %v3154, 120
      %v3292 = vpop.permute.xlu0 %3291
      %3293 = vrot.lane.b32.xlu0 %v3157, 120
      %v3294 = vpop.permute.xlu0 %3293
      %3295 = vrot.lane.b32.xlu0 %v3160, 120
      %v3296 = vpop.permute.xlu0 %3295
      %3297 = vrot.lane.b32.xlu0 %v3163, 120
      %v3298 = vpop.permute.xlu0 %3297
      %3299 = vrot.lane.b32.xlu0 %v3166, 120
      %v3300 = vpop.permute.xlu0 %3299
      %3301 = vrot.lane.b32.xlu0 %v3169, 120
      %v3302 = vpop.permute.xlu0 %3301
      %3303 = vrot.lane.b32.xlu0 %v3172, 120
      %v3304 = vpop.permute.xlu0 %3303
      %3305 = vrot.lane.b32.xlu0 %v3175, 120
      %v3306 = vpop.permute.xlu0 %3305
      %3307 = vrot.lane.b32.xlu0 %v3178, 120
      %v3308 = vpop.permute.xlu0 %3307
      %3309 = vrot.lane.b32.xlu0 %v3181, 120
      %v3310 = vpop.permute.xlu0 %3309
      %v3343 = vsel %vm1918, %v3308, %v3252
      %v3344 = vsel %vm1919, %v3310, %v3254
      %v3345 = vsel %vm1920, %v3248, %v3256
      %v3346 = vsel %vm1921, %v3250, %v3258
      %v3347 = vsel %vm1922, %v3252, %v3260
      %v3348 = vsel %vm1923, %v3254, %v3262
      %v3349 = vsel %vm1924, %v3256, %v3264
      %v3350 = vsel %vm1925, %v3258, %v3266
      %v3351 = vsel %vm1926, %v3260, %v3268
      %v3352 = vsel %vm1927, %v3262, %v3270
      %v3353 = vsel %vm1928, %v3264, %v3272
      %v3354 = vsel %vm1929, %v3266, %v3274
      %v3355 = vsel %vm1930, %v3268, %v3276
      %v3356 = vsel %vm1931, %v3270, %v3278
      %v3357 = vsel %vm1932, %v3272, %v3280
      %v3358 = vsel %vm1933, %v3274, %v3282
      %v3359 = vsel %vm1934, %v3276, %v3284
      %v3360 = vsel %vm1935, %v3278, %v3286
      %v3361 = vsel %vm1936, %v3280, %v3288
      %v3362 = vsel %vm1937, %v3282, %v3290
      %v3363 = vsel %vm1938, %v3284, %v3292
      %v3364 = vsel %vm1939, %v3286, %v3294
      %v3365 = vsel %vm1940, %v3288, %v3296
      %v3366 = vsel %vm1941, %v3290, %v3298
      %v3367 = vsel %vm1942, %v3292, %v3300
      %v3368 = vsel %vm1943, %v3294, %v3302
      %v3369 = vsel %vm1944, %v3296, %v3304
      %v3370 = vsel %vm1945, %v3298, %v3306
      %v3371 = vsel %vm1946, %v3300, %v3308
      %v3372 = vsel %vm1947, %v3302, %v3310
      %v3373 = vsel %vm1948, %v3304, %v3248
      %v3374 = vsel %vm1949, %v3306, %v3250
      %v3375 = vld [vmem:[%s4] sm:$0x1]
      %v3377 = vperm.slane %v3375, 0
      %v3379 = vadd.f32 %v3377, %v3183
      %v3380 = vadd.f32 %v3377, %v3184
      %v3381 = vadd.f32 %v3377, %v3185
      %v3382 = vadd.f32 %v3377, %v3186
      %v3383 = vadd.f32 %v3377, %v3187
      %v3384 = vadd.f32 %v3377, %v3188
      %v3385 = vadd.f32 %v3377, %v3189
      %v3386 = vadd.f32 %v3377, %v3190
      %v3387 = vadd.f32 %v3377, %v3191
      %v3388 = vadd.f32 %v3377, %v3192
      %v3389 = vadd.f32 %v3377, %v3193
      %v3390 = vadd.f32 %v3377, %v3194
      %v3391 = vadd.f32 %v3377, %v3195
      %v3392 = vadd.f32 %v3377, %v3196
      %v3393 = vadd.f32 %v3377, %v3197
      %v3394 = vadd.f32 %v3377, %v3198
      %v3395 = vadd.f32 %v3377, %v3199
      %v3396 = vadd.f32 %v3377, %v3200
      %v3397 = vadd.f32 %v3377, %v3201
      %v3398 = vadd.f32 %v3377, %v3202
      %v3399 = vadd.f32 %v3377, %v3203
      %v3400 = vadd.f32 %v3377, %v3204
      %v3401 = vadd.f32 %v3377, %v3205
      %v3402 = vadd.f32 %v3377, %v3206
      %v3403 = vadd.f32 %v3377, %v3207
      %v3404 = vadd.f32 %v3377, %v3208
      %v3405 = vadd.f32 %v3377, %v3209
      %v3406 = vadd.f32 %v3377, %v3210
      %v3407 = vadd.f32 %v3377, %v3211
      %v3408 = vadd.f32 %v3377, %v3212
      %v3409 = vadd.f32 %v3377, %v3213
      %v3410 = vadd.f32 %v3377, %v3214
      %3411 = vrot.lane.b32.xlu0 %v3088, 124
      %v3412 = vpop.permute.xlu0 %3411
      %3413 = vrot.lane.b32.xlu0 %v3091, 124
      %v3414 = vpop.permute.xlu0 %3413
      %3415 = vrot.lane.b32.xlu0 %v3094, 124
      %v3416 = vpop.permute.xlu0 %3415
      %3417 = vrot.lane.b32.xlu0 %v3097, 124
      %v3418 = vpop.permute.xlu0 %3417
      %3419 = vrot.lane.b32.xlu0 %v3100, 124
      %v3420 = vpop.permute.xlu0 %3419
      %3421 = vrot.lane.b32.xlu0 %v3103, 124
      %v3422 = vpop.permute.xlu0 %3421
      %3423 = vrot.lane.b32.xlu0 %v3106, 124
      %v3424 = vpop.permute.xlu0 %3423
      %3425 = vrot.lane.b32.xlu0 %v3109, 124
      %v3426 = vpop.permute.xlu0 %3425
      %3427 = vrot.lane.b32.xlu0 %v3112, 124
      %v3428 = vpop.permute.xlu0 %3427
      %3429 = vrot.lane.b32.xlu0 %v3115, 124
      %v3430 = vpop.permute.xlu0 %3429
      %3431 = vrot.lane.b32.xlu0 %v3118, 124
      %v3432 = vpop.permute.xlu0 %3431
      %3433 = vrot.lane.b32.xlu0 %v3121, 124
      %v3434 = vpop.permute.xlu0 %3433
      %3435 = vrot.lane.b32.xlu0 %v3124, 124
      %v3436 = vpop.permute.xlu0 %3435
      %3437 = vrot.lane.b32.xlu0 %v3127, 124
      %v3438 = vpop.permute.xlu0 %3437
      %3439 = vrot.lane.b32.xlu0 %v3130, 124
      %v3440 = vpop.permute.xlu0 %3439
      %3441 = vrot.lane.b32.xlu0 %v3133, 124
      %v3442 = vpop.permute.xlu0 %3441
      %3443 = vrot.lane.b32.xlu0 %v3136, 124
      %v3444 = vpop.permute.xlu0 %3443
      %3445 = vrot.lane.b32.xlu0 %v3139, 124
      %v3446 = vpop.permute.xlu0 %3445
      %3447 = vrot.lane.b32.xlu0 %v3142, 124
      %v3448 = vpop.permute.xlu0 %3447
      %3449 = vrot.lane.b32.xlu0 %v3145, 124
      %v3450 = vpop.permute.xlu0 %3449
      %3451 = vrot.lane.b32.xlu0 %v3148, 124
      %v3452 = vpop.permute.xlu0 %3451
      %3453 = vrot.lane.b32.xlu0 %v3151, 124
      %v3454 = vpop.permute.xlu0 %3453
      %3455 = vrot.lane.b32.xlu0 %v3154, 124
      %v3456 = vpop.permute.xlu0 %3455
      %3457 = vrot.lane.b32.xlu0 %v3157, 124
      %v3458 = vpop.permute.xlu0 %3457
      %3459 = vrot.lane.b32.xlu0 %v3160, 124
      %v3460 = vpop.permute.xlu0 %3459
      %3461 = vrot.lane.b32.xlu0 %v3163, 124
      %v3462 = vpop.permute.xlu0 %3461
      %3463 = vrot.lane.b32.xlu0 %v3166, 124
      %v3464 = vpop.permute.xlu0 %3463
      %3465 = vrot.lane.b32.xlu0 %v3169, 124
      %v3466 = vpop.permute.xlu0 %3465
      %3467 = vrot.lane.b32.xlu0 %v3172, 124
      %v3468 = vpop.permute.xlu0 %3467
      %3469 = vrot.lane.b32.xlu0 %v3175, 124
      %v3470 = vpop.permute.xlu0 %3469
      %3471 = vrot.lane.b32.xlu0 %v3178, 124
      %v3472 = vpop.permute.xlu0 %3471
      %3473 = vrot.lane.b32.xlu0 %v3181, 124
      %v3474 = vpop.permute.xlu0 %3473
      %v3507 = vadd.f32 %v3379, %v3412
      %v3508 = vadd.f32 %v3380, %v3414
      %v3509 = vadd.f32 %v3381, %v3416
      %v3510 = vadd.f32 %v3382, %v3418
      %v3511 = vadd.f32 %v3383, %v3420
      %v3512 = vadd.f32 %v3384, %v3422
      %v3513 = vadd.f32 %v3385, %v3424
      %v3514 = vadd.f32 %v3386, %v3426
      %v3515 = vadd.f32 %v3387, %v3428
      %v3516 = vadd.f32 %v3388, %v3430
      %v3517 = vadd.f32 %v3389, %v3432
      %v3518 = vadd.f32 %v3390, %v3434
      %v3519 = vadd.f32 %v3391, %v3436
      %v3520 = vadd.f32 %v3392, %v3438
      %v3521 = vadd.f32 %v3393, %v3440
      %v3522 = vadd.f32 %v3394, %v3442
      %v3523 = vadd.f32 %v3395, %v3444
      %v3524 = vadd.f32 %v3396, %v3446
      %v3525 = vadd.f32 %v3397, %v3448
      %v3526 = vadd.f32 %v3398, %v3450
      %v3527 = vadd.f32 %v3399, %v3452
      %v3528 = vadd.f32 %v3400, %v3454
      %v3529 = vadd.f32 %v3401, %v3456
      %v3530 = vadd.f32 %v3402, %v3458
      %v3531 = vadd.f32 %v3403, %v3460
      %v3532 = vadd.f32 %v3404, %v3462
      %v3533 = vadd.f32 %v3405, %v3464
      %v3534 = vadd.f32 %v3406, %v3466
      %v3535 = vadd.f32 %v3407, %v3468
      %v3536 = vadd.f32 %v3408, %v3470
      %v3537 = vadd.f32 %v3409, %v3472
      %v3538 = vadd.f32 %v3410, %v3474
      %v3539 = vadd.f32 %v3507, %v3343
      %v3540 = vadd.f32 %v3508, %v3344
      %v3541 = vadd.f32 %v3509, %v3345
      %v3542 = vadd.f32 %v3510, %v3346
      %v3543 = vadd.f32 %v3511, %v3347
      %v3544 = vadd.f32 %v3512, %v3348
      %v3545 = vadd.f32 %v3513, %v3349
      %v3546 = vadd.f32 %v3514, %v3350
      %v3547 = vadd.f32 %v3515, %v3351
      %v3548 = vadd.f32 %v3516, %v3352
      %v3549 = vadd.f32 %v3517, %v3353
      %v3550 = vadd.f32 %v3518, %v3354
      %v3551 = vadd.f32 %v3519, %v3355
      %v3552 = vadd.f32 %v3520, %v3356
      %v3553 = vadd.f32 %v3521, %v3357
      %v3554 = vadd.f32 %v3522, %v3358
      %v3555 = vadd.f32 %v3523, %v3359
      %v3556 = vadd.f32 %v3524, %v3360
      %v3557 = vadd.f32 %v3525, %v3361
      %v3558 = vadd.f32 %v3526, %v3362
      %v3559 = vadd.f32 %v3527, %v3363
      %v3560 = vadd.f32 %v3528, %v3364
      %v3561 = vadd.f32 %v3529, %v3365
      %v3562 = vadd.f32 %v3530, %v3366
      %v3563 = vadd.f32 %v3531, %v3367
      %v3564 = vadd.f32 %v3532, %v3368
      %v3565 = vadd.f32 %v3533, %v3369
      %v3566 = vadd.f32 %v3534, %v3370
      %v3567 = vadd.f32 %v3535, %v3371
      %v3568 = vadd.f32 %v3536, %v3372
      %v3569 = vadd.f32 %v3537, %v3373
      %v3570 = vadd.f32 %v3538, %v3374
      %v3571 = vsel %vm1380, %v3539, 0.0
      %v3572 = vsel %vm1380, %v3540, 0.0
      %v3573 = vadd.f32 %v3571, %v3572
      %v3574 = vsel %vm1380, %v3541, 0.0
      %v3575 = vadd.f32 %v3573, %v3574
      %v3576 = vsel %vm1380, %v3542, 0.0
      %v3577 = vadd.f32 %v3575, %v3576
      %v3578 = vsel %vm1380, %v3543, 0.0
      %v3579 = vadd.f32 %v3577, %v3578
      %v3580 = vsel %vm1380, %v3544, 0.0
      %v3581 = vadd.f32 %v3579, %v3580
      %v3582 = vsel %vm1380, %v3545, 0.0
      %v3583 = vadd.f32 %v3581, %v3582
      %v3584 = vsel %vm1380, %v3546, 0.0
      %v3585 = vadd.f32 %v3583, %v3584
      %v3586 = vsel %vm1380, %v3547, 0.0
      %v3587 = vadd.f32 %v3585, %v3586
      %v3588 = vsel %vm1380, %v3548, 0.0
      %v3589 = vadd.f32 %v3587, %v3588
      %v3590 = vsel %vm1380, %v3549, 0.0
      %v3591 = vadd.f32 %v3589, %v3590
      %v3592 = vsel %vm1380, %v3550, 0.0
      %v3593 = vadd.f32 %v3591, %v3592
      %v3594 = vsel %vm1380, %v3551, 0.0
      %v3595 = vadd.f32 %v3593, %v3594
      %v3596 = vsel %vm1380, %v3552, 0.0
      %v3597 = vadd.f32 %v3595, %v3596
      %v3598 = vsel %vm1380, %v3553, 0.0
      %v3599 = vadd.f32 %v3597, %v3598
      %v3600 = vsel %vm1380, %v3554, 0.0
      %v3601 = vadd.f32 %v3599, %v3600
      %v3602 = vsel %vm1380, %v3555, 0.0
      %v3603 = vadd.f32 %v3601, %v3602
      %v3604 = vsel %vm1380, %v3556, 0.0
      %v3605 = vadd.f32 %v3603, %v3604
      %v3606 = vsel %vm1380, %v3557, 0.0
      %v3607 = vadd.f32 %v3605, %v3606
      %v3608 = vsel %vm1380, %v3558, 0.0
      %v3609 = vadd.f32 %v3607, %v3608
      %v3610 = vsel %vm1380, %v3559, 0.0
      %v3611 = vadd.f32 %v3609, %v3610
      %v3612 = vsel %vm1380, %v3560, 0.0
      %v3613 = vadd.f32 %v3611, %v3612
      %v3614 = vsel %vm1380, %v3561, 0.0
      %v3615 = vadd.f32 %v3613, %v3614
      %v3616 = vsel %vm1380, %v3562, 0.0
      %v3617 = vadd.f32 %v3615, %v3616
      %v3618 = vsel %vm1380, %v3563, 0.0
      %v3619 = vadd.f32 %v3617, %v3618
      %v3620 = vsel %vm1380, %v3564, 0.0
      %v3621 = vadd.f32 %v3619, %v3620
      %v3622 = vsel %vm1380, %v3565, 0.0
      %v3623 = vadd.f32 %v3621, %v3622
      %v3624 = vsel %vm1380, %v3566, 0.0
      %v3625 = vadd.f32 %v3623, %v3624
      %v3626 = vsel %vm1380, %v3567, 0.0
      %v3627 = vadd.f32 %v3625, %v3626
      %v3628 = vsel %vm1380, %v3568, 0.0
      %v3629 = vadd.f32 %v3627, %v3628
      %v3630 = vsel %vm1380, %v3569, 0.0
      %v3631 = vadd.f32 %v3629, %v3630
      %v3632 = vsel %vm1380, %v3570, 0.0
      %v3633 = vadd.f32 %v3631, %v3632
      %v3634 = vrot.slane %v3633, 4
      %v3635 = vadd.f32 %v3633, %v3634
      %v3636 = vrot.slane %v3635, 2
      %v3637 = vadd.f32 %v3635, %v3636
      %v3638 = vrot.slane %v3637, 1
      %v3639 = vadd.f32 %v3637, %v3638
      %v3640 = vmul.f32 %v3639, 0.00390625
      %v3641 = vsub.f32 %v3539, %v3640
      %v3642 = vsub.f32 %v3540, %v3640
      %v3643 = vsub.f32 %v3541, %v3640
      %v3644 = vsub.f32 %v3542, %v3640
      %v3645 = vsub.f32 %v3543, %v3640
      %v3646 = vsub.f32 %v3544, %v3640
      %v3647 = vsub.f32 %v3545, %v3640
      %v3648 = vsub.f32 %v3546, %v3640
      %v3649 = vsub.f32 %v3547, %v3640
      %v3650 = vsub.f32 %v3548, %v3640
      %v3651 = vsub.f32 %v3549, %v3640
      %v3652 = vsub.f32 %v3550, %v3640
      %v3653 = vsub.f32 %v3551, %v3640
      %v3654 = vsub.f32 %v3552, %v3640
      %v3655 = vsub.f32 %v3553, %v3640
      %v3656 = vsub.f32 %v3554, %v3640
      %v3657 = vsub.f32 %v3555, %v3640
      %v3658 = vsub.f32 %v3556, %v3640
      %v3659 = vsub.f32 %v3557, %v3640
      %v3660 = vsub.f32 %v3558, %v3640
      %v3661 = vsub.f32 %v3559, %v3640
      %v3662 = vsub.f32 %v3560, %v3640
      %v3663 = vsub.f32 %v3561, %v3640
      %v3664 = vsub.f32 %v3562, %v3640
      %v3665 = vsub.f32 %v3563, %v3640
      %v3666 = vsub.f32 %v3564, %v3640
      %v3667 = vsub.f32 %v3565, %v3640
      %v3668 = vsub.f32 %v3566, %v3640
      %v3669 = vsub.f32 %v3567, %v3640
      %v3670 = vsub.f32 %v3568, %v3640
      %v3671 = vsub.f32 %v3569, %v3640
      %v3672 = vsub.f32 %v3570, %v3640
      %v3673 = vmul.f32 %v3641, %v3641
      %v3674 = vmul.f32 %v3642, %v3642
      %v3675 = vmul.f32 %v3643, %v3643
      %v3676 = vmul.f32 %v3644, %v3644
      %v3677 = vmul.f32 %v3645, %v3645
      %v3678 = vmul.f32 %v3646, %v3646
      %v3679 = vmul.f32 %v3647, %v3647
      %v3680 = vmul.f32 %v3648, %v3648
      %v3681 = vmul.f32 %v3649, %v3649
      %v3682 = vmul.f32 %v3650, %v3650
      %v3683 = vmul.f32 %v3651, %v3651
      %v3684 = vmul.f32 %v3652, %v3652
      %v3685 = vmul.f32 %v3653, %v3653
      %v3686 = vmul.f32 %v3654, %v3654
      %v3687 = vmul.f32 %v3655, %v3655
      %v3688 = vmul.f32 %v3656, %v3656
      %v3689 = vmul.f32 %v3657, %v3657
      %v3690 = vmul.f32 %v3658, %v3658
      %v3691 = vmul.f32 %v3659, %v3659
      %v3692 = vmul.f32 %v3660, %v3660
      %v3693 = vmul.f32 %v3661, %v3661
      %v3694 = vmul.f32 %v3662, %v3662
      %v3695 = vmul.f32 %v3663, %v3663
      %v3696 = vmul.f32 %v3664, %v3664
      %v3697 = vmul.f32 %v3665, %v3665
      %v3698 = vmul.f32 %v3666, %v3666
      %v3699 = vmul.f32 %v3667, %v3667
      %v3700 = vmul.f32 %v3668, %v3668
      %v3701 = vmul.f32 %v3669, %v3669
      %v3702 = vmul.f32 %v3670, %v3670
      %v3703 = vmul.f32 %v3671, %v3671
      %v3704 = vmul.f32 %v3672, %v3672
      %v3705 = vsel %vm1380, %v3673, 0.0
      %v3706 = vsel %vm1380, %v3674, 0.0
      %v3707 = vadd.f32 %v3705, %v3706
      %v3708 = vsel %vm1380, %v3675, 0.0
      %v3709 = vadd.f32 %v3707, %v3708
      %v3710 = vsel %vm1380, %v3676, 0.0
      %v3711 = vadd.f32 %v3709, %v3710
      %v3712 = vsel %vm1380, %v3677, 0.0
      %v3713 = vadd.f32 %v3711, %v3712
      %v3714 = vsel %vm1380, %v3678, 0.0
      %v3715 = vadd.f32 %v3713, %v3714
      %v3716 = vsel %vm1380, %v3679, 0.0
      %v3717 = vadd.f32 %v3715, %v3716
      %v3718 = vsel %vm1380, %v3680, 0.0
      %v3719 = vadd.f32 %v3717, %v3718
      %v3720 = vsel %vm1380, %v3681, 0.0
      %v3721 = vadd.f32 %v3719, %v3720
      %v3722 = vsel %vm1380, %v3682, 0.0
      %v3723 = vadd.f32 %v3721, %v3722
      %v3724 = vsel %vm1380, %v3683, 0.0
      %v3725 = vadd.f32 %v3723, %v3724
      %v3726 = vsel %vm1380, %v3684, 0.0
      %v3727 = vadd.f32 %v3725, %v3726
      %v3728 = vsel %vm1380, %v3685, 0.0
      %v3729 = vadd.f32 %v3727, %v3728
      %v3730 = vsel %vm1380, %v3686, 0.0
      %v3731 = vadd.f32 %v3729, %v3730
      %v3732 = vsel %vm1380, %v3687, 0.0
      %v3733 = vadd.f32 %v3731, %v3732
      %v3734 = vsel %vm1380, %v3688, 0.0
      %v3735 = vadd.f32 %v3733, %v3734
      %v3736 = vsel %vm1380, %v3689, 0.0
      %v3737 = vadd.f32 %v3735, %v3736
      %v3738 = vsel %vm1380, %v3690, 0.0
      %v3739 = vadd.f32 %v3737, %v3738
      %v3740 = vsel %vm1380, %v3691, 0.0
      %v3741 = vadd.f32 %v3739, %v3740
      %v3742 = vsel %vm1380, %v3692, 0.0
      %v3743 = vadd.f32 %v3741, %v3742
      %v3744 = vsel %vm1380, %v3693, 0.0
      %v3745 = vadd.f32 %v3743, %v3744
      %v3746 = vsel %vm1380, %v3694, 0.0
      %v3747 = vadd.f32 %v3745, %v3746
      %v3748 = vsel %vm1380, %v3695, 0.0
      %v3749 = vadd.f32 %v3747, %v3748
      %v3750 = vsel %vm1380, %v3696, 0.0
      %v3751 = vadd.f32 %v3749, %v3750
      %v3752 = vsel %vm1380, %v3697, 0.0
      %v3753 = vadd.f32 %v3751, %v3752
      %v3754 = vsel %vm1380, %v3698, 0.0
      %v3755 = vadd.f32 %v3753, %v3754
      %v3756 = vsel %vm1380, %v3699, 0.0
      %v3757 = vadd.f32 %v3755, %v3756
      %v3758 = vsel %vm1380, %v3700, 0.0
      %v3759 = vadd.f32 %v3757, %v3758
      %v3760 = vsel %vm1380, %v3701, 0.0
      %v3761 = vadd.f32 %v3759, %v3760
      %v3762 = vsel %vm1380, %v3702, 0.0
      %v3763 = vadd.f32 %v3761, %v3762
      %v3764 = vsel %vm1380, %v3703, 0.0
      %v3765 = vadd.f32 %v3763, %v3764
      %v3766 = vsel %vm1380, %v3704, 0.0
      %v3767 = vadd.f32 %v3765, %v3766
      %v3768 = vrot.slane %v3767, 4
      %v3769 = vadd.f32 %v3767, %v3768
      %v3770 = vrot.slane %v3769, 2
      %v3771 = vadd.f32 %v3769, %v3770
      %v3772 = vrot.slane %v3771, 1
      %v3773 = vadd.f32 %v3771, %v3772
      %v3774 = vmul.f32 %v3773, 0.00390625
      %v3775 = vadd.f32 %v3774, 1e-05
      %v3776 = vrsqrt.pop %v3775
      %v3777 = vmul.f32 %v3776, %v3775
      %v3778 = vmul.f32 %v3777, %v3776
      %v3779 = vmul.f32 0.5, %v3778
      %v3780 = vsub.f32 1.5, %v3779
      %v3781 = vmul.f32 %v3776, %v3780
      %vm3782 = vweird.f32 %v3775
      %vm3783 = vweird.f32 %v3776
      %vm3784 = vmor %vm3782, %vm3783
      %v3785 = vsel %vm3784, %v3776, %v3781
      %v3786 = vmul.f32 %v3641, %v3785
      %v3787 = vmul.f32 %v3642, %v3785
      %v3788 = vmul.f32 %v3643, %v3785
      %v3789 = vmul.f32 %v3644, %v3785
      %v3790 = vmul.f32 %v3645, %v3785
      %v3791 = vmul.f32 %v3646, %v3785
      %v3792 = vmul.f32 %v3647, %v3785
      %v3793 = vmul.f32 %v3648, %v3785
      %v3794 = vmul.f32 %v3649, %v3785
      %v3795 = vmul.f32 %v3650, %v3785
      %v3796 = vmul.f32 %v3651, %v3785
      %v3797 = vmul.f32 %v3652, %v3785
      %v3798 = vmul.f32 %v3653, %v3785
      %v3799 = vmul.f32 %v3654, %v3785
      %v3800 = vmul.f32 %v3655, %v3785
      %v3801 = vmul.f32 %v3656, %v3785
      %v3802 = vmul.f32 %v3657, %v3785
      %v3803 = vmul.f32 %v3658, %v3785
      %v3804 = vmul.f32 %v3659, %v3785
      %v3805 = vmul.f32 %v3660, %v3785
      %v3806 = vmul.f32 %v3661, %v3785
      %v3807 = vmul.f32 %v3662, %v3785
      %v3808 = vmul.f32 %v3663, %v3785
      %v3809 = vmul.f32 %v3664, %v3785
      %v3810 = vmul.f32 %v3665, %v3785
      %v3811 = vmul.f32 %v3666, %v3785
      %v3812 = vmul.f32 %v3667, %v3785
      %v3813 = vmul.f32 %v3668, %v3785
      %v3814 = vmul.f32 %v3669, %v3785
      %v3815 = vmul.f32 %v3670, %v3785
      %v3816 = vmul.f32 %v3671, %v3785
      %v3817 = vmul.f32 %v3672, %v3785
      %v3818 = vadd.f32 %v3786, %v225
      %v3819 = vadd.f32 %v3787, %v226
      %v3820 = vadd.f32 %v3788, %v227
      %v3821 = vadd.f32 %v3789, %v228
      %v3822 = vadd.f32 %v3790, %v229
      %v3823 = vadd.f32 %v3791, %v230
      %v3824 = vadd.f32 %v3792, %v231
      %v3825 = vadd.f32 %v3793, %v232
      %v3826 = vadd.f32 %v3794, %v233
      %v3827 = vadd.f32 %v3795, %v234
      %v3828 = vadd.f32 %v3796, %v235
      %v3829 = vadd.f32 %v3797, %v236
      %v3830 = vadd.f32 %v3798, %v237
      %v3831 = vadd.f32 %v3799, %v238
      %v3832 = vadd.f32 %v3800, %v239
      %v3833 = vadd.f32 %v3801, %v240
      %v3834 = vadd.f32 %v3802, %v241
      %v3835 = vadd.f32 %v3803, %v242
      %v3836 = vadd.f32 %v3804, %v243
      %v3837 = vadd.f32 %v3805, %v244
      %v3838 = vadd.f32 %v3806, %v245
      %v3839 = vadd.f32 %v3807, %v246
      %v3840 = vadd.f32 %v3808, %v247
      %v3841 = vadd.f32 %v3809, %v248
      %v3842 = vadd.f32 %v3810, %v249
      %v3843 = vadd.f32 %v3811, %v250
      %v3844 = vadd.f32 %v3812, %v251
      %v3845 = vadd.f32 %v3813, %v252
      %v3846 = vadd.f32 %v3814, %v253
      %v3847 = vadd.f32 %v3815, %v254
      %v3848 = vadd.f32 %v3816, %v255
      %v3849 = vadd.f32 %v3817, %v256
      %3850 = vst.msk [vmem:[%s224] sm:$0xff] %vm1380, %v3818
      %3851 = vst.msk [vmem:[%s224 + $0x8] sm:$0xff] %vm1380, %v3819
      %3852 = vst.msk [vmem:[%s224 + $0x10] sm:$0xff] %vm1380, %v3820
      %3853 = vst.msk [vmem:[%s224 + $0x18] sm:$0xff] %vm1380, %v3821
      %3854 = vst.msk [vmem:[%s224 + $0x20] sm:$0xff] %vm1380, %v3822
      %3855 = vst.msk [vmem:[%s224 + $0x28] sm:$0xff] %vm1380, %v3823
      %3856 = vst.msk [vmem:[%s224 + $0x30] sm:$0xff] %vm1380, %v3824
      %3857 = vst.msk [vmem:[%s224 + $0x38] sm:$0xff] %vm1380, %v3825
      %3858 = vst.msk [vmem:[%s224 + $0x40] sm:$0xff] %vm1380, %v3826
      %3859 = vst.msk [vmem:[%s224 + $0x48] sm:$0xff] %vm1380, %v3827
      %3860 = vst.msk [vmem:[%s224 + $0x50] sm:$0xff] %vm1380, %v3828
      %3861 = vst.msk [vmem:[%s224 + $0x58] sm:$0xff] %vm1380, %v3829
      %3862 = vst.msk [vmem:[%s224 + $0x60] sm:$0xff] %vm1380, %v3830
      %3863 = vst.msk [vmem:[%s224 + $0x68] sm:$0xff] %vm1380, %v3831
      %3864 = vst.msk [vmem:[%s224 + $0x70] sm:$0xff] %vm1380, %v3832
      %3865 = vst.msk [vmem:[%s224 + $0x78] sm:$0xff] %vm1380, %v3833
      %3866 = vst.msk [vmem:[%s224 + $0x80] sm:$0xff] %vm1380, %v3834
      %3867 = vst.msk [vmem:[%s224 + $0x88] sm:$0xff] %vm1380, %v3835
      %3868 = vst.msk [vmem:[%s224 + $0x90] sm:$0xff] %vm1380, %v3836
      %3869 = vst.msk [vmem:[%s224 + $0x98] sm:$0xff] %vm1380, %v3837
      %3870 = vst.msk [vmem:[%s224 + $0xa0] sm:$0xff] %vm1380, %v3838
      %3871 = vst.msk [vmem:[%s224 + $0xa8] sm:$0xff] %vm1380, %v3839
      %3872 = vst.msk [vmem:[%s224 + $0xb0] sm:$0xff] %vm1380, %v3840
      %3873 = vst.msk [vmem:[%s224 + $0xb8] sm:$0xff] %vm1380, %v3841
      %3874 = vst.msk [vmem:[%s224 + $0xc0] sm:$0xff] %vm1380, %v3842
      %3875 = vst.msk [vmem:[%s224 + $0xc8] sm:$0xff] %vm1380, %v3843
      %3876 = vst.msk [vmem:[%s224 + $0xd0] sm:$0xff] %vm1380, %v3844
      %3877 = vst.msk [vmem:[%s224 + $0xd8] sm:$0xff] %vm1380, %v3845
      %3878 = vst.msk [vmem:[%s224 + $0xe0] sm:$0xff] %vm1380, %v3846
      %3879 = vst.msk [vmem:[%s224 + $0xe8] sm:$0xff] %vm1380, %v3847
      %3880 = vst.msk [vmem:[%s224 + $0xf0] sm:$0xff] %vm1380, %v3848
      %3881 = vst.msk [vmem:[%s224 + $0xf8] sm:$0xff] %vm1380, %v3849
      %p3882 = scmp.lt.s32.totalorder %s16, 1
      %s3883 = scalar_select %p3882, %s16, 1
      %s3884 = smul.addr %s3883, 32
      %s3885 = smul.addr %s3884, 8
      %s3886 = scalar_lea.vmem %s5, %s3885
      // Predicated region
      $region41: #{tpu_custom_call.1} parent=39 // pred_check
        %p3887 = pneg %p144
      $region42: #{tpu_custom_call.1} parent=39 // pred_check_branch
        %3889 = sbr.rel (%p3887) target = $region44
      $region43: #{tpu_custom_call.1} parent=39 // pred_region
        _
      $region44: #{tpu_custom_call.1} parent=39 // pred_fallthru
        _
    $region40: #{tpu_custom_call.1} parent=5 // pred_fallthru
      _
    %p3890 = scmp.le.s32.totalorder 2, %s11
    // Predicated region
    $region45: #{tpu_custom_call.1} parent=5 // pred_check
      %p3891 = pneg %p3890
    $region46: #{tpu_custom_call.1} parent=5 // pred_check_branch
      %3893 = sbr.rel (%p3891) target = $region48
    $region47: #{tpu_custom_call.1} parent=5 // pred_region
      %s3894 = ssub.s32 %s11, 2
      // Predicated region
      $region49: #{tpu_custom_call.1} parent=47 // pred_check
        %p3895 = pneg %p150
      $region50: #{tpu_custom_call.1} parent=47 // pred_check_branch
        %3897 = sbr.rel (%p3895) target = $region52
      $region51: #{tpu_custom_call.1} parent=47 // pred_region
        %p3898 = scmp.lt.s32.totalorder %s17, 1
        %s3899 = scalar_select %p3898, %s17, 1
        %s3900 = smul.addr %s3899, 32
        %s3901 = smul.addr %s3900, 8
        %s3902 = scalar_lea.vmem %s5, %s3901
      $region52: #{tpu_custom_call.1} parent=47 // pred_fallthru
        _
    $region48: #{tpu_custom_call.1} parent=5 // pred_fallthru
      _
  $region6: #{tpu_custom_call.1} parent=0 // loop_footer
    %s15 = sadd.s32 1, %s11
  $region7: #{tpu_custom_call.1} parent=0 // loop_footer_branch
    %10 = sbr.rel target = $region3
  $region8: #{tpu_custom_call.1} parent=0 // loop_exit
    _

</llo_original>
